<compile_context>
chip_gen: v7x
topology: tpu7x:2x2x1
jax: 0.10.0
libtpu: 0.0.40
codegen_flags: <defaults>
</compile_context>

<pallas_src>
import functools

import jax
import jax.numpy as jnp
from jax import lax
from jax.experimental import pallas as pl
from jax.experimental.pallas import tpu as pltpu


B_BLK = 8  # batch rows per grid block (one sublane tile)


# ----------------------------- helpers ---------------------------------------

def _relu(x):
    return jnp.maximum(x, 0.0)


def _softplus(x):
    return jnp.maximum(x, 0.0) + jnp.log1p(jnp.exp(-jnp.abs(x)))


def _sigmoid(x):
    return jax.nn.sigmoid(x)


def _dot(a, b):
    return jnp.dot(a, b, preferred_element_type=jnp.float32)


# ----------------------------- the recurrence kernel --------------------------

def mavap_recurrence_kernel(
    px_ref,      # [T, Bb, nh*h]   phi_x @ wp1x + bp1 (posterior L1, x half)
    gi0_ref,     # [T, Bb, 4h]     layer-0 GRU pre-acts from phi_x (+ biases folded)
    eps_ref,     # [T, Bb, z]
    wp1h_ref,    # [h, nh*h]       posterior L1, hidden half
    wp2_ref,     # [nh*h, nh*z]    posterior L2, block diagonal
    bp2_ref,     # [1, nh*z]
    gvec_ref,    # [1, nh*z]       gamma_post repeated z times per head
    w_z_ref,     # [z, h]
    b_z_ref,     # [1, h]
    w_gru_ref,   # [n_layers, 2h, 4h]  fused [input|hidden] x [r | z | n_in | n_hid]
    b_gru_ref,   # [n_layers, 1, 4h]   (layer-0 row is zeros; folded into gi0)
    hz_ref,      # [T, Bb, h+z]    out: (step-entry hidden | raw posterior wsum)
    hidden_ref,  # [n_layers, Bb, h]  out: final hidden state
    *, h_dim, z_dim, n_layers, n_heads):

    T = px_ref.shape[0]
    Bb = px_ref.shape[1]
    h = h_dim
    z = z_dim

    # ---- loop-invariant loads hoisted out of the recurrence ----
    wp1h = wp1h_ref[...]
    wp2 = wp2_ref[...]
    bp2 = bp2_ref[...]
    gvec = gvec_ref[...]
    w_z = w_z_ref[...]
    b_z = b_z_ref[...]
    w_gru = [w_gru_ref[l] for l in range(n_layers)]
    b_gru = [b_gru_ref[l] for l in range(n_layers)]

    def gru_step(phi_z, gi0_t, hidden):
        new_hidden = []
        layer_in = phi_z
        for l in range(n_layers):
            h_l = hidden[l]
            # one fused matmul per layer: [B, 2h] x [2h, 4h]
            g = _dot(jnp.concatenate([layer_in, h_l], axis=-1), w_gru[l])
            g = g + (gi0_t if l == 0 else b_gru[l])
            r = _sigmoid(g[:, :h])
            zg = _sigmoid(g[:, h:2 * h])
            n = jnp.tanh(g[:, 2 * h:3 * h] + r * g[:, 3 * h:4 * h])
            h_new = (1.0 - zg) * n + zg * h_l
            new_hidden.append(h_new)
            layer_in = h_new
        return tuple(new_hidden)

    def step(t, hidden):
        h_last = hidden[n_layers - 1]
        # fused multi-head posterior (phi_x contribution precomputed in px_ref)
        p1 = _relu(px_ref[t] + _dot(h_last, wp1h))
        post_all = _relu(_dot(p1, wp2) + bp2)
        # gamma-weighted head sum as lane-slice adds (no [nh*z, z] matmul)
        weighted = post_all * gvec
        wsum = weighted[:, :z]
        for i in range(1, n_heads):
            wsum = wsum + weighted[:, i * z:(i + 1) * z]
        post_mu = _relu(wsum)
        post_sigma = _softplus(wsum)
        # single packed store per step (prior head finalized outside)
        hz_ref[t] = jnp.concatenate([h_last, wsum], axis=-1)
        # reparameterized sample + z embedding
        z_t = eps_ref[t] * post_sigma + post_mu
        phi_z = _relu(_dot(z_t, w_z) + b_z)
        return gru_step(phi_z, gi0_ref[t], hidden)

    hidden0 = tuple(jnp.zeros((Bb, h), jnp.float32) for _ in range(n_layers))
    unroll = True if T <= 16 else 4
    hidden = lax.fori_loop(0, T, step, hidden0, unroll=unroll)

    for l in range(n_layers):
        hidden_ref[l] = hidden[l]


# ----------------------------- weight preparation -----------------------------

def _block_diag(blocks):
    nh = len(blocks)
    r, c = blocks[0].shape
    out = jnp.zeros((nh * r, nh * c), blocks[0].dtype)
    for i, b in enumerate(blocks):
        out = out.at[i * r:(i + 1) * r, i * c:(i + 1) * c].set(b)
    return out


def _fuse_gru_layer(w_in, w_hid, h):
    # w_in, w_hid: [h, 3h]  ->  [2h, 4h] with columns [r | z | n_in | n_hid]
    zero = jnp.zeros((h, h), w_in.dtype)
    top = jnp.concatenate([w_in[:, :2 * h], w_in[:, 2 * h:], zero], axis=1)
    bot = jnp.concatenate([w_hid[:, :2 * h], zero, w_hid[:, 2 * h:]], axis=1)
    return jnp.concatenate([top, bot], axis=0)


def _prepare_weights(p, *, h_dim, z_dim, n_layers, n_heads):
    nh, h, z = n_heads, h_dim, z_dim
    # posterior/prior first layers concatenated along output dim (head-major)
    wp1_cat = jnp.transpose(p['wp1'], (1, 0, 2)).reshape(2 * h, nh * h)
    bp1_cat = jnp.transpose(p['bp1'], (1, 0, 2)).reshape(1, nh * h)
    wq1_cat = jnp.transpose(p['wq1'], (1, 0, 2)).reshape(h, nh * h)
    bq1_cat = jnp.transpose(p['bq1'], (1, 0, 2)).reshape(1, nh * h)
    # second layers as block-diagonal
    wp2_bd = _block_diag([p['wp2'][i] for i in range(nh)])
    bp2_cat = jnp.transpose(p['bp2'], (1, 0, 2)).reshape(1, nh * z)
    wq2_bd = _block_diag([p['wq2'][i] for i in range(nh)])
    bq2_cat = jnp.transpose(p['bq2'], (1, 0, 2)).reshape(1, nh * z)
    # gamma_post repeated z times per head (elementwise weighting in-kernel)
    gvec_post = jnp.repeat(p['gpost'].reshape(nh), z).reshape(1, nh * z)

    # fused GRU weights (layer 0 input = phi_z half; phi_x half precomputed)
    w_gru = jnp.stack(
        [_fuse_gru_layer(p['w_ih'][0, h:2 * h, :], p['w_hh'][0], h)] +
        [_fuse_gru_layer(p['w_ih'][l, :h, :], p['w_hh'][l], h)
         for l in range(1, n_layers)])
    b_rows = [jnp.zeros((1, 4 * h), jnp.float32)]
    for l in range(1, n_layers):
        b_rows.append(jnp.concatenate(
            [p['b_ih'][l, :, :2 * h] + p['b_hh'][l, :, :2 * h],
             p['b_ih'][l, :, 2 * h:], p['b_hh'][l, :, 2 * h:]], axis=1))
    b_gru = jnp.stack(b_rows)

    return dict(
        wp1x=wp1_cat[:h], wp1h=wp1_cat[h:], bp1_cat=bp1_cat,
        wp2_bd=wp2_bd, bp2_cat=bp2_cat,
        wq1_cat=wq1_cat, bq1_cat=bq1_cat, wq2_bd=wq2_bd, bq2_cat=bq2_cat,
        gvec_post=gvec_post, w_gru=w_gru, b_gru=b_gru)


# ----------------------------- wrapper ----------------------------------------

@functools.partial(jax.jit, static_argnames=("act_dim", "h_dim", "z_dim",
                                              "n_layers", "n_heads"))
def mavap_forward(params, acts, durs, eps_post, eps_prior, *,
                  act_dim, h_dim, z_dim, n_layers, n_heads):
    p = params
    B, T, _ = acts.shape
    h, z, nh = h_dim, z_dim, n_heads
    w = _prepare_weights(p, h_dim=h_dim, z_dim=z_dim,
                         n_layers=n_layers, n_heads=n_heads)

    # ---- pad batch to a multiple of B_BLK (full sublane tiles) ----
    Bp = ((B + B_BLK - 1) // B_BLK) * B_BLK
    pad = Bp - B
    acts_f = acts.astype(jnp.float32)
    durs_f = durs.astype(jnp.float32)
    eps_tp = eps_post.astype(jnp.float32)
    if pad:
        acts_f = jnp.pad(acts_f, ((0, pad), (0, 0), (0, 0)))
        durs_f = jnp.pad(durs_f, ((0, pad), (0, 0), (0, 0)))
        eps_tp = jnp.pad(eps_tp, ((0, 0), (0, pad), (0, 0)))

    # ---- time-independent embeddings (batched XLA, default MXU precision) ----
    phi_act = _relu(jnp.dot(acts_f, p['w_act']) + p['b_act'])
    phi_dur = _relu(durs_f * p['w_dur'][0] + p['b_dur'])
    phi_x = _relu(jnp.dot(phi_act, p['w_x'][:h]) +
                  jnp.dot(phi_dur, p['w_x'][h:]) + p['b_x'])
    phi_x = jnp.transpose(phi_x, (1, 0, 2))                       # [T, Bp, h]

    # one fused einsum: posterior-L1 (x half) + GRU layer-0 input half
    W_pre = jnp.concatenate([w['wp1x'], p['w_ih'][0, :h, :]], axis=1)
    b_pre = jnp.concatenate([w['bp1_cat'], p['b_ih'][0]], axis=1)
    pre = jnp.einsum('tbh,hk->tbk', phi_x, W_pre) + b_pre
    px_post = pre[..., :nh * h]                                   # [T, Bp, nh*h]
    gi0_raw = pre[..., nh * h:]                                   # [T, Bp, 3h]
    b_hh0 = p['b_hh'][0]
    gi0_ext = jnp.concatenate(
        [gi0_raw[..., :2 * h] + b_hh0[:, :2 * h],
         gi0_raw[..., 2 * h:],
         jnp.broadcast_to(b_hh0[:, 2 * h:], (T, Bp, h))], axis=-1)  # [T, Bp, 4h]

    kernel = functools.partial(mavap_recurrence_kernel, h_dim=h, z_dim=z,
                               n_layers=n_layers, n_heads=n_heads)

    nb = Bp // B_BLK

    def bspec(feat):
        return pl.BlockSpec((T, B_BLK, feat), lambda b: (0, b, 0))

    def full(arr):
        return pl.BlockSpec(arr.shape, lambda b, _nd=arr.ndim: (0,) * _nd)

    in_specs = [
        bspec(nh * h),                 # px_post
        bspec(4 * h),                  # gi0_ext
        bspec(z),                      # eps
        full(w['wp1h']), full(w['wp2_bd']), full(w['bp2_cat']),
        full(w['gvec_post']), full(p['w_z']), full(p['b_z']),
        full(w['w_gru']), full(w['b_gru']),
    ]
    out_specs = (
        pl.BlockSpec((T, B_BLK, h + z), lambda b: (0, b, 0)),
        pl.BlockSpec((n_layers, B_BLK, h), lambda b: (0, b, 0)),
    )
    out_shape = (
        jax.ShapeDtypeStruct((T, Bp, h + z), jnp.float32),
        jax.ShapeDtypeStruct((n_layers, Bp, h), jnp.float32),
    )

    hz, hidden = pl.pallas_call(
        kernel,
        grid=(nb,),
        in_specs=in_specs,
        out_specs=out_specs,
        out_shape=out_shape,
        compiler_params=pltpu.CompilerParams(
            dimension_semantics=("parallel",),
            vmem_limit_bytes=32 * 1024 * 1024),
    )(px_post, gi0_ext, eps_tp,
      w['wp1h'], w['wp2_bd'], w['bp2_cat'], w['gvec_post'],
      p['w_z'], p['b_z'], w['w_gru'], w['b_gru'])

    hz = hz[:, :B]
    hidden = hidden[:, :B]

    # ---- hoisted finalization: posterior stats ----
    h_prev = hz[..., :h]               # hidden state entering each step
    wsum_post = hz[..., h:]
    post_mu = _relu(wsum_post)
    post_sigma = _softplus(wsum_post)

    # ---- hoisted prior heads for all T step-entry states + final state ----
    h_states = jnp.concatenate([h_prev, hidden[n_layers - 1][None]], axis=0)
    q1 = _relu(jnp.einsum('tbh,hk->tbk', h_states, w['wq1_cat']) + w['bq1_cat'])
    prior_all = _relu(jnp.einsum('tbk,kn->tbn', q1, w['wq2_bd']) + w['bq2_cat'])
    wsum_prior = jnp.einsum('tbiz,i->tbz',
                            prior_all.reshape(T + 1, B, nh, z),
                            p['gprior'].reshape(nh))
    prior_mu_all = _relu(wsum_prior)
    prior_sigma_all = _softplus(wsum_prior)

    # ---- final prior sample + decoder (once per call) ----
    h_last = hidden[n_layers - 1]
    z_f = eps_prior.astype(jnp.float32) * prior_sigma_all[T] + prior_mu_all[T]
    phi_zf = _relu(jnp.dot(z_f, p['w_z']) + p['b_z'])
    dec = _relu(jnp.dot(phi_zf, p['w_dec'][:h]) +
                jnp.dot(h_last, p['w_dec'][h:]) + p['b_dec'])
    pred_act = jnp.dot(dec, p['w_da']) + p['b_da']
    phi_pa = _relu(jnp.dot(pred_act, p['w_act']) + p['b_act'])
    dur_dec = (jnp.dot(phi_pa, p['w_dd'][:h]) +
               jnp.dot(dec, p['w_dd'][h:]) + p['b_dd'])

    return dict(pred_act=pred_act,
                pred_dur_mean=dur_dec, pred_dur_std=_softplus(dur_dec),
                post_mu=post_mu, post_sigma=post_sigma,
                prior_mu=prior_mu_all[:T], prior_sigma=prior_sigma_all[:T],
                final_hidden=hidden)


# ----------------------------- parameter init ---------------------------------

def init_params(key, act_dim, h_dim, z_dim, n_layers, n_heads):
    keys = iter(jax.random.split(key, 48))

    def w(shape, scale=0.1):
        return (scale * jax.random.normal(next(keys), shape)).astype(jnp.float32)

    return dict(
        w_act=w((act_dim, h_dim)), b_act=w((1, h_dim), 0.01),
        w_dur=w((1, h_dim)), b_dur=w((1, h_dim), 0.01),
        w_x=w((2 * h_dim, h_dim)), b_x=w((1, h_dim), 0.01),
        w_z=w((z_dim, h_dim)), b_z=w((1, h_dim), 0.01),
        wp1=w((n_heads, 2 * h_dim, h_dim)), bp1=w((n_heads, 1, h_dim), 0.01),
        wp2=w((n_heads, h_dim, z_dim)), bp2=w((n_heads, 1, z_dim), 0.01),
        wq1=w((n_heads, h_dim, h_dim)), bq1=w((n_heads, 1, h_dim), 0.01),
        wq2=w((n_heads, h_dim, z_dim)), bq2=w((n_heads, 1, z_dim), 0.01),
        gpost=jnp.ones((n_heads, 1, 1), jnp.float32),
        gprior=jnp.ones((n_heads, 1, 1), jnp.float32),
        # GRU: layer 0 input is 2h; layers > 0 use only the first h rows.
        w_ih=w((n_layers, 2 * h_dim, 3 * h_dim)),
        w_hh=w((n_layers, h_dim, 3 * h_dim)),
        b_ih=w((n_layers, 1, 3 * h_dim), 0.01),
        b_hh=w((n_layers, 1, 3 * h_dim), 0.01),
        w_dec=w((2 * h_dim, h_dim)), b_dec=w((1, h_dim), 0.01),
        w_da=w((h_dim, act_dim)), b_da=w((1, act_dim), 0.01),
        w_dd=w((2 * h_dim, 1)), b_dd=w((1, 1), 0.01),
    )


# ----------------------------- pure-JAX reference ------------------------------

def mavap_reference(p, acts, durs, eps_post, eps_prior, *,
                    h_dim, z_dim, n_layers, n_heads):
    hp = lax.Precision.HIGHEST
    relu, softplus, sigmoid = _relu, _softplus, _sigmoid
    B, T, _ = acts.shape
    hidden = jnp.zeros((n_layers, B, h_dim), jnp.float32)
    pm, ps, qm, qs = [], [], [], []
    for t in range(T):
        phi_act = relu(jnp.dot(acts[:, t], p['w_act'], precision=hp) + p['b_act'])
        phi_dur = relu(jnp.dot(durs[:, t], p['w_dur'], precision=hp) + p['b_dur'])
        phi_x = relu(jnp.dot(jnp.concatenate([phi_act, phi_dur], -1),
                             p['w_x'], precision=hp) + p['b_x'])
        h_last = hidden[-1]
        wsum_post = jnp.zeros((B, z_dim), jnp.float32)
        wsum_prior = jnp.zeros((B, z_dim), jnp.float32)
        for i in range(n_heads):
            p1 = relu(jnp.dot(jnp.concatenate([phi_x, h_last], -1),
                              p['wp1'][i], precision=hp) + p['bp1'][i])
            post_i = relu(jnp.dot(p1, p['wp2'][i], precision=hp) + p['bp2'][i])
            q1 = relu(jnp.dot(h_last, p['wq1'][i], precision=hp) + p['bq1'][i])
            prior_i = relu(jnp.dot(q1, p['wq2'][i], precision=hp) + p['bq2'][i])
            wsum_post = wsum_post + p['gpost'][i, 0, 0] * post_i
            wsum_prior = wsum_prior + p['gprior'][i, 0, 0] * prior_i
        post_mu = relu(wsum_post)
        post_sigma = softplus(wsum_post)
        pm.append(post_mu); ps.append(post_sigma)
        qm.append(relu(wsum_prior)); qs.append(softplus(wsum_prior))
        z_t = eps_post[t] * post_sigma + post_mu
        phi_z = relu(jnp.dot(z_t, p['w_z'], precision=hp) + p['b_z'])
        layer_in = jnp.concatenate([phi_x, phi_z], -1)
        new_h = []
        for l in range(n_layers):
            in_dim = 2 * h_dim if l == 0 else h_dim
            gi = jnp.dot(layer_in, p['w_ih'][l, :in_dim], precision=hp) + p['b_ih'][l]
            gh = jnp.dot(hidden[l], p['w_hh'][l], precision=hp) + p['b_hh'][l]
            r = sigmoid(gi[:, :h_dim] + gh[:, :h_dim])
            zg = sigmoid(gi[:, h_dim:2 * h_dim] + gh[:, h_dim:2 * h_dim])
            n = jnp.tanh(gi[:, 2 * h_dim:] + r * gh[:, 2 * h_dim:])
            h_new = (1.0 - zg) * n + zg * hidden[l]
            new_h.append(h_new)
            layer_in = h_new
        hidden = jnp.stack(new_h)

    h_last = hidden[-1]
    wsum = jnp.zeros((B, z_dim), jnp.float32)
    for i in range(n_heads):
        q1 = relu(jnp.dot(h_last, p['wq1'][i], precision=hp) + p['bq1'][i])
        prior_i = relu(jnp.dot(q1, p['wq2'][i], precision=hp) + p['bq2'][i])
        wsum = wsum + p['gprior'][i, 0, 0] * prior_i
    mu = relu(wsum)
    sig = softplus(wsum)
    z_t = eps_prior * sig + mu
    phi_z = relu(jnp.dot(z_t, p['w_z'], precision=hp) + p['b_z'])
    dec = relu(jnp.dot(jnp.concatenate([phi_z, h_last], -1),
                       p['w_dec'], precision=hp) + p['b_dec'])
    pred_act = jnp.dot(dec, p['w_da'], precision=hp) + p['b_da']
    phi_pa = relu(jnp.dot(pred_act, p['w_act'], precision=hp) + p['b_act'])
    dur_dec = jnp.dot(jnp.concatenate([phi_pa, dec], -1),
                      p['w_dd'], precision=hp) + p['b_dd']
    return dict(pred_act=pred_act,
                pred_dur_mean=dur_dec, pred_dur_std=softplus(dur_dec),
                post_mu=jnp.stack(pm), post_sigma=jnp.stack(ps),
                prior_mu=jnp.stack(qm), prior_sigma=jnp.stack(qs),
                final_hidden=hidden)


# ----------------------------- main --------------------------------------------

if __name__ == "__main__":
    act_dim, h_dim, z_dim, n_layers, n_heads = 8, 32, 16, 2, 3
    B, T = 8, 8   # B a multiple of 8 so matmuls use full sublane tiles

    key = jax.random.PRNGKey(0)
    kp, ka, kd, ke1, ke2 = jax.random.split(key, 5)

    params = init_params(kp, act_dim, h_dim, z_dim, n_layers, n_heads)
    acts = jax.nn.one_hot(jax.random.randint(ka, (B, T), 0, act_dim),
                          act_dim).astype(jnp.float32)          # [B, T, act_dim]
    durs = jax.random.uniform(kd, (B, T, 1), jnp.float32)       # [B, T, 1]
    eps_post = jax.random.normal(ke1, (T, B, z_dim), jnp.float32)
    eps_prior = jax.random.normal(ke2, (B, z_dim), jnp.float32)

    outs = mavap_forward(params, acts, durs, eps_post, eps_prior,
                         act_dim=act_dim, h_dim=h_dim, z_dim=z_dim,
                         n_layers=n_layers, n_heads=n_heads)
    jax.block_until_ready(outs)

    ref = mavap_reference(params, acts, durs, eps_post, eps_prior,
                          h_dim=h_dim, z_dim=z_dim,
                          n_layers=n_layers, n_heads=n_heads)

    for name in ["post_mu", "post_sigma", "prior_mu", "prior_sigma",
                 "final_hidden", "pred_act", "pred_dur_mean", "pred_dur_std"]:
        a, b = outs[name], ref[name]
        err = float(jnp.max(jnp.abs(a - b)))
        assert jnp.allclose(a, b, atol=5e-3, rtol=3e-2), f"{name} mismatch {err}"

    print("KERNEL_OK")
</pallas_src>

<mosaic_0001>
module attributes {stable_mosaic.version = 11 : i64} {
  func.func @mavap_recurrence_kernel(%arg0: i32, %arg1: memref<8x8x96xf32, #tpu.memory_space<vmem>>, %arg2: memref<8x8x128xf32, #tpu.memory_space<vmem>>, %arg3: memref<8x8x16xf32, #tpu.memory_space<vmem>>, %arg4: memref<32x96xf32, #tpu.memory_space<vmem>>, %arg5: memref<96x48xf32, #tpu.memory_space<vmem>>, %arg6: memref<1x48xf32, #tpu.memory_space<vmem>>, %arg7: memref<1x48xf32, #tpu.memory_space<vmem>>, %arg8: memref<16x32xf32, #tpu.memory_space<vmem>>, %arg9: memref<1x32xf32, #tpu.memory_space<vmem>>, %arg10: memref<2x64x128xf32, #tpu.memory_space<vmem>>, %arg11: memref<2x1x128xf32, #tpu.memory_space<vmem>>, %arg12: memref<8x8x48xf32, #tpu.memory_space<vmem>>, %arg13: memref<2x8x32xf32, #tpu.memory_space<vmem>>) attributes {dimension_semantics = [#tpu.dimension_semantics<parallel>], iteration_bounds = array<i64: 1>, scalar_prefetch = 0 : i64, scratch_operands = 0 : i64, tpu.core_type = #tpu.core_type<tc>, window_params = [{transform_indices = @transform_0, window_bounds = array<i64: 8, 8, 96>}, {transform_indices = @transform_1, window_bounds = array<i64: 8, 8, 128>}, {transform_indices = @transform_2, window_bounds = array<i64: 8, 8, 16>}, {pipeline_mode = #tpu.pipeline_mode<synchronous>, transform_indices = @transform_3, window_bounds = array<i64: 32, 96>}, {pipeline_mode = #tpu.pipeline_mode<synchronous>, transform_indices = @transform_4, window_bounds = array<i64: 96, 48>}, {pipeline_mode = #tpu.pipeline_mode<synchronous>, transform_indices = @transform_5, window_bounds = array<i64: 1, 48>}, {pipeline_mode = #tpu.pipeline_mode<synchronous>, transform_indices = @transform_6, window_bounds = array<i64: 1, 48>}, {pipeline_mode = #tpu.pipeline_mode<synchronous>, transform_indices = @transform_7, window_bounds = array<i64: 16, 32>}, {pipeline_mode = #tpu.pipeline_mode<synchronous>, transform_indices = @transform_8, window_bounds = array<i64: 1, 32>}, {pipeline_mode = #tpu.pipeline_mode<synchronous>, transform_indices = @transform_9, window_bounds = array<i64: 2, 64, 128>}, {pipeline_mode = #tpu.pipeline_mode<synchronous>, transform_indices = @transform_10, window_bounds = array<i64: 2, 1, 128>}, {transform_indices = @transform_11, window_bounds = array<i64: 8, 8, 48>}, {transform_indices = @transform_12, window_bounds = array<i64: 2, 8, 32>}]} {
    %c0 = arith.constant 0 : index
    %c0_0 = arith.constant 0 : index
    %0 = vector.load %arg4[%c0, %c0_0] : memref<32x96xf32, #tpu.memory_space<vmem>>, vector<32x96xf32>
    %c0_1 = arith.constant 0 : index
    %c0_2 = arith.constant 0 : index
    %1 = vector.load %arg5[%c0_1, %c0_2] : memref<96x48xf32, #tpu.memory_space<vmem>>, vector<96x48xf32>
    %c0_3 = arith.constant 0 : index
    %c0_4 = arith.constant 0 : index
    %2 = vector.load %arg6[%c0_3, %c0_4] : memref<1x48xf32, #tpu.memory_space<vmem>>, vector<1x48xf32>
    %c0_5 = arith.constant 0 : index
    %c0_6 = arith.constant 0 : index
    %3 = vector.load %arg7[%c0_5, %c0_6] : memref<1x48xf32, #tpu.memory_space<vmem>>, vector<1x48xf32>
    %c0_7 = arith.constant 0 : index
    %c0_8 = arith.constant 0 : index
    %4 = vector.load %arg8[%c0_7, %c0_8] : memref<16x32xf32, #tpu.memory_space<vmem>>, vector<16x32xf32>
    %c0_9 = arith.constant 0 : index
    %c0_10 = arith.constant 0 : index
    %5 = vector.load %arg9[%c0_9, %c0_10] : memref<1x32xf32, #tpu.memory_space<vmem>>, vector<1x32xf32>
    %c0_11 = arith.constant 0 : index
    %c0_12 = arith.constant 0 : index
    %c0_13 = arith.constant 0 : index
    %6 = vector.load %arg10[%c0_11, %c0_12, %c0_13] : memref<2x64x128xf32, #tpu.memory_space<vmem>>, vector<1x64x128xf32>
    %7 = vector.shape_cast %6 : vector<1x64x128xf32> to vector<64x128xf32>
    %c1 = arith.constant 1 : index
    %c0_14 = arith.constant 0 : index
    %c0_15 = arith.constant 0 : index
    %8 = vector.load %arg10[%c1, %c0_14, %c0_15] : memref<2x64x128xf32, #tpu.memory_space<vmem>>, vector<1x64x128xf32>
    %9 = vector.shape_cast %8 : vector<1x64x128xf32> to vector<64x128xf32>
    %c1_16 = arith.constant 1 : index
    %c0_17 = arith.constant 0 : index
    %c0_18 = arith.constant 0 : index
    %10 = vector.load %arg11[%c1_16, %c0_17, %c0_18] : memref<2x1x128xf32, #tpu.memory_space<vmem>>, vector<1x1x128xf32>
    %11 = vector.shape_cast %10 : vector<1x1x128xf32> to vector<1x128xf32>
    %cst = arith.constant 0.000000e+00 : f32
    %12 = vector.broadcast %cst : f32 to vector<8x32xf32>
    %cst_19 = arith.constant 0.000000e+00 : f32
    %13 = vector.broadcast %cst_19 : f32 to vector<8x32xf32>
    %c0_i32 = arith.constant 0 : i32
    %14 = arith.index_cast %c0_i32 : i32 to index
    %c0_20 = arith.constant 0 : index
    %c0_21 = arith.constant 0 : index
    %15 = vector.load %arg1[%14, %c0_20, %c0_21] : memref<8x8x96xf32, #tpu.memory_space<vmem>>, vector<1x8x96xf32>
    %16 = vector.shape_cast %15 : vector<1x8x96xf32> to vector<8x96xf32>
    %cst_22 = arith.constant dense<0.000000e+00> : vector<8x96xf32>
    %17 = tpu.matmul %13, %0, %cst_22 {dimension_numbers = #tpu.dot_dimension_numbers<[1], [0], [0], [1], [0, 0, 1, 1], [], []>} : vector<8x32xf32>, vector<32x96xf32>, vector<8x96xf32> -> vector<8x96xf32>
    %18 = arith.addf %16, %17 : vector<8x96xf32>
    %cst_23 = arith.constant 0.000000e+00 : f32
    %19 = vector.broadcast %cst_23 : f32 to vector<8x96xf32>
    %20 = arith.maximumf %18, %19 : vector<8x96xf32>
    %cst_24 = arith.constant dense<0.000000e+00> : vector<8x48xf32>
    %21 = tpu.matmul %20, %1, %cst_24 {dimension_numbers = #tpu.dot_dimension_numbers<[1], [0], [0], [1], [0, 0, 1, 1], [], []>} : vector<8x96xf32>, vector<96x48xf32>, vector<8x48xf32> -> vector<8x48xf32>
    %22 = vector.broadcast %2 : vector<1x48xf32> to vector<8x48xf32>
    %23 = arith.addf %21, %22 : vector<8x48xf32>
    %cst_25 = arith.constant 0.000000e+00 : f32
    %24 = vector.broadcast %cst_25 : f32 to vector<8x48xf32>
    %25 = arith.maximumf %23, %24 : vector<8x48xf32>
    %26 = vector.broadcast %3 : vector<1x48xf32> to vector<8x48xf32>
    %27 = arith.mulf %25, %26 : vector<8x48xf32>
    %28 = vector.extract_strided_slice %27 {offsets = [0, 0], sizes = [8, 16], strides = [1, 1]} : vector<8x48xf32> to vector<8x16xf32>
    %29 = vector.extract_strided_slice %27 {offsets = [0, 16], sizes = [8, 16], strides = [1, 1]} : vector<8x48xf32> to vector<8x16xf32>
    %30 = arith.addf %28, %29 : vector<8x16xf32>
    %31 = vector.extract_strided_slice %27 {offsets = [0, 32], sizes = [8, 16], strides = [1, 1]} : vector<8x48xf32> to vector<8x16xf32>
    %32 = arith.addf %30, %31 : vector<8x16xf32>
    %cst_26 = arith.constant 0.000000e+00 : f32
    %33 = vector.broadcast %cst_26 : f32 to vector<8x16xf32>
    %34 = arith.maximumf %32, %33 : vector<8x16xf32>
    %cst_27 = arith.constant 0.000000e+00 : f32
    %35 = vector.broadcast %cst_27 : f32 to vector<8x16xf32>
    %36 = arith.maximumf %32, %35 : vector<8x16xf32>
    %37 = math.absf %32 : vector<8x16xf32>
    %cst_28 = arith.constant 0.000000e+00 : f32
    %38 = vector.broadcast %cst_28 : f32 to vector<8x16xf32>
    %39 = arith.subf %38, %37 : vector<8x16xf32>
    %40 = math.exp %39 : vector<8x16xf32>
    %41 = math.log1p %40 : vector<8x16xf32>
    %42 = arith.addf %36, %41 : vector<8x16xf32>
    %43 = tpu.concatenate %13, %32 in 1 : vector<8x32xf32>, vector<8x16xf32> -> vector<8x48xf32>
    %44 = arith.index_cast %c0_i32 : i32 to index
    %c0_29 = arith.constant 0 : index
    %c0_30 = arith.constant 0 : index
    %45 = vector.load %arg12[%44, %c0_29, %c0_30] : memref<8x8x48xf32, #tpu.memory_space<vmem>>, vector<1x8x48xf32>
    %46 = vector.shape_cast %45 : vector<1x8x48xf32> to vector<8x48xf32>
    %47 = vector.shape_cast %43 : vector<8x48xf32> to vector<1x8x48xf32>
    tpu.vector_store %arg12[%44, %c0_29, %c0_30], %47 {strides = array<i32>} : memref<8x8x48xf32, #tpu.memory_space<vmem>>, vector<1x8x48xf32>,
    %48 = arith.index_cast %c0_i32 : i32 to index
    %c0_31 = arith.constant 0 : index
    %c0_32 = arith.constant 0 : index
    %49 = vector.load %arg3[%48, %c0_31, %c0_32] : memref<8x8x16xf32, #tpu.memory_space<vmem>>, vector<1x8x16xf32>
    %50 = vector.shape_cast %49 : vector<1x8x16xf32> to vector<8x16xf32>
    %51 = arith.mulf %50, %42 : vector<8x16xf32>
    %52 = arith.addf %51, %34 : vector<8x16xf32>
    %cst_33 = arith.constant dense<0.000000e+00> : vector<8x32xf32>
    %53 = tpu.matmul %52, %4, %cst_33 {dimension_numbers = #tpu.dot_dimension_numbers<[1], [0], [0], [1], [0, 0, 1, 1], [], []>} : vector<8x16xf32>, vector<16x32xf32>, vector<8x32xf32> -> vector<8x32xf32>
    %54 = vector.broadcast %5 : vector<1x32xf32> to vector<8x32xf32>
    %55 = arith.addf %53, %54 : vector<8x32xf32>
    %cst_34 = arith.constant 0.000000e+00 : f32
    %56 = vector.broadcast %cst_34 : f32 to vector<8x32xf32>
    %57 = arith.maximumf %55, %56 : vector<8x32xf32>
    %58 = arith.index_cast %c0_i32 : i32 to index
    %c0_35 = arith.constant 0 : index
    %c0_36 = arith.constant 0 : index
    %59 = vector.load %arg2[%58, %c0_35, %c0_36] : memref<8x8x128xf32, #tpu.memory_space<vmem>>, vector<1x8x128xf32>
    %60 = vector.shape_cast %59 : vector<1x8x128xf32> to vector<8x128xf32>
    %61 = tpu.concatenate %57, %12 in 1 : vector<8x32xf32>, vector<8x32xf32> -> vector<8x64xf32>
    %cst_37 = arith.constant dense<0.000000e+00> : vector<8x128xf32>
    %62 = tpu.matmul %61, %7, %cst_37 {dimension_numbers = #tpu.dot_dimension_numbers<[1], [0], [0], [1], [0, 0, 1, 1], [], []>} : vector<8x64xf32>, vector<64x128xf32>, vector<8x128xf32> -> vector<8x128xf32>
    %63 = arith.addf %62, %60 : vector<8x128xf32>
    %64 = vector.extract_strided_slice %63 {offsets = [0, 0], sizes = [8, 32], strides = [1, 1]} : vector<8x128xf32> to vector<8x32xf32>
    %65 = arith.negf %64 : vector<8x32xf32>
    %66 = math.exp %65 : vector<8x32xf32>
    %cst_38 = arith.constant 1.000000e+00 : f32
    %67 = vector.broadcast %cst_38 : f32 to vector<8x32xf32>
    %68 = arith.addf %67, %66 : vector<8x32xf32>
    %69 = arith.divf %67, %68 : vector<8x32xf32>
    %70 = vector.extract_strided_slice %63 {offsets = [0, 32], sizes = [8, 32], strides = [1, 1]} : vector<8x128xf32> to vector<8x32xf32>
    %71 = arith.negf %70 : vector<8x32xf32>
    %72 = math.exp %71 : vector<8x32xf32>
    %cst_39 = arith.constant 1.000000e+00 : f32
    %73 = vector.broadcast %cst_39 : f32 to vector<8x32xf32>
    %74 = arith.addf %73, %72 : vector<8x32xf32>
    %75 = arith.divf %73, %74 : vector<8x32xf32>
    %76 = vector.extract_strided_slice %63 {offsets = [0, 64], sizes = [8, 32], strides = [1, 1]} : vector<8x128xf32> to vector<8x32xf32>
    %77 = vector.extract_strided_slice %63 {offsets = [0, 96], sizes = [8, 32], strides = [1, 1]} : vector<8x128xf32> to vector<8x32xf32>
    %78 = arith.mulf %69, %77 : vector<8x32xf32>
    %79 = arith.addf %76, %78 : vector<8x32xf32>
    %80 = math.tanh %79 : vector<8x32xf32>
    %cst_40 = arith.constant 1.000000e+00 : f32
    %81 = vector.broadcast %cst_40 : f32 to vector<8x32xf32>
    %82 = arith.subf %81, %75 : vector<8x32xf32>
    %83 = arith.mulf %82, %80 : vector<8x32xf32>
    %84 = arith.mulf %75, %12 : vector<8x32xf32>
    %85 = arith.addf %83, %84 : vector<8x32xf32>
    %86 = tpu.concatenate %85, %13 in 1 : vector<8x32xf32>, vector<8x32xf32> -> vector<8x64xf32>
    %cst_41 = arith.constant dense<0.000000e+00> : vector<8x128xf32>
    %87 = tpu.matmul %86, %9, %cst_41 {dimension_numbers = #tpu.dot_dimension_numbers<[1], [0], [0], [1], [0, 0, 1, 1], [], []>} : vector<8x64xf32>, vector<64x128xf32>, vector<8x128xf32> -> vector<8x128xf32>
    %88 = vector.broadcast %11 : vector<1x128xf32> to vector<8x128xf32>
    %89 = arith.addf %87, %88 : vector<8x128xf32>
    %90 = vector.extract_strided_slice %89 {offsets = [0, 0], sizes = [8, 32], strides = [1, 1]} : vector<8x128xf32> to vector<8x32xf32>
    %91 = arith.negf %90 : vector<8x32xf32>
    %92 = math.exp %91 : vector<8x32xf32>
    %cst_42 = arith.constant 1.000000e+00 : f32
    %93 = vector.broadcast %cst_42 : f32 to vector<8x32xf32>
    %94 = arith.addf %93, %92 : vector<8x32xf32>
    %95 = arith.divf %93, %94 : vector<8x32xf32>
    %96 = vector.extract_strided_slice %89 {offsets = [0, 32], sizes = [8, 32], strides = [1, 1]} : vector<8x128xf32> to vector<8x32xf32>
    %97 = arith.negf %96 : vector<8x32xf32>
    %98 = math.exp %97 : vector<8x32xf32>
    %cst_43 = arith.constant 1.000000e+00 : f32
    %99 = vector.broadcast %cst_43 : f32 to vector<8x32xf32>
    %100 = arith.addf %99, %98 : vector<8x32xf32>
    %101 = arith.divf %99, %100 : vector<8x32xf32>
    %102 = vector.extract_strided_slice %89 {offsets = [0, 64], sizes = [8, 32], strides = [1, 1]} : vector<8x128xf32> to vector<8x32xf32>
    %103 = vector.extract_strided_slice %89 {offsets = [0, 96], sizes = [8, 32], strides = [1, 1]} : vector<8x128xf32> to vector<8x32xf32>
    %104 = arith.mulf %95, %103 : vector<8x32xf32>
    %105 = arith.addf %102, %104 : vector<8x32xf32>
    %106 = math.tanh %105 : vector<8x32xf32>
    %cst_44 = arith.constant 1.000000e+00 : f32
    %107 = vector.broadcast %cst_44 : f32 to vector<8x32xf32>
    %108 = arith.subf %107, %101 : vector<8x32xf32>
    %109 = arith.mulf %108, %106 : vector<8x32xf32>
    %110 = arith.mulf %101, %13 : vector<8x32xf32>
    %111 = arith.addf %109, %110 : vector<8x32xf32>
    %c1_i32 = arith.constant 1 : i32
    %112 = arith.index_cast %c1_i32 : i32 to index
    %c0_45 = arith.constant 0 : index
    %c0_46 = arith.constant 0 : index
    %113 = vector.load %arg1[%112, %c0_45, %c0_46] : memref<8x8x96xf32, #tpu.memory_space<vmem>>, vector<1x8x96xf32>
    %114 = vector.shape_cast %113 : vector<1x8x96xf32> to vector<8x96xf32>
    %cst_47 = arith.constant dense<0.000000e+00> : vector<8x96xf32>
    %115 = tpu.matmul %111, %0, %cst_47 {dimension_numbers = #tpu.dot_dimension_numbers<[1], [0], [0], [1], [0, 0, 1, 1], [], []>} : vector<8x32xf32>, vector<32x96xf32>, vector<8x96xf32> -> vector<8x96xf32>
    %116 = arith.addf %114, %115 : vector<8x96xf32>
    %cst_48 = arith.constant 0.000000e+00 : f32
    %117 = vector.broadcast %cst_48 : f32 to vector<8x96xf32>
    %118 = arith.maximumf %116, %117 : vector<8x96xf32>
    %cst_49 = arith.constant dense<0.000000e+00> : vector<8x48xf32>
    %119 = tpu.matmul %118, %1, %cst_49 {dimension_numbers = #tpu.dot_dimension_numbers<[1], [0], [0], [1], [0, 0, 1, 1], [], []>} : vector<8x96xf32>, vector<96x48xf32>, vector<8x48xf32> -> vector<8x48xf32>
    %120 = vector.broadcast %2 : vector<1x48xf32> to vector<8x48xf32>
    %121 = arith.addf %119, %120 : vector<8x48xf32>
    %cst_50 = arith.constant 0.000000e+00 : f32
    %122 = vector.broadcast %cst_50 : f32 to vector<8x48xf32>
    %123 = arith.maximumf %121, %122 : vector<8x48xf32>
    %124 = vector.broadcast %3 : vector<1x48xf32> to vector<8x48xf32>
    %125 = arith.mulf %123, %124 : vector<8x48xf32>
    %126 = vector.extract_strided_slice %125 {offsets = [0, 0], sizes = [8, 16], strides = [1, 1]} : vector<8x48xf32> to vector<8x16xf32>
    %127 = vector.extract_strided_slice %125 {offsets = [0, 16], sizes = [8, 16], strides = [1, 1]} : vector<8x48xf32> to vector<8x16xf32>
    %128 = arith.addf %126, %127 : vector<8x16xf32>
    %129 = vector.extract_strided_slice %125 {offsets = [0, 32], sizes = [8, 16], strides = [1, 1]} : vector<8x48xf32> to vector<8x16xf32>
    %130 = arith.addf %128, %129 : vector<8x16xf32>
    %cst_51 = arith.constant 0.000000e+00 : f32
    %131 = vector.broadcast %cst_51 : f32 to vector<8x16xf32>
    %132 = arith.maximumf %130, %131 : vector<8x16xf32>
    %cst_52 = arith.constant 0.000000e+00 : f32
    %133 = vector.broadcast %cst_52 : f32 to vector<8x16xf32>
    %134 = arith.maximumf %130, %133 : vector<8x16xf32>
    %135 = math.absf %130 : vector<8x16xf32>
    %cst_53 = arith.constant 0.000000e+00 : f32
    %136 = vector.broadcast %cst_53 : f32 to vector<8x16xf32>
    %137 = arith.subf %136, %135 : vector<8x16xf32>
    %138 = math.exp %137 : vector<8x16xf32>
    %139 = math.log1p %138 : vector<8x16xf32>
    %140 = arith.addf %134, %139 : vector<8x16xf32>
    %141 = tpu.concatenate %111, %130 in 1 : vector<8x32xf32>, vector<8x16xf32> -> vector<8x48xf32>
    %142 = arith.index_cast %c1_i32 : i32 to index
    %c0_54 = arith.constant 0 : index
    %c0_55 = arith.constant 0 : index
    %143 = vector.load %arg12[%142, %c0_54, %c0_55] : memref<8x8x48xf32, #tpu.memory_space<vmem>>, vector<1x8x48xf32>
    %144 = vector.shape_cast %143 : vector<1x8x48xf32> to vector<8x48xf32>
    %145 = vector.shape_cast %141 : vector<8x48xf32> to vector<1x8x48xf32>
    tpu.vector_store %arg12[%142, %c0_54, %c0_55], %145 {strides = array<i32>} : memref<8x8x48xf32, #tpu.memory_space<vmem>>, vector<1x8x48xf32>,
    %146 = arith.index_cast %c1_i32 : i32 to index
    %c0_56 = arith.constant 0 : index
    %c0_57 = arith.constant 0 : index
    %147 = vector.load %arg3[%146, %c0_56, %c0_57] : memref<8x8x16xf32, #tpu.memory_space<vmem>>, vector<1x8x16xf32>
    %148 = vector.shape_cast %147 : vector<1x8x16xf32> to vector<8x16xf32>
    %149 = arith.mulf %148, %140 : vector<8x16xf32>
    %150 = arith.addf %149, %132 : vector<8x16xf32>
    %cst_58 = arith.constant dense<0.000000e+00> : vector<8x32xf32>
    %151 = tpu.matmul %150, %4, %cst_58 {dimension_numbers = #tpu.dot_dimension_numbers<[1], [0], [0], [1], [0, 0, 1, 1], [], []>} : vector<8x16xf32>, vector<16x32xf32>, vector<8x32xf32> -> vector<8x32xf32>
    %152 = vector.broadcast %5 : vector<1x32xf32> to vector<8x32xf32>
    %153 = arith.addf %151, %152 : vector<8x32xf32>
    %cst_59 = arith.constant 0.000000e+00 : f32
    %154 = vector.broadcast %cst_59 : f32 to vector<8x32xf32>
    %155 = arith.maximumf %153, %154 : vector<8x32xf32>
    %156 = arith.index_cast %c1_i32 : i32 to index
    %c0_60 = arith.constant 0 : index
    %c0_61 = arith.constant 0 : index
    %157 = vector.load %arg2[%156, %c0_60, %c0_61] : memref<8x8x128xf32, #tpu.memory_space<vmem>>, vector<1x8x128xf32>
    %158 = vector.shape_cast %157 : vector<1x8x128xf32> to vector<8x128xf32>
    %159 = tpu.concatenate %155, %85 in 1 : vector<8x32xf32>, vector<8x32xf32> -> vector<8x64xf32>
    %cst_62 = arith.constant dense<0.000000e+00> : vector<8x128xf32>
    %160 = tpu.matmul %159, %7, %cst_62 {dimension_numbers = #tpu.dot_dimension_numbers<[1], [0], [0], [1], [0, 0, 1, 1], [], []>} : vector<8x64xf32>, vector<64x128xf32>, vector<8x128xf32> -> vector<8x128xf32>
    %161 = arith.addf %160, %158 : vector<8x128xf32>
    %162 = vector.extract_strided_slice %161 {offsets = [0, 0], sizes = [8, 32], strides = [1, 1]} : vector<8x128xf32> to vector<8x32xf32>
    %163 = arith.negf %162 : vector<8x32xf32>
    %164 = math.exp %163 : vector<8x32xf32>
    %cst_63 = arith.constant 1.000000e+00 : f32
    %165 = vector.broadcast %cst_63 : f32 to vector<8x32xf32>
    %166 = arith.addf %165, %164 : vector<8x32xf32>
    %167 = arith.divf %165, %166 : vector<8x32xf32>
    %168 = vector.extract_strided_slice %161 {offsets = [0, 32], sizes = [8, 32], strides = [1, 1]} : vector<8x128xf32> to vector<8x32xf32>
    %169 = arith.negf %168 : vector<8x32xf32>
    %170 = math.exp %169 : vector<8x32xf32>
    %cst_64 = arith.constant 1.000000e+00 : f32
    %171 = vector.broadcast %cst_64 : f32 to vector<8x32xf32>
    %172 = arith.addf %171, %170 : vector<8x32xf32>
    %173 = arith.divf %171, %172 : vector<8x32xf32>
    %174 = vector.extract_strided_slice %161 {offsets = [0, 64], sizes = [8, 32], strides = [1, 1]} : vector<8x128xf32> to vector<8x32xf32>
    %175 = vector.extract_strided_slice %161 {offsets = [0, 96], sizes = [8, 32], strides = [1, 1]} : vector<8x128xf32> to vector<8x32xf32>
    %176 = arith.mulf %167, %175 : vector<8x32xf32>
    %177 = arith.addf %174, %176 : vector<8x32xf32>
    %178 = math.tanh %177 : vector<8x32xf32>
    %cst_65 = arith.constant 1.000000e+00 : f32
    %179 = vector.broadcast %cst_65 : f32 to vector<8x32xf32>
    %180 = arith.subf %179, %173 : vector<8x32xf32>
    %181 = arith.mulf %180, %178 : vector<8x32xf32>
    %182 = arith.mulf %173, %85 : vector<8x32xf32>
    %183 = arith.addf %181, %182 : vector<8x32xf32>
    %184 = tpu.concatenate %183, %111 in 1 : vector<8x32xf32>, vector<8x32xf32> -> vector<8x64xf32>
    %cst_66 = arith.constant dense<0.000000e+00> : vector<8x128xf32>
    %185 = tpu.matmul %184, %9, %cst_66 {dimension_numbers = #tpu.dot_dimension_numbers<[1], [0], [0], [1], [0, 0, 1, 1], [], []>} : vector<8x64xf32>, vector<64x128xf32>, vector<8x128xf32> -> vector<8x128xf32>
    %186 = vector.broadcast %11 : vector<1x128xf32> to vector<8x128xf32>
    %187 = arith.addf %185, %186 : vector<8x128xf32>
    %188 = vector.extract_strided_slice %187 {offsets = [0, 0], sizes = [8, 32], strides = [1, 1]} : vector<8x128xf32> to vector<8x32xf32>
    %189 = arith.negf %188 : vector<8x32xf32>
    %190 = math.exp %189 : vector<8x32xf32>
    %cst_67 = arith.constant 1.000000e+00 : f32
    %191 = vector.broadcast %cst_67 : f32 to vector<8x32xf32>
    %192 = arith.addf %191, %190 : vector<8x32xf32>
    %193 = arith.divf %191, %192 : vector<8x32xf32>
    %194 = vector.extract_strided_slice %187 {offsets = [0, 32], sizes = [8, 32], strides = [1, 1]} : vector<8x128xf32> to vector<8x32xf32>
    %195 = arith.negf %194 : vector<8x32xf32>
    %196 = math.exp %195 : vector<8x32xf32>
    %cst_68 = arith.constant 1.000000e+00 : f32
    %197 = vector.broadcast %cst_68 : f32 to vector<8x32xf32>
    %198 = arith.addf %197, %196 : vector<8x32xf32>
    %199 = arith.divf %197, %198 : vector<8x32xf32>
    %200 = vector.extract_strided_slice %187 {offsets = [0, 64], sizes = [8, 32], strides = [1, 1]} : vector<8x128xf32> to vector<8x32xf32>
    %201 = vector.extract_strided_slice %187 {offsets = [0, 96], sizes = [8, 32], strides = [1, 1]} : vector<8x128xf32> to vector<8x32xf32>
    %202 = arith.mulf %193, %201 : vector<8x32xf32>
    %203 = arith.addf %200, %202 : vector<8x32xf32>
    %204 = math.tanh %203 : vector<8x32xf32>
    %cst_69 = arith.constant 1.000000e+00 : f32
    %205 = vector.broadcast %cst_69 : f32 to vector<8x32xf32>
    %206 = arith.subf %205, %199 : vector<8x32xf32>
    %207 = arith.mulf %206, %204 : vector<8x32xf32>
    %208 = arith.mulf %199, %111 : vector<8x32xf32>
    %209 = arith.addf %207, %208 : vector<8x32xf32>
    %c2_i32 = arith.constant 2 : i32
    %210 = arith.index_cast %c2_i32 : i32 to index
    %c0_70 = arith.constant 0 : index
    %c0_71 = arith.constant 0 : index
    %211 = vector.load %arg1[%210, %c0_70, %c0_71] : memref<8x8x96xf32, #tpu.memory_space<vmem>>, vector<1x8x96xf32>
    %212 = vector.shape_cast %211 : vector<1x8x96xf32> to vector<8x96xf32>
    %cst_72 = arith.constant dense<0.000000e+00> : vector<8x96xf32>
    %213 = tpu.matmul %209, %0, %cst_72 {dimension_numbers = #tpu.dot_dimension_numbers<[1], [0], [0], [1], [0, 0, 1, 1], [], []>} : vector<8x32xf32>, vector<32x96xf32>, vector<8x96xf32> -> vector<8x96xf32>
    %214 = arith.addf %212, %213 : vector<8x96xf32>
    %cst_73 = arith.constant 0.000000e+00 : f32
    %215 = vector.broadcast %cst_73 : f32 to vector<8x96xf32>
    %216 = arith.maximumf %214, %215 : vector<8x96xf32>
    %cst_74 = arith.constant dense<0.000000e+00> : vector<8x48xf32>
    %217 = tpu.matmul %216, %1, %cst_74 {dimension_numbers = #tpu.dot_dimension_numbers<[1], [0], [0], [1], [0, 0, 1, 1], [], []>} : vector<8x96xf32>, vector<96x48xf32>, vector<8x48xf32> -> vector<8x48xf32>
    %218 = vector.broadcast %2 : vector<1x48xf32> to vector<8x48xf32>
    %219 = arith.addf %217, %218 : vector<8x48xf32>
    %cst_75 = arith.constant 0.000000e+00 : f32
    %220 = vector.broadcast %cst_75 : f32 to vector<8x48xf32>
    %221 = arith.maximumf %219, %220 : vector<8x48xf32>
    %222 = vector.broadcast %3 : vector<1x48xf32> to vector<8x48xf32>
    %223 = arith.mulf %221, %222 : vector<8x48xf32>
    %224 = vector.extract_strided_slice %223 {offsets = [0, 0], sizes = [8, 16], strides = [1, 1]} : vector<8x48xf32> to vector<8x16xf32>
    %225 = vector.extract_strided_slice %223 {offsets = [0, 16], sizes = [8, 16], strides = [1, 1]} : vector<8x48xf32> to vector<8x16xf32>
    %226 = arith.addf %224, %225 : vector<8x16xf32>
    %227 = vector.extract_strided_slice %223 {offsets = [0, 32], sizes = [8, 16], strides = [1, 1]} : vector<8x48xf32> to vector<8x16xf32>
    %228 = arith.addf %226, %227 : vector<8x16xf32>
    %cst_76 = arith.constant 0.000000e+00 : f32
    %229 = vector.broadcast %cst_76 : f32 to vector<8x16xf32>
    %230 = arith.maximumf %228, %229 : vector<8x16xf32>
    %cst_77 = arith.constant 0.000000e+00 : f32
    %231 = vector.broadcast %cst_77 : f32 to vector<8x16xf32>
    %232 = arith.maximumf %228, %231 : vector<8x16xf32>
    %233 = math.absf %228 : vector<8x16xf32>
    %cst_78 = arith.constant 0.000000e+00 : f32
    %234 = vector.broadcast %cst_78 : f32 to vector<8x16xf32>
    %235 = arith.subf %234, %233 : vector<8x16xf32>
    %236 = math.exp %235 : vector<8x16xf32>
    %237 = math.log1p %236 : vector<8x16xf32>
    %238 = arith.addf %232, %237 : vector<8x16xf32>
    %239 = tpu.concatenate %209, %228 in 1 : vector<8x32xf32>, vector<8x16xf32> -> vector<8x48xf32>
    %240 = arith.index_cast %c2_i32 : i32 to index
    %c0_79 = arith.constant 0 : index
    %c0_80 = arith.constant 0 : index
    %241 = vector.load %arg12[%240, %c0_79, %c0_80] : memref<8x8x48xf32, #tpu.memory_space<vmem>>, vector<1x8x48xf32>
    %242 = vector.shape_cast %241 : vector<1x8x48xf32> to vector<8x48xf32>
    %243 = vector.shape_cast %239 : vector<8x48xf32> to vector<1x8x48xf32>
    tpu.vector_store %arg12[%240, %c0_79, %c0_80], %243 {strides = array<i32>} : memref<8x8x48xf32, #tpu.memory_space<vmem>>, vector<1x8x48xf32>,
    %244 = arith.index_cast %c2_i32 : i32 to index
    %c0_81 = arith.constant 0 : index
    %c0_82 = arith.constant 0 : index
    %245 = vector.load %arg3[%244, %c0_81, %c0_82] : memref<8x8x16xf32, #tpu.memory_space<vmem>>, vector<1x8x16xf32>
    %246 = vector.shape_cast %245 : vector<1x8x16xf32> to vector<8x16xf32>
    %247 = arith.mulf %246, %238 : vector<8x16xf32>
    %248 = arith.addf %247, %230 : vector<8x16xf32>
    %cst_83 = arith.constant dense<0.000000e+00> : vector<8x32xf32>
    %249 = tpu.matmul %248, %4, %cst_83 {dimension_numbers = #tpu.dot_dimension_numbers<[1], [0], [0], [1], [0, 0, 1, 1], [], []>} : vector<8x16xf32>, vector<16x32xf32>, vector<8x32xf32> -> vector<8x32xf32>
    %250 = vector.broadcast %5 : vector<1x32xf32> to vector<8x32xf32>
    %251 = arith.addf %249, %250 : vector<8x32xf32>
    %cst_84 = arith.constant 0.000000e+00 : f32
    %252 = vector.broadcast %cst_84 : f32 to vector<8x32xf32>
    %253 = arith.maximumf %251, %252 : vector<8x32xf32>
    %254 = arith.index_cast %c2_i32 : i32 to index
    %c0_85 = arith.constant 0 : index
    %c0_86 = arith.constant 0 : index
    %255 = vector.load %arg2[%254, %c0_85, %c0_86] : memref<8x8x128xf32, #tpu.memory_space<vmem>>, vector<1x8x128xf32>
    %256 = vector.shape_cast %255 : vector<1x8x128xf32> to vector<8x128xf32>
    %257 = tpu.concatenate %253, %183 in 1 : vector<8x32xf32>, vector<8x32xf32> -> vector<8x64xf32>
    %cst_87 = arith.constant dense<0.000000e+00> : vector<8x128xf32>
    %258 = tpu.matmul %257, %7, %cst_87 {dimension_numbers = #tpu.dot_dimension_numbers<[1], [0], [0], [1], [0, 0, 1, 1], [], []>} : vector<8x64xf32>, vector<64x128xf32>, vector<8x128xf32> -> vector<8x128xf32>
    %259 = arith.addf %258, %256 : vector<8x128xf32>
    %260 = vector.extract_strided_slice %259 {offsets = [0, 0], sizes = [8, 32], strides = [1, 1]} : vector<8x128xf32> to vector<8x32xf32>
    %261 = arith.negf %260 : vector<8x32xf32>
    %262 = math.exp %261 : vector<8x32xf32>
    %cst_88 = arith.constant 1.000000e+00 : f32
    %263 = vector.broadcast %cst_88 : f32 to vector<8x32xf32>
    %264 = arith.addf %263, %262 : vector<8x32xf32>
    %265 = arith.divf %263, %264 : vector<8x32xf32>
    %266 = vector.extract_strided_slice %259 {offsets = [0, 32], sizes = [8, 32], strides = [1, 1]} : vector<8x128xf32> to vector<8x32xf32>
    %267 = arith.negf %266 : vector<8x32xf32>
    %268 = math.exp %267 : vector<8x32xf32>
    %cst_89 = arith.constant 1.000000e+00 : f32
    %269 = vector.broadcast %cst_89 : f32 to vector<8x32xf32>
    %270 = arith.addf %269, %268 : vector<8x32xf32>
    %271 = arith.divf %269, %270 : vector<8x32xf32>
    %272 = vector.extract_strided_slice %259 {offsets = [0, 64], sizes = [8, 32], strides = [1, 1]} : vector<8x128xf32> to vector<8x32xf32>
    %273 = vector.extract_strided_slice %259 {offsets = [0, 96], sizes = [8, 32], strides = [1, 1]} : vector<8x128xf32> to vector<8x32xf32>
    %274 = arith.mulf %265, %273 : vector<8x32xf32>
    %275 = arith.addf %272, %274 : vector<8x32xf32>
    %276 = math.tanh %275 : vector<8x32xf32>
    %cst_90 = arith.constant 1.000000e+00 : f32
    %277 = vector.broadcast %cst_90 : f32 to vector<8x32xf32>
    %278 = arith.subf %277, %271 : vector<8x32xf32>
    %279 = arith.mulf %278, %276 : vector<8x32xf32>
    %280 = arith.mulf %271, %183 : vector<8x32xf32>
    %281 = arith.addf %279, %280 : vector<8x32xf32>
    %282 = tpu.concatenate %281, %209 in 1 : vector<8x32xf32>, vector<8x32xf32> -> vector<8x64xf32>
    %cst_91 = arith.constant dense<0.000000e+00> : vector<8x128xf32>
    %283 = tpu.matmul %282, %9, %cst_91 {dimension_numbers = #tpu.dot_dimension_numbers<[1], [0], [0], [1], [0, 0, 1, 1], [], []>} : vector<8x64xf32>, vector<64x128xf32>, vector<8x128xf32> -> vector<8x128xf32>
    %284 = vector.broadcast %11 : vector<1x128xf32> to vector<8x128xf32>
    %285 = arith.addf %283, %284 : vector<8x128xf32>
    %286 = vector.extract_strided_slice %285 {offsets = [0, 0], sizes = [8, 32], strides = [1, 1]} : vector<8x128xf32> to vector<8x32xf32>
    %287 = arith.negf %286 : vector<8x32xf32>
    %288 = math.exp %287 : vector<8x32xf32>
    %cst_92 = arith.constant 1.000000e+00 : f32
    %289 = vector.broadcast %cst_92 : f32 to vector<8x32xf32>
    %290 = arith.addf %289, %288 : vector<8x32xf32>
    %291 = arith.divf %289, %290 : vector<8x32xf32>
    %292 = vector.extract_strided_slice %285 {offsets = [0, 32], sizes = [8, 32], strides = [1, 1]} : vector<8x128xf32> to vector<8x32xf32>
    %293 = arith.negf %292 : vector<8x32xf32>
    %294 = math.exp %293 : vector<8x32xf32>
    %cst_93 = arith.constant 1.000000e+00 : f32
    %295 = vector.broadcast %cst_93 : f32 to vector<8x32xf32>
    %296 = arith.addf %295, %294 : vector<8x32xf32>
    %297 = arith.divf %295, %296 : vector<8x32xf32>
    %298 = vector.extract_strided_slice %285 {offsets = [0, 64], sizes = [8, 32], strides = [1, 1]} : vector<8x128xf32> to vector<8x32xf32>
    %299 = vector.extract_strided_slice %285 {offsets = [0, 96], sizes = [8, 32], strides = [1, 1]} : vector<8x128xf32> to vector<8x32xf32>
    %300 = arith.mulf %291, %299 : vector<8x32xf32>
    %301 = arith.addf %298, %300 : vector<8x32xf32>
    %302 = math.tanh %301 : vector<8x32xf32>
    %cst_94 = arith.constant 1.000000e+00 : f32
    %303 = vector.broadcast %cst_94 : f32 to vector<8x32xf32>
    %304 = arith.subf %303, %297 : vector<8x32xf32>
    %305 = arith.mulf %304, %302 : vector<8x32xf32>
    %306 = arith.mulf %297, %209 : vector<8x32xf32>
    %307 = arith.addf %305, %306 : vector<8x32xf32>
    %c3_i32 = arith.constant 3 : i32
    %308 = arith.index_cast %c3_i32 : i32 to index
    %c0_95 = arith.constant 0 : index
    %c0_96 = arith.constant 0 : index
    %309 = vector.load %arg1[%308, %c0_95, %c0_96] : memref<8x8x96xf32, #tpu.memory_space<vmem>>, vector<1x8x96xf32>
    %310 = vector.shape_cast %309 : vector<1x8x96xf32> to vector<8x96xf32>
    %cst_97 = arith.constant dense<0.000000e+00> : vector<8x96xf32>
    %311 = tpu.matmul %307, %0, %cst_97 {dimension_numbers = #tpu.dot_dimension_numbers<[1], [0], [0], [1], [0, 0, 1, 1], [], []>} : vector<8x32xf32>, vector<32x96xf32>, vector<8x96xf32> -> vector<8x96xf32>
    %312 = arith.addf %310, %311 : vector<8x96xf32>
    %cst_98 = arith.constant 0.000000e+00 : f32
    %313 = vector.broadcast %cst_98 : f32 to vector<8x96xf32>
    %314 = arith.maximumf %312, %313 : vector<8x96xf32>
    %cst_99 = arith.constant dense<0.000000e+00> : vector<8x48xf32>
    %315 = tpu.matmul %314, %1, %cst_99 {dimension_numbers = #tpu.dot_dimension_numbers<[1], [0], [0], [1], [0, 0, 1, 1], [], []>} : vector<8x96xf32>, vector<96x48xf32>, vector<8x48xf32> -> vector<8x48xf32>
    %316 = vector.broadcast %2 : vector<1x48xf32> to vector<8x48xf32>
    %317 = arith.addf %315, %316 : vector<8x48xf32>
    %cst_100 = arith.constant 0.000000e+00 : f32
    %318 = vector.broadcast %cst_100 : f32 to vector<8x48xf32>
    %319 = arith.maximumf %317, %318 : vector<8x48xf32>
    %320 = vector.broadcast %3 : vector<1x48xf32> to vector<8x48xf32>
    %321 = arith.mulf %319, %320 : vector<8x48xf32>
    %322 = vector.extract_strided_slice %321 {offsets = [0, 0], sizes = [8, 16], strides = [1, 1]} : vector<8x48xf32> to vector<8x16xf32>
    %323 = vector.extract_strided_slice %321 {offsets = [0, 16], sizes = [8, 16], strides = [1, 1]} : vector<8x48xf32> to vector<8x16xf32>
    %324 = arith.addf %322, %323 : vector<8x16xf32>
    %325 = vector.extract_strided_slice %321 {offsets = [0, 32], sizes = [8, 16], strides = [1, 1]} : vector<8x48xf32> to vector<8x16xf32>
    %326 = arith.addf %324, %325 : vector<8x16xf32>
    %cst_101 = arith.constant 0.000000e+00 : f32
    %327 = vector.broadcast %cst_101 : f32 to vector<8x16xf32>
    %328 = arith.maximumf %326, %327 : vector<8x16xf32>
    %cst_102 = arith.constant 0.000000e+00 : f32
    %329 = vector.broadcast %cst_102 : f32 to vector<8x16xf32>
    %330 = arith.maximumf %326, %329 : vector<8x16xf32>
    %331 = math.absf %326 : vector<8x16xf32>
    %cst_103 = arith.constant 0.000000e+00 : f32
    %332 = vector.broadcast %cst_103 : f32 to vector<8x16xf32>
    %333 = arith.subf %332, %331 : vector<8x16xf32>
    %334 = math.exp %333 : vector<8x16xf32>
    %335 = math.log1p %334 : vector<8x16xf32>
    %336 = arith.addf %330, %335 : vector<8x16xf32>
    %337 = tpu.concatenate %307, %326 in 1 : vector<8x32xf32>, vector<8x16xf32> -> vector<8x48xf32>
    %338 = arith.index_cast %c3_i32 : i32 to index
    %c0_104 = arith.constant 0 : index
    %c0_105 = arith.constant 0 : index
    %339 = vector.load %arg12[%338, %c0_104, %c0_105] : memref<8x8x48xf32, #tpu.memory_space<vmem>>, vector<1x8x48xf32>
    %340 = vector.shape_cast %339 : vector<1x8x48xf32> to vector<8x48xf32>
    %341 = vector.shape_cast %337 : vector<8x48xf32> to vector<1x8x48xf32>
    tpu.vector_store %arg12[%338, %c0_104, %c0_105], %341 {strides = array<i32>} : memref<8x8x48xf32, #tpu.memory_space<vmem>>, vector<1x8x48xf32>,
    %342 = arith.index_cast %c3_i32 : i32 to index
    %c0_106 = arith.constant 0 : index
    %c0_107 = arith.constant 0 : index
    %343 = vector.load %arg3[%342, %c0_106, %c0_107] : memref<8x8x16xf32, #tpu.memory_space<vmem>>, vector<1x8x16xf32>
    %344 = vector.shape_cast %343 : vector<1x8x16xf32> to vector<8x16xf32>
    %345 = arith.mulf %344, %336 : vector<8x16xf32>
    %346 = arith.addf %345, %328 : vector<8x16xf32>
    %cst_108 = arith.constant dense<0.000000e+00> : vector<8x32xf32>
    %347 = tpu.matmul %346, %4, %cst_108 {dimension_numbers = #tpu.dot_dimension_numbers<[1], [0], [0], [1], [0, 0, 1, 1], [], []>} : vector<8x16xf32>, vector<16x32xf32>, vector<8x32xf32> -> vector<8x32xf32>
    %348 = vector.broadcast %5 : vector<1x32xf32> to vector<8x32xf32>
    %349 = arith.addf %347, %348 : vector<8x32xf32>
    %cst_109 = arith.constant 0.000000e+00 : f32
    %350 = vector.broadcast %cst_109 : f32 to vector<8x32xf32>
    %351 = arith.maximumf %349, %350 : vector<8x32xf32>
    %352 = arith.index_cast %c3_i32 : i32 to index
    %c0_110 = arith.constant 0 : index
    %c0_111 = arith.constant 0 : index
    %353 = vector.load %arg2[%352, %c0_110, %c0_111] : memref<8x8x128xf32, #tpu.memory_space<vmem>>, vector<1x8x128xf32>
    %354 = vector.shape_cast %353 : vector<1x8x128xf32> to vector<8x128xf32>
    %355 = tpu.concatenate %351, %281 in 1 : vector<8x32xf32>, vector<8x32xf32> -> vector<8x64xf32>
    %cst_112 = arith.constant dense<0.000000e+00> : vector<8x128xf32>
    %356 = tpu.matmul %355, %7, %cst_112 {dimension_numbers = #tpu.dot_dimension_numbers<[1], [0], [0], [1], [0, 0, 1, 1], [], []>} : vector<8x64xf32>, vector<64x128xf32>, vector<8x128xf32> -> vector<8x128xf32>
    %357 = arith.addf %356, %354 : vector<8x128xf32>
    %358 = vector.extract_strided_slice %357 {offsets = [0, 0], sizes = [8, 32], strides = [1, 1]} : vector<8x128xf32> to vector<8x32xf32>
    %359 = arith.negf %358 : vector<8x32xf32>
    %360 = math.exp %359 : vector<8x32xf32>
    %cst_113 = arith.constant 1.000000e+00 : f32
    %361 = vector.broadcast %cst_113 : f32 to vector<8x32xf32>
    %362 = arith.addf %361, %360 : vector<8x32xf32>
    %363 = arith.divf %361, %362 : vector<8x32xf32>
    %364 = vector.extract_strided_slice %357 {offsets = [0, 32], sizes = [8, 32], strides = [1, 1]} : vector<8x128xf32> to vector<8x32xf32>
    %365 = arith.negf %364 : vector<8x32xf32>
    %366 = math.exp %365 : vector<8x32xf32>
    %cst_114 = arith.constant 1.000000e+00 : f32
    %367 = vector.broadcast %cst_114 : f32 to vector<8x32xf32>
    %368 = arith.addf %367, %366 : vector<8x32xf32>
    %369 = arith.divf %367, %368 : vector<8x32xf32>
    %370 = vector.extract_strided_slice %357 {offsets = [0, 64], sizes = [8, 32], strides = [1, 1]} : vector<8x128xf32> to vector<8x32xf32>
    %371 = vector.extract_strided_slice %357 {offsets = [0, 96], sizes = [8, 32], strides = [1, 1]} : vector<8x128xf32> to vector<8x32xf32>
    %372 = arith.mulf %363, %371 : vector<8x32xf32>
    %373 = arith.addf %370, %372 : vector<8x32xf32>
    %374 = math.tanh %373 : vector<8x32xf32>
    %cst_115 = arith.constant 1.000000e+00 : f32
    %375 = vector.broadcast %cst_115 : f32 to vector<8x32xf32>
    %376 = arith.subf %375, %369 : vector<8x32xf32>
    %377 = arith.mulf %376, %374 : vector<8x32xf32>
    %378 = arith.mulf %369, %281 : vector<8x32xf32>
    %379 = arith.addf %377, %378 : vector<8x32xf32>
    %380 = tpu.concatenate %379, %307 in 1 : vector<8x32xf32>, vector<8x32xf32> -> vector<8x64xf32>
    %cst_116 = arith.constant dense<0.000000e+00> : vector<8x128xf32>
    %381 = tpu.matmul %380, %9, %cst_116 {dimension_numbers = #tpu.dot_dimension_numbers<[1], [0], [0], [1], [0, 0, 1, 1], [], []>} : vector<8x64xf32>, vector<64x128xf32>, vector<8x128xf32> -> vector<8x128xf32>
    %382 = vector.broadcast %11 : vector<1x128xf32> to vector<8x128xf32>
    %383 = arith.addf %381, %382 : vector<8x128xf32>
    %384 = vector.extract_strided_slice %383 {offsets = [0, 0], sizes = [8, 32], strides = [1, 1]} : vector<8x128xf32> to vector<8x32xf32>
    %385 = arith.negf %384 : vector<8x32xf32>
    %386 = math.exp %385 : vector<8x32xf32>
    %cst_117 = arith.constant 1.000000e+00 : f32
    %387 = vector.broadcast %cst_117 : f32 to vector<8x32xf32>
    %388 = arith.addf %387, %386 : vector<8x32xf32>
    %389 = arith.divf %387, %388 : vector<8x32xf32>
    %390 = vector.extract_strided_slice %383 {offsets = [0, 32], sizes = [8, 32], strides = [1, 1]} : vector<8x128xf32> to vector<8x32xf32>
    %391 = arith.negf %390 : vector<8x32xf32>
    %392 = math.exp %391 : vector<8x32xf32>
    %cst_118 = arith.constant 1.000000e+00 : f32
    %393 = vector.broadcast %cst_118 : f32 to vector<8x32xf32>
    %394 = arith.addf %393, %392 : vector<8x32xf32>
    %395 = arith.divf %393, %394 : vector<8x32xf32>
    %396 = vector.extract_strided_slice %383 {offsets = [0, 64], sizes = [8, 32], strides = [1, 1]} : vector<8x128xf32> to vector<8x32xf32>
    %397 = vector.extract_strided_slice %383 {offsets = [0, 96], sizes = [8, 32], strides = [1, 1]} : vector<8x128xf32> to vector<8x32xf32>
    %398 = arith.mulf %389, %397 : vector<8x32xf32>
    %399 = arith.addf %396, %398 : vector<8x32xf32>
    %400 = math.tanh %399 : vector<8x32xf32>
    %cst_119 = arith.constant 1.000000e+00 : f32
    %401 = vector.broadcast %cst_119 : f32 to vector<8x32xf32>
    %402 = arith.subf %401, %395 : vector<8x32xf32>
    %403 = arith.mulf %402, %400 : vector<8x32xf32>
    %404 = arith.mulf %395, %307 : vector<8x32xf32>
    %405 = arith.addf %403, %404 : vector<8x32xf32>
    %c4_i32 = arith.constant 4 : i32
    %406 = arith.index_cast %c4_i32 : i32 to index
    %c0_120 = arith.constant 0 : index
    %c0_121 = arith.constant 0 : index
    %407 = vector.load %arg1[%406, %c0_120, %c0_121] : memref<8x8x96xf32, #tpu.memory_space<vmem>>, vector<1x8x96xf32>
    %408 = vector.shape_cast %407 : vector<1x8x96xf32> to vector<8x96xf32>
    %cst_122 = arith.constant dense<0.000000e+00> : vector<8x96xf32>
    %409 = tpu.matmul %405, %0, %cst_122 {dimension_numbers = #tpu.dot_dimension_numbers<[1], [0], [0], [1], [0, 0, 1, 1], [], []>} : vector<8x32xf32>, vector<32x96xf32>, vector<8x96xf32> -> vector<8x96xf32>
    %410 = arith.addf %408, %409 : vector<8x96xf32>
    %cst_123 = arith.constant 0.000000e+00 : f32
    %411 = vector.broadcast %cst_123 : f32 to vector<8x96xf32>
    %412 = arith.maximumf %410, %411 : vector<8x96xf32>
    %cst_124 = arith.constant dense<0.000000e+00> : vector<8x48xf32>
    %413 = tpu.matmul %412, %1, %cst_124 {dimension_numbers = #tpu.dot_dimension_numbers<[1], [0], [0], [1], [0, 0, 1, 1], [], []>} : vector<8x96xf32>, vector<96x48xf32>, vector<8x48xf32> -> vector<8x48xf32>
    %414 = vector.broadcast %2 : vector<1x48xf32> to vector<8x48xf32>
    %415 = arith.addf %413, %414 : vector<8x48xf32>
    %cst_125 = arith.constant 0.000000e+00 : f32
    %416 = vector.broadcast %cst_125 : f32 to vector<8x48xf32>
    %417 = arith.maximumf %415, %416 : vector<8x48xf32>
    %418 = vector.broadcast %3 : vector<1x48xf32> to vector<8x48xf32>
    %419 = arith.mulf %417, %418 : vector<8x48xf32>
    %420 = vector.extract_strided_slice %419 {offsets = [0, 0], sizes = [8, 16], strides = [1, 1]} : vector<8x48xf32> to vector<8x16xf32>
    %421 = vector.extract_strided_slice %419 {offsets = [0, 16], sizes = [8, 16], strides = [1, 1]} : vector<8x48xf32> to vector<8x16xf32>
    %422 = arith.addf %420, %421 : vector<8x16xf32>
    %423 = vector.extract_strided_slice %419 {offsets = [0, 32], sizes = [8, 16], strides = [1, 1]} : vector<8x48xf32> to vector<8x16xf32>
    %424 = arith.addf %422, %423 : vector<8x16xf32>
    %cst_126 = arith.constant 0.000000e+00 : f32
    %425 = vector.broadcast %cst_126 : f32 to vector<8x16xf32>
    %426 = arith.maximumf %424, %425 : vector<8x16xf32>
    %cst_127 = arith.constant 0.000000e+00 : f32
    %427 = vector.broadcast %cst_127 : f32 to vector<8x16xf32>
    %428 = arith.maximumf %424, %427 : vector<8x16xf32>
    %429 = math.absf %424 : vector<8x16xf32>
    %cst_128 = arith.constant 0.000000e+00 : f32
    %430 = vector.broadcast %cst_128 : f32 to vector<8x16xf32>
    %431 = arith.subf %430, %429 : vector<8x16xf32>
    %432 = math.exp %431 : vector<8x16xf32>
    %433 = math.log1p %432 : vector<8x16xf32>
    %434 = arith.addf %428, %433 : vector<8x16xf32>
    %435 = tpu.concatenate %405, %424 in 1 : vector<8x32xf32>, vector<8x16xf32> -> vector<8x48xf32>
    %436 = arith.index_cast %c4_i32 : i32 to index
    %c0_129 = arith.constant 0 : index
    %c0_130 = arith.constant 0 : index
    %437 = vector.load %arg12[%436, %c0_129, %c0_130] : memref<8x8x48xf32, #tpu.memory_space<vmem>>, vector<1x8x48xf32>
    %438 = vector.shape_cast %437 : vector<1x8x48xf32> to vector<8x48xf32>
    %439 = vector.shape_cast %435 : vector<8x48xf32> to vector<1x8x48xf32>
    tpu.vector_store %arg12[%436, %c0_129, %c0_130], %439 {strides = array<i32>} : memref<8x8x48xf32, #tpu.memory_space<vmem>>, vector<1x8x48xf32>,
    %440 = arith.index_cast %c4_i32 : i32 to index
    %c0_131 = arith.constant 0 : index
    %c0_132 = arith.constant 0 : index
    %441 = vector.load %arg3[%440, %c0_131, %c0_132] : memref<8x8x16xf32, #tpu.memory_space<vmem>>, vector<1x8x16xf32>
    %442 = vector.shape_cast %441 : vector<1x8x16xf32> to vector<8x16xf32>
    %443 = arith.mulf %442, %434 : vector<8x16xf32>
    %444 = arith.addf %443, %426 : vector<8x16xf32>
    %cst_133 = arith.constant dense<0.000000e+00> : vector<8x32xf32>
    %445 = tpu.matmul %444, %4, %cst_133 {dimension_numbers = #tpu.dot_dimension_numbers<[1], [0], [0], [1], [0, 0, 1, 1], [], []>} : vector<8x16xf32>, vector<16x32xf32>, vector<8x32xf32> -> vector<8x32xf32>
    %446 = vector.broadcast %5 : vector<1x32xf32> to vector<8x32xf32>
    %447 = arith.addf %445, %446 : vector<8x32xf32>
    %cst_134 = arith.constant 0.000000e+00 : f32
    %448 = vector.broadcast %cst_134 : f32 to vector<8x32xf32>
    %449 = arith.maximumf %447, %448 : vector<8x32xf32>
    %450 = arith.index_cast %c4_i32 : i32 to index
    %c0_135 = arith.constant 0 : index
    %c0_136 = arith.constant 0 : index
    %451 = vector.load %arg2[%450, %c0_135, %c0_136] : memref<8x8x128xf32, #tpu.memory_space<vmem>>, vector<1x8x128xf32>
    %452 = vector.shape_cast %451 : vector<1x8x128xf32> to vector<8x128xf32>
    %453 = tpu.concatenate %449, %379 in 1 : vector<8x32xf32>, vector<8x32xf32> -> vector<8x64xf32>
    %cst_137 = arith.constant dense<0.000000e+00> : vector<8x128xf32>
    %454 = tpu.matmul %453, %7, %cst_137 {dimension_numbers = #tpu.dot_dimension_numbers<[1], [0], [0], [1], [0, 0, 1, 1], [], []>} : vector<8x64xf32>, vector<64x128xf32>, vector<8x128xf32> -> vector<8x128xf32>
    %455 = arith.addf %454, %452 : vector<8x128xf32>
    %456 = vector.extract_strided_slice %455 {offsets = [0, 0], sizes = [8, 32], strides = [1, 1]} : vector<8x128xf32> to vector<8x32xf32>
    %457 = arith.negf %456 : vector<8x32xf32>
    %458 = math.exp %457 : vector<8x32xf32>
    %cst_138 = arith.constant 1.000000e+00 : f32
    %459 = vector.broadcast %cst_138 : f32 to vector<8x32xf32>
    %460 = arith.addf %459, %458 : vector<8x32xf32>
    %461 = arith.divf %459, %460 : vector<8x32xf32>
    %462 = vector.extract_strided_slice %455 {offsets = [0, 32], sizes = [8, 32], strides = [1, 1]} : vector<8x128xf32> to vector<8x32xf32>
    %463 = arith.negf %462 : vector<8x32xf32>
    %464 = math.exp %463 : vector<8x32xf32>
    %cst_139 = arith.constant 1.000000e+00 : f32
    %465 = vector.broadcast %cst_139 : f32 to vector<8x32xf32>
    %466 = arith.addf %465, %464 : vector<8x32xf32>
    %467 = arith.divf %465, %466 : vector<8x32xf32>
    %468 = vector.extract_strided_slice %455 {offsets = [0, 64], sizes = [8, 32], strides = [1, 1]} : vector<8x128xf32> to vector<8x32xf32>
    %469 = vector.extract_strided_slice %455 {offsets = [0, 96], sizes = [8, 32], strides = [1, 1]} : vector<8x128xf32> to vector<8x32xf32>
    %470 = arith.mulf %461, %469 : vector<8x32xf32>
    %471 = arith.addf %468, %470 : vector<8x32xf32>
    %472 = math.tanh %471 : vector<8x32xf32>
    %cst_140 = arith.constant 1.000000e+00 : f32
    %473 = vector.broadcast %cst_140 : f32 to vector<8x32xf32>
    %474 = arith.subf %473, %467 : vector<8x32xf32>
    %475 = arith.mulf %474, %472 : vector<8x32xf32>
    %476 = arith.mulf %467, %379 : vector<8x32xf32>
    %477 = arith.addf %475, %476 : vector<8x32xf32>
    %478 = tpu.concatenate %477, %405 in 1 : vector<8x32xf32>, vector<8x32xf32> -> vector<8x64xf32>
    %cst_141 = arith.constant dense<0.000000e+00> : vector<8x128xf32>
    %479 = tpu.matmul %478, %9, %cst_141 {dimension_numbers = #tpu.dot_dimension_numbers<[1], [0], [0], [1], [0, 0, 1, 1], [], []>} : vector<8x64xf32>, vector<64x128xf32>, vector<8x128xf32> -> vector<8x128xf32>
    %480 = vector.broadcast %11 : vector<1x128xf32> to vector<8x128xf32>
    %481 = arith.addf %479, %480 : vector<8x128xf32>
    %482 = vector.extract_strided_slice %481 {offsets = [0, 0], sizes = [8, 32], strides = [1, 1]} : vector<8x128xf32> to vector<8x32xf32>
    %483 = arith.negf %482 : vector<8x32xf32>
    %484 = math.exp %483 : vector<8x32xf32>
    %cst_142 = arith.constant 1.000000e+00 : f32
    %485 = vector.broadcast %cst_142 : f32 to vector<8x32xf32>
    %486 = arith.addf %485, %484 : vector<8x32xf32>
    %487 = arith.divf %485, %486 : vector<8x32xf32>
    %488 = vector.extract_strided_slice %481 {offsets = [0, 32], sizes = [8, 32], strides = [1, 1]} : vector<8x128xf32> to vector<8x32xf32>
    %489 = arith.negf %488 : vector<8x32xf32>
    %490 = math.exp %489 : vector<8x32xf32>
    %cst_143 = arith.constant 1.000000e+00 : f32
    %491 = vector.broadcast %cst_143 : f32 to vector<8x32xf32>
    %492 = arith.addf %491, %490 : vector<8x32xf32>
    %493 = arith.divf %491, %492 : vector<8x32xf32>
    %494 = vector.extract_strided_slice %481 {offsets = [0, 64], sizes = [8, 32], strides = [1, 1]} : vector<8x128xf32> to vector<8x32xf32>
    %495 = vector.extract_strided_slice %481 {offsets = [0, 96], sizes = [8, 32], strides = [1, 1]} : vector<8x128xf32> to vector<8x32xf32>
    %496 = arith.mulf %487, %495 : vector<8x32xf32>
    %497 = arith.addf %494, %496 : vector<8x32xf32>
    %498 = math.tanh %497 : vector<8x32xf32>
    %cst_144 = arith.constant 1.000000e+00 : f32
    %499 = vector.broadcast %cst_144 : f32 to vector<8x32xf32>
    %500 = arith.subf %499, %493 : vector<8x32xf32>
    %501 = arith.mulf %500, %498 : vector<8x32xf32>
    %502 = arith.mulf %493, %405 : vector<8x32xf32>
    %503 = arith.addf %501, %502 : vector<8x32xf32>
    %c5_i32 = arith.constant 5 : i32
    %504 = arith.index_cast %c5_i32 : i32 to index
    %c0_145 = arith.constant 0 : index
    %c0_146 = arith.constant 0 : index
    %505 = vector.load %arg1[%504, %c0_145, %c0_146] : memref<8x8x96xf32, #tpu.memory_space<vmem>>, vector<1x8x96xf32>
    %506 = vector.shape_cast %505 : vector<1x8x96xf32> to vector<8x96xf32>
    %cst_147 = arith.constant dense<0.000000e+00> : vector<8x96xf32>
    %507 = tpu.matmul %503, %0, %cst_147 {dimension_numbers = #tpu.dot_dimension_numbers<[1], [0], [0], [1], [0, 0, 1, 1], [], []>} : vector<8x32xf32>, vector<32x96xf32>, vector<8x96xf32> -> vector<8x96xf32>
    %508 = arith.addf %506, %507 : vector<8x96xf32>
    %cst_148 = arith.constant 0.000000e+00 : f32
    %509 = vector.broadcast %cst_148 : f32 to vector<8x96xf32>
    %510 = arith.maximumf %508, %509 : vector<8x96xf32>
    %cst_149 = arith.constant dense<0.000000e+00> : vector<8x48xf32>
    %511 = tpu.matmul %510, %1, %cst_149 {dimension_numbers = #tpu.dot_dimension_numbers<[1], [0], [0], [1], [0, 0, 1, 1], [], []>} : vector<8x96xf32>, vector<96x48xf32>, vector<8x48xf32> -> vector<8x48xf32>
    %512 = vector.broadcast %2 : vector<1x48xf32> to vector<8x48xf32>
    %513 = arith.addf %511, %512 : vector<8x48xf32>
    %cst_150 = arith.constant 0.000000e+00 : f32
    %514 = vector.broadcast %cst_150 : f32 to vector<8x48xf32>
    %515 = arith.maximumf %513, %514 : vector<8x48xf32>
    %516 = vector.broadcast %3 : vector<1x48xf32> to vector<8x48xf32>
    %517 = arith.mulf %515, %516 : vector<8x48xf32>
    %518 = vector.extract_strided_slice %517 {offsets = [0, 0], sizes = [8, 16], strides = [1, 1]} : vector<8x48xf32> to vector<8x16xf32>
    %519 = vector.extract_strided_slice %517 {offsets = [0, 16], sizes = [8, 16], strides = [1, 1]} : vector<8x48xf32> to vector<8x16xf32>
    %520 = arith.addf %518, %519 : vector<8x16xf32>
    %521 = vector.extract_strided_slice %517 {offsets = [0, 32], sizes = [8, 16], strides = [1, 1]} : vector<8x48xf32> to vector<8x16xf32>
    %522 = arith.addf %520, %521 : vector<8x16xf32>
    %cst_151 = arith.constant 0.000000e+00 : f32
    %523 = vector.broadcast %cst_151 : f32 to vector<8x16xf32>
    %524 = arith.maximumf %522, %523 : vector<8x16xf32>
    %cst_152 = arith.constant 0.000000e+00 : f32
    %525 = vector.broadcast %cst_152 : f32 to vector<8x16xf32>
    %526 = arith.maximumf %522, %525 : vector<8x16xf32>
    %527 = math.absf %522 : vector<8x16xf32>
    %cst_153 = arith.constant 0.000000e+00 : f32
    %528 = vector.broadcast %cst_153 : f32 to vector<8x16xf32>
    %529 = arith.subf %528, %527 : vector<8x16xf32>
    %530 = math.exp %529 : vector<8x16xf32>
    %531 = math.log1p %530 : vector<8x16xf32>
    %532 = arith.addf %526, %531 : vector<8x16xf32>
    %533 = tpu.concatenate %503, %522 in 1 : vector<8x32xf32>, vector<8x16xf32> -> vector<8x48xf32>
    %534 = arith.index_cast %c5_i32 : i32 to index
    %c0_154 = arith.constant 0 : index
    %c0_155 = arith.constant 0 : index
    %535 = vector.load %arg12[%534, %c0_154, %c0_155] : memref<8x8x48xf32, #tpu.memory_space<vmem>>, vector<1x8x48xf32>
    %536 = vector.shape_cast %535 : vector<1x8x48xf32> to vector<8x48xf32>
    %537 = vector.shape_cast %533 : vector<8x48xf32> to vector<1x8x48xf32>
    tpu.vector_store %arg12[%534, %c0_154, %c0_155], %537 {strides = array<i32>} : memref<8x8x48xf32, #tpu.memory_space<vmem>>, vector<1x8x48xf32>,
    %538 = arith.index_cast %c5_i32 : i32 to index
    %c0_156 = arith.constant 0 : index
    %c0_157 = arith.constant 0 : index
    %539 = vector.load %arg3[%538, %c0_156, %c0_157] : memref<8x8x16xf32, #tpu.memory_space<vmem>>, vector<1x8x16xf32>
    %540 = vector.shape_cast %539 : vector<1x8x16xf32> to vector<8x16xf32>
    %541 = arith.mulf %540, %532 : vector<8x16xf32>
    %542 = arith.addf %541, %524 : vector<8x16xf32>
    %cst_158 = arith.constant dense<0.000000e+00> : vector<8x32xf32>
    %543 = tpu.matmul %542, %4, %cst_158 {dimension_numbers = #tpu.dot_dimension_numbers<[1], [0], [0], [1], [0, 0, 1, 1], [], []>} : vector<8x16xf32>, vector<16x32xf32>, vector<8x32xf32> -> vector<8x32xf32>
    %544 = vector.broadcast %5 : vector<1x32xf32> to vector<8x32xf32>
    %545 = arith.addf %543, %544 : vector<8x32xf32>
    %cst_159 = arith.constant 0.000000e+00 : f32
    %546 = vector.broadcast %cst_159 : f32 to vector<8x32xf32>
    %547 = arith.maximumf %545, %546 : vector<8x32xf32>
    %548 = arith.index_cast %c5_i32 : i32 to index
    %c0_160 = arith.constant 0 : index
    %c0_161 = arith.constant 0 : index
    %549 = vector.load %arg2[%548, %c0_160, %c0_161] : memref<8x8x128xf32, #tpu.memory_space<vmem>>, vector<1x8x128xf32>
    %550 = vector.shape_cast %549 : vector<1x8x128xf32> to vector<8x128xf32>
    %551 = tpu.concatenate %547, %477 in 1 : vector<8x32xf32>, vector<8x32xf32> -> vector<8x64xf32>
    %cst_162 = arith.constant dense<0.000000e+00> : vector<8x128xf32>
    %552 = tpu.matmul %551, %7, %cst_162 {dimension_numbers = #tpu.dot_dimension_numbers<[1], [0], [0], [1], [0, 0, 1, 1], [], []>} : vector<8x64xf32>, vector<64x128xf32>, vector<8x128xf32> -> vector<8x128xf32>
    %553 = arith.addf %552, %550 : vector<8x128xf32>
    %554 = vector.extract_strided_slice %553 {offsets = [0, 0], sizes = [8, 32], strides = [1, 1]} : vector<8x128xf32> to vector<8x32xf32>
    %555 = arith.negf %554 : vector<8x32xf32>
    %556 = math.exp %555 : vector<8x32xf32>
    %cst_163 = arith.constant 1.000000e+00 : f32
    %557 = vector.broadcast %cst_163 : f32 to vector<8x32xf32>
    %558 = arith.addf %557, %556 : vector<8x32xf32>
    %559 = arith.divf %557, %558 : vector<8x32xf32>
    %560 = vector.extract_strided_slice %553 {offsets = [0, 32], sizes = [8, 32], strides = [1, 1]} : vector<8x128xf32> to vector<8x32xf32>
    %561 = arith.negf %560 : vector<8x32xf32>
    %562 = math.exp %561 : vector<8x32xf32>
    %cst_164 = arith.constant 1.000000e+00 : f32
    %563 = vector.broadcast %cst_164 : f32 to vector<8x32xf32>
    %564 = arith.addf %563, %562 : vector<8x32xf32>
    %565 = arith.divf %563, %564 : vector<8x32xf32>
    %566 = vector.extract_strided_slice %553 {offsets = [0, 64], sizes = [8, 32], strides = [1, 1]} : vector<8x128xf32> to vector<8x32xf32>
    %567 = vector.extract_strided_slice %553 {offsets = [0, 96], sizes = [8, 32], strides = [1, 1]} : vector<8x128xf32> to vector<8x32xf32>
    %568 = arith.mulf %559, %567 : vector<8x32xf32>
    %569 = arith.addf %566, %568 : vector<8x32xf32>
    %570 = math.tanh %569 : vector<8x32xf32>
    %cst_165 = arith.constant 1.000000e+00 : f32
    %571 = vector.broadcast %cst_165 : f32 to vector<8x32xf32>
    %572 = arith.subf %571, %565 : vector<8x32xf32>
    %573 = arith.mulf %572, %570 : vector<8x32xf32>
    %574 = arith.mulf %565, %477 : vector<8x32xf32>
    %575 = arith.addf %573, %574 : vector<8x32xf32>
    %576 = tpu.concatenate %575, %503 in 1 : vector<8x32xf32>, vector<8x32xf32> -> vector<8x64xf32>
    %cst_166 = arith.constant dense<0.000000e+00> : vector<8x128xf32>
    %577 = tpu.matmul %576, %9, %cst_166 {dimension_numbers = #tpu.dot_dimension_numbers<[1], [0], [0], [1], [0, 0, 1, 1], [], []>} : vector<8x64xf32>, vector<64x128xf32>, vector<8x128xf32> -> vector<8x128xf32>
    %578 = vector.broadcast %11 : vector<1x128xf32> to vector<8x128xf32>
    %579 = arith.addf %577, %578 : vector<8x128xf32>
    %580 = vector.extract_strided_slice %579 {offsets = [0, 0], sizes = [8, 32], strides = [1, 1]} : vector<8x128xf32> to vector<8x32xf32>
    %581 = arith.negf %580 : vector<8x32xf32>
    %582 = math.exp %581 : vector<8x32xf32>
    %cst_167 = arith.constant 1.000000e+00 : f32
    %583 = vector.broadcast %cst_167 : f32 to vector<8x32xf32>
    %584 = arith.addf %583, %582 : vector<8x32xf32>
    %585 = arith.divf %583, %584 : vector<8x32xf32>
    %586 = vector.extract_strided_slice %579 {offsets = [0, 32], sizes = [8, 32], strides = [1, 1]} : vector<8x128xf32> to vector<8x32xf32>
    %587 = arith.negf %586 : vector<8x32xf32>
    %588 = math.exp %587 : vector<8x32xf32>
    %cst_168 = arith.constant 1.000000e+00 : f32
    %589 = vector.broadcast %cst_168 : f32 to vector<8x32xf32>
    %590 = arith.addf %589, %588 : vector<8x32xf32>
    %591 = arith.divf %589, %590 : vector<8x32xf32>
    %592 = vector.extract_strided_slice %579 {offsets = [0, 64], sizes = [8, 32], strides = [1, 1]} : vector<8x128xf32> to vector<8x32xf32>
    %593 = vector.extract_strided_slice %579 {offsets = [0, 96], sizes = [8, 32], strides = [1, 1]} : vector<8x128xf32> to vector<8x32xf32>
    %594 = arith.mulf %585, %593 : vector<8x32xf32>
    %595 = arith.addf %592, %594 : vector<8x32xf32>
    %596 = math.tanh %595 : vector<8x32xf32>
    %cst_169 = arith.constant 1.000000e+00 : f32
    %597 = vector.broadcast %cst_169 : f32 to vector<8x32xf32>
    %598 = arith.subf %597, %591 : vector<8x32xf32>
    %599 = arith.mulf %598, %596 : vector<8x32xf32>
    %600 = arith.mulf %591, %503 : vector<8x32xf32>
    %601 = arith.addf %599, %600 : vector<8x32xf32>
    %c6_i32 = arith.constant 6 : i32
    %602 = arith.index_cast %c6_i32 : i32 to index
    %c0_170 = arith.constant 0 : index
    %c0_171 = arith.constant 0 : index
    %603 = vector.load %arg1[%602, %c0_170, %c0_171] : memref<8x8x96xf32, #tpu.memory_space<vmem>>, vector<1x8x96xf32>
    %604 = vector.shape_cast %603 : vector<1x8x96xf32> to vector<8x96xf32>
    %cst_172 = arith.constant dense<0.000000e+00> : vector<8x96xf32>
    %605 = tpu.matmul %601, %0, %cst_172 {dimension_numbers = #tpu.dot_dimension_numbers<[1], [0], [0], [1], [0, 0, 1, 1], [], []>} : vector<8x32xf32>, vector<32x96xf32>, vector<8x96xf32> -> vector<8x96xf32>
    %606 = arith.addf %604, %605 : vector<8x96xf32>
    %cst_173 = arith.constant 0.000000e+00 : f32
    %607 = vector.broadcast %cst_173 : f32 to vector<8x96xf32>
    %608 = arith.maximumf %606, %607 : vector<8x96xf32>
    %cst_174 = arith.constant dense<0.000000e+00> : vector<8x48xf32>
    %609 = tpu.matmul %608, %1, %cst_174 {dimension_numbers = #tpu.dot_dimension_numbers<[1], [0], [0], [1], [0, 0, 1, 1], [], []>} : vector<8x96xf32>, vector<96x48xf32>, vector<8x48xf32> -> vector<8x48xf32>
    %610 = vector.broadcast %2 : vector<1x48xf32> to vector<8x48xf32>
    %611 = arith.addf %609, %610 : vector<8x48xf32>
    %cst_175 = arith.constant 0.000000e+00 : f32
    %612 = vector.broadcast %cst_175 : f32 to vector<8x48xf32>
    %613 = arith.maximumf %611, %612 : vector<8x48xf32>
    %614 = vector.broadcast %3 : vector<1x48xf32> to vector<8x48xf32>
    %615 = arith.mulf %613, %614 : vector<8x48xf32>
    %616 = vector.extract_strided_slice %615 {offsets = [0, 0], sizes = [8, 16], strides = [1, 1]} : vector<8x48xf32> to vector<8x16xf32>
    %617 = vector.extract_strided_slice %615 {offsets = [0, 16], sizes = [8, 16], strides = [1, 1]} : vector<8x48xf32> to vector<8x16xf32>
    %618 = arith.addf %616, %617 : vector<8x16xf32>
    %619 = vector.extract_strided_slice %615 {offsets = [0, 32], sizes = [8, 16], strides = [1, 1]} : vector<8x48xf32> to vector<8x16xf32>
    %620 = arith.addf %618, %619 : vector<8x16xf32>
    %cst_176 = arith.constant 0.000000e+00 : f32
    %621 = vector.broadcast %cst_176 : f32 to vector<8x16xf32>
    %622 = arith.maximumf %620, %621 : vector<8x16xf32>
    %cst_177 = arith.constant 0.000000e+00 : f32
    %623 = vector.broadcast %cst_177 : f32 to vector<8x16xf32>
    %624 = arith.maximumf %620, %623 : vector<8x16xf32>
    %625 = math.absf %620 : vector<8x16xf32>
    %cst_178 = arith.constant 0.000000e+00 : f32
    %626 = vector.broadcast %cst_178 : f32 to vector<8x16xf32>
    %627 = arith.subf %626, %625 : vector<8x16xf32>
    %628 = math.exp %627 : vector<8x16xf32>
    %629 = math.log1p %628 : vector<8x16xf32>
    %630 = arith.addf %624, %629 : vector<8x16xf32>
    %631 = tpu.concatenate %601, %620 in 1 : vector<8x32xf32>, vector<8x16xf32> -> vector<8x48xf32>
    %632 = arith.index_cast %c6_i32 : i32 to index
    %c0_179 = arith.constant 0 : index
    %c0_180 = arith.constant 0 : index
    %633 = vector.load %arg12[%632, %c0_179, %c0_180] : memref<8x8x48xf32, #tpu.memory_space<vmem>>, vector<1x8x48xf32>
    %634 = vector.shape_cast %633 : vector<1x8x48xf32> to vector<8x48xf32>
    %635 = vector.shape_cast %631 : vector<8x48xf32> to vector<1x8x48xf32>
    tpu.vector_store %arg12[%632, %c0_179, %c0_180], %635 {strides = array<i32>} : memref<8x8x48xf32, #tpu.memory_space<vmem>>, vector<1x8x48xf32>,
    %636 = arith.index_cast %c6_i32 : i32 to index
    %c0_181 = arith.constant 0 : index
    %c0_182 = arith.constant 0 : index
    %637 = vector.load %arg3[%636, %c0_181, %c0_182] : memref<8x8x16xf32, #tpu.memory_space<vmem>>, vector<1x8x16xf32>
    %638 = vector.shape_cast %637 : vector<1x8x16xf32> to vector<8x16xf32>
    %639 = arith.mulf %638, %630 : vector<8x16xf32>
    %640 = arith.addf %639, %622 : vector<8x16xf32>
    %cst_183 = arith.constant dense<0.000000e+00> : vector<8x32xf32>
    %641 = tpu.matmul %640, %4, %cst_183 {dimension_numbers = #tpu.dot_dimension_numbers<[1], [0], [0], [1], [0, 0, 1, 1], [], []>} : vector<8x16xf32>, vector<16x32xf32>, vector<8x32xf32> -> vector<8x32xf32>
    %642 = vector.broadcast %5 : vector<1x32xf32> to vector<8x32xf32>
    %643 = arith.addf %641, %642 : vector<8x32xf32>
    %cst_184 = arith.constant 0.000000e+00 : f32
    %644 = vector.broadcast %cst_184 : f32 to vector<8x32xf32>
    %645 = arith.maximumf %643, %644 : vector<8x32xf32>
    %646 = arith.index_cast %c6_i32 : i32 to index
    %c0_185 = arith.constant 0 : index
    %c0_186 = arith.constant 0 : index
    %647 = vector.load %arg2[%646, %c0_185, %c0_186] : memref<8x8x128xf32, #tpu.memory_space<vmem>>, vector<1x8x128xf32>
    %648 = vector.shape_cast %647 : vector<1x8x128xf32> to vector<8x128xf32>
    %649 = tpu.concatenate %645, %575 in 1 : vector<8x32xf32>, vector<8x32xf32> -> vector<8x64xf32>
    %cst_187 = arith.constant dense<0.000000e+00> : vector<8x128xf32>
    %650 = tpu.matmul %649, %7, %cst_187 {dimension_numbers = #tpu.dot_dimension_numbers<[1], [0], [0], [1], [0, 0, 1, 1], [], []>} : vector<8x64xf32>, vector<64x128xf32>, vector<8x128xf32> -> vector<8x128xf32>
    %651 = arith.addf %650, %648 : vector<8x128xf32>
    %652 = vector.extract_strided_slice %651 {offsets = [0, 0], sizes = [8, 32], strides = [1, 1]} : vector<8x128xf32> to vector<8x32xf32>
    %653 = arith.negf %652 : vector<8x32xf32>
    %654 = math.exp %653 : vector<8x32xf32>
    %cst_188 = arith.constant 1.000000e+00 : f32
    %655 = vector.broadcast %cst_188 : f32 to vector<8x32xf32>
    %656 = arith.addf %655, %654 : vector<8x32xf32>
    %657 = arith.divf %655, %656 : vector<8x32xf32>
    %658 = vector.extract_strided_slice %651 {offsets = [0, 32], sizes = [8, 32], strides = [1, 1]} : vector<8x128xf32> to vector<8x32xf32>
    %659 = arith.negf %658 : vector<8x32xf32>
    %660 = math.exp %659 : vector<8x32xf32>
    %cst_189 = arith.constant 1.000000e+00 : f32
    %661 = vector.broadcast %cst_189 : f32 to vector<8x32xf32>
    %662 = arith.addf %661, %660 : vector<8x32xf32>
    %663 = arith.divf %661, %662 : vector<8x32xf32>
    %664 = vector.extract_strided_slice %651 {offsets = [0, 64], sizes = [8, 32], strides = [1, 1]} : vector<8x128xf32> to vector<8x32xf32>
    %665 = vector.extract_strided_slice %651 {offsets = [0, 96], sizes = [8, 32], strides = [1, 1]} : vector<8x128xf32> to vector<8x32xf32>
    %666 = arith.mulf %657, %665 : vector<8x32xf32>
    %667 = arith.addf %664, %666 : vector<8x32xf32>
    %668 = math.tanh %667 : vector<8x32xf32>
    %cst_190 = arith.constant 1.000000e+00 : f32
    %669 = vector.broadcast %cst_190 : f32 to vector<8x32xf32>
    %670 = arith.subf %669, %663 : vector<8x32xf32>
    %671 = arith.mulf %670, %668 : vector<8x32xf32>
    %672 = arith.mulf %663, %575 : vector<8x32xf32>
    %673 = arith.addf %671, %672 : vector<8x32xf32>
    %674 = tpu.concatenate %673, %601 in 1 : vector<8x32xf32>, vector<8x32xf32> -> vector<8x64xf32>
    %cst_191 = arith.constant dense<0.000000e+00> : vector<8x128xf32>
    %675 = tpu.matmul %674, %9, %cst_191 {dimension_numbers = #tpu.dot_dimension_numbers<[1], [0], [0], [1], [0, 0, 1, 1], [], []>} : vector<8x64xf32>, vector<64x128xf32>, vector<8x128xf32> -> vector<8x128xf32>
    %676 = vector.broadcast %11 : vector<1x128xf32> to vector<8x128xf32>
    %677 = arith.addf %675, %676 : vector<8x128xf32>
    %678 = vector.extract_strided_slice %677 {offsets = [0, 0], sizes = [8, 32], strides = [1, 1]} : vector<8x128xf32> to vector<8x32xf32>
    %679 = arith.negf %678 : vector<8x32xf32>
    %680 = math.exp %679 : vector<8x32xf32>
    %cst_192 = arith.constant 1.000000e+00 : f32
    %681 = vector.broadcast %cst_192 : f32 to vector<8x32xf32>
    %682 = arith.addf %681, %680 : vector<8x32xf32>
    %683 = arith.divf %681, %682 : vector<8x32xf32>
    %684 = vector.extract_strided_slice %677 {offsets = [0, 32], sizes = [8, 32], strides = [1, 1]} : vector<8x128xf32> to vector<8x32xf32>
    %685 = arith.negf %684 : vector<8x32xf32>
    %686 = math.exp %685 : vector<8x32xf32>
    %cst_193 = arith.constant 1.000000e+00 : f32
    %687 = vector.broadcast %cst_193 : f32 to vector<8x32xf32>
    %688 = arith.addf %687, %686 : vector<8x32xf32>
    %689 = arith.divf %687, %688 : vector<8x32xf32>
    %690 = vector.extract_strided_slice %677 {offsets = [0, 64], sizes = [8, 32], strides = [1, 1]} : vector<8x128xf32> to vector<8x32xf32>
    %691 = vector.extract_strided_slice %677 {offsets = [0, 96], sizes = [8, 32], strides = [1, 1]} : vector<8x128xf32> to vector<8x32xf32>
    %692 = arith.mulf %683, %691 : vector<8x32xf32>
    %693 = arith.addf %690, %692 : vector<8x32xf32>
    %694 = math.tanh %693 : vector<8x32xf32>
    %cst_194 = arith.constant 1.000000e+00 : f32
    %695 = vector.broadcast %cst_194 : f32 to vector<8x32xf32>
    %696 = arith.subf %695, %689 : vector<8x32xf32>
    %697 = arith.mulf %696, %694 : vector<8x32xf32>
    %698 = arith.mulf %689, %601 : vector<8x32xf32>
    %699 = arith.addf %697, %698 : vector<8x32xf32>
    %c7_i32 = arith.constant 7 : i32
    %700 = arith.index_cast %c7_i32 : i32 to index
    %c0_195 = arith.constant 0 : index
    %c0_196 = arith.constant 0 : index
    %701 = vector.load %arg1[%700, %c0_195, %c0_196] : memref<8x8x96xf32, #tpu.memory_space<vmem>>, vector<1x8x96xf32>
    %702 = vector.shape_cast %701 : vector<1x8x96xf32> to vector<8x96xf32>
    %cst_197 = arith.constant dense<0.000000e+00> : vector<8x96xf32>
    %703 = tpu.matmul %699, %0, %cst_197 {dimension_numbers = #tpu.dot_dimension_numbers<[1], [0], [0], [1], [0, 0, 1, 1], [], []>} : vector<8x32xf32>, vector<32x96xf32>, vector<8x96xf32> -> vector<8x96xf32>
    %704 = arith.addf %702, %703 : vector<8x96xf32>
    %cst_198 = arith.constant 0.000000e+00 : f32
    %705 = vector.broadcast %cst_198 : f32 to vector<8x96xf32>
    %706 = arith.maximumf %704, %705 : vector<8x96xf32>
    %cst_199 = arith.constant dense<0.000000e+00> : vector<8x48xf32>
    %707 = tpu.matmul %706, %1, %cst_199 {dimension_numbers = #tpu.dot_dimension_numbers<[1], [0], [0], [1], [0, 0, 1, 1], [], []>} : vector<8x96xf32>, vector<96x48xf32>, vector<8x48xf32> -> vector<8x48xf32>
    %708 = vector.broadcast %2 : vector<1x48xf32> to vector<8x48xf32>
    %709 = arith.addf %707, %708 : vector<8x48xf32>
    %cst_200 = arith.constant 0.000000e+00 : f32
    %710 = vector.broadcast %cst_200 : f32 to vector<8x48xf32>
    %711 = arith.maximumf %709, %710 : vector<8x48xf32>
    %712 = vector.broadcast %3 : vector<1x48xf32> to vector<8x48xf32>
    %713 = arith.mulf %711, %712 : vector<8x48xf32>
    %714 = vector.extract_strided_slice %713 {offsets = [0, 0], sizes = [8, 16], strides = [1, 1]} : vector<8x48xf32> to vector<8x16xf32>
    %715 = vector.extract_strided_slice %713 {offsets = [0, 16], sizes = [8, 16], strides = [1, 1]} : vector<8x48xf32> to vector<8x16xf32>
    %716 = arith.addf %714, %715 : vector<8x16xf32>
    %717 = vector.extract_strided_slice %713 {offsets = [0, 32], sizes = [8, 16], strides = [1, 1]} : vector<8x48xf32> to vector<8x16xf32>
    %718 = arith.addf %716, %717 : vector<8x16xf32>
    %cst_201 = arith.constant 0.000000e+00 : f32
    %719 = vector.broadcast %cst_201 : f32 to vector<8x16xf32>
    %720 = arith.maximumf %718, %719 : vector<8x16xf32>
    %cst_202 = arith.constant 0.000000e+00 : f32
    %721 = vector.broadcast %cst_202 : f32 to vector<8x16xf32>
    %722 = arith.maximumf %718, %721 : vector<8x16xf32>
    %723 = math.absf %718 : vector<8x16xf32>
    %cst_203 = arith.constant 0.000000e+00 : f32
    %724 = vector.broadcast %cst_203 : f32 to vector<8x16xf32>
    %725 = arith.subf %724, %723 : vector<8x16xf32>
    %726 = math.exp %725 : vector<8x16xf32>
    %727 = math.log1p %726 : vector<8x16xf32>
    %728 = arith.addf %722, %727 : vector<8x16xf32>
    %729 = tpu.concatenate %699, %718 in 1 : vector<8x32xf32>, vector<8x16xf32> -> vector<8x48xf32>
    %730 = arith.index_cast %c7_i32 : i32 to index
    %c0_204 = arith.constant 0 : index
    %c0_205 = arith.constant 0 : index
    %731 = vector.load %arg12[%730, %c0_204, %c0_205] : memref<8x8x48xf32, #tpu.memory_space<vmem>>, vector<1x8x48xf32>
    %732 = vector.shape_cast %731 : vector<1x8x48xf32> to vector<8x48xf32>
    %733 = vector.shape_cast %729 : vector<8x48xf32> to vector<1x8x48xf32>
    tpu.vector_store %arg12[%730, %c0_204, %c0_205], %733 {strides = array<i32>} : memref<8x8x48xf32, #tpu.memory_space<vmem>>, vector<1x8x48xf32>,
    %734 = arith.index_cast %c7_i32 : i32 to index
    %c0_206 = arith.constant 0 : index
    %c0_207 = arith.constant 0 : index
    %735 = vector.load %arg3[%734, %c0_206, %c0_207] : memref<8x8x16xf32, #tpu.memory_space<vmem>>, vector<1x8x16xf32>
    %736 = vector.shape_cast %735 : vector<1x8x16xf32> to vector<8x16xf32>
    %737 = arith.mulf %736, %728 : vector<8x16xf32>
    %738 = arith.addf %737, %720 : vector<8x16xf32>
    %cst_208 = arith.constant dense<0.000000e+00> : vector<8x32xf32>
    %739 = tpu.matmul %738, %4, %cst_208 {dimension_numbers = #tpu.dot_dimension_numbers<[1], [0], [0], [1], [0, 0, 1, 1], [], []>} : vector<8x16xf32>, vector<16x32xf32>, vector<8x32xf32> -> vector<8x32xf32>
    %740 = vector.broadcast %5 : vector<1x32xf32> to vector<8x32xf32>
    %741 = arith.addf %739, %740 : vector<8x32xf32>
    %cst_209 = arith.constant 0.000000e+00 : f32
    %742 = vector.broadcast %cst_209 : f32 to vector<8x32xf32>
    %743 = arith.maximumf %741, %742 : vector<8x32xf32>
    %744 = arith.index_cast %c7_i32 : i32 to index
    %c0_210 = arith.constant 0 : index
    %c0_211 = arith.constant 0 : index
    %745 = vector.load %arg2[%744, %c0_210, %c0_211] : memref<8x8x128xf32, #tpu.memory_space<vmem>>, vector<1x8x128xf32>
    %746 = vector.shape_cast %745 : vector<1x8x128xf32> to vector<8x128xf32>
    %747 = tpu.concatenate %743, %673 in 1 : vector<8x32xf32>, vector<8x32xf32> -> vector<8x64xf32>
    %cst_212 = arith.constant dense<0.000000e+00> : vector<8x128xf32>
    %748 = tpu.matmul %747, %7, %cst_212 {dimension_numbers = #tpu.dot_dimension_numbers<[1], [0], [0], [1], [0, 0, 1, 1], [], []>} : vector<8x64xf32>, vector<64x128xf32>, vector<8x128xf32> -> vector<8x128xf32>
    %749 = arith.addf %748, %746 : vector<8x128xf32>
    %750 = vector.extract_strided_slice %749 {offsets = [0, 0], sizes = [8, 32], strides = [1, 1]} : vector<8x128xf32> to vector<8x32xf32>
    %751 = arith.negf %750 : vector<8x32xf32>
    %752 = math.exp %751 : vector<8x32xf32>
    %cst_213 = arith.constant 1.000000e+00 : f32
    %753 = vector.broadcast %cst_213 : f32 to vector<8x32xf32>
    %754 = arith.addf %753, %752 : vector<8x32xf32>
    %755 = arith.divf %753, %754 : vector<8x32xf32>
    %756 = vector.extract_strided_slice %749 {offsets = [0, 32], sizes = [8, 32], strides = [1, 1]} : vector<8x128xf32> to vector<8x32xf32>
    %757 = arith.negf %756 : vector<8x32xf32>
    %758 = math.exp %757 : vector<8x32xf32>
    %cst_214 = arith.constant 1.000000e+00 : f32
    %759 = vector.broadcast %cst_214 : f32 to vector<8x32xf32>
    %760 = arith.addf %759, %758 : vector<8x32xf32>
    %761 = arith.divf %759, %760 : vector<8x32xf32>
    %762 = vector.extract_strided_slice %749 {offsets = [0, 64], sizes = [8, 32], strides = [1, 1]} : vector<8x128xf32> to vector<8x32xf32>
    %763 = vector.extract_strided_slice %749 {offsets = [0, 96], sizes = [8, 32], strides = [1, 1]} : vector<8x128xf32> to vector<8x32xf32>
    %764 = arith.mulf %755, %763 : vector<8x32xf32>
    %765 = arith.addf %762, %764 : vector<8x32xf32>
    %766 = math.tanh %765 : vector<8x32xf32>
    %cst_215 = arith.constant 1.000000e+00 : f32
    %767 = vector.broadcast %cst_215 : f32 to vector<8x32xf32>
    %768 = arith.subf %767, %761 : vector<8x32xf32>
    %769 = arith.mulf %768, %766 : vector<8x32xf32>
    %770 = arith.mulf %761, %673 : vector<8x32xf32>
    %771 = arith.addf %769, %770 : vector<8x32xf32>
    %772 = tpu.concatenate %771, %699 in 1 : vector<8x32xf32>, vector<8x32xf32> -> vector<8x64xf32>
    %cst_216 = arith.constant dense<0.000000e+00> : vector<8x128xf32>
    %773 = tpu.matmul %772, %9, %cst_216 {dimension_numbers = #tpu.dot_dimension_numbers<[1], [0], [0], [1], [0, 0, 1, 1], [], []>} : vector<8x64xf32>, vector<64x128xf32>, vector<8x128xf32> -> vector<8x128xf32>
    %774 = vector.broadcast %11 : vector<1x128xf32> to vector<8x128xf32>
    %775 = arith.addf %773, %774 : vector<8x128xf32>
    %776 = vector.extract_strided_slice %775 {offsets = [0, 0], sizes = [8, 32], strides = [1, 1]} : vector<8x128xf32> to vector<8x32xf32>
    %777 = arith.negf %776 : vector<8x32xf32>
    %778 = math.exp %777 : vector<8x32xf32>
    %cst_217 = arith.constant 1.000000e+00 : f32
    %779 = vector.broadcast %cst_217 : f32 to vector<8x32xf32>
    %780 = arith.addf %779, %778 : vector<8x32xf32>
    %781 = arith.divf %779, %780 : vector<8x32xf32>
    %782 = vector.extract_strided_slice %775 {offsets = [0, 32], sizes = [8, 32], strides = [1, 1]} : vector<8x128xf32> to vector<8x32xf32>
    %783 = arith.negf %782 : vector<8x32xf32>
    %784 = math.exp %783 : vector<8x32xf32>
    %cst_218 = arith.constant 1.000000e+00 : f32
    %785 = vector.broadcast %cst_218 : f32 to vector<8x32xf32>
    %786 = arith.addf %785, %784 : vector<8x32xf32>
    %787 = arith.divf %785, %786 : vector<8x32xf32>
    %788 = vector.extract_strided_slice %775 {offsets = [0, 64], sizes = [8, 32], strides = [1, 1]} : vector<8x128xf32> to vector<8x32xf32>
    %789 = vector.extract_strided_slice %775 {offsets = [0, 96], sizes = [8, 32], strides = [1, 1]} : vector<8x128xf32> to vector<8x32xf32>
    %790 = arith.mulf %781, %789 : vector<8x32xf32>
    %791 = arith.addf %788, %790 : vector<8x32xf32>
    %792 = math.tanh %791 : vector<8x32xf32>
    %cst_219 = arith.constant 1.000000e+00 : f32
    %793 = vector.broadcast %cst_219 : f32 to vector<8x32xf32>
    %794 = arith.subf %793, %787 : vector<8x32xf32>
    %795 = arith.mulf %794, %792 : vector<8x32xf32>
    %796 = arith.mulf %787, %699 : vector<8x32xf32>
    %797 = arith.addf %795, %796 : vector<8x32xf32>
    %c8_i32 = arith.constant 8 : i32
    %c0_220 = arith.constant 0 : index
    %c0_221 = arith.constant 0 : index
    %c0_222 = arith.constant 0 : index
    %798 = vector.load %arg13[%c0_220, %c0_221, %c0_222] : memref<2x8x32xf32, #tpu.memory_space<vmem>>, vector<1x8x32xf32>
    %799 = vector.shape_cast %798 : vector<1x8x32xf32> to vector<8x32xf32>
    %800 = vector.shape_cast %771 : vector<8x32xf32> to vector<1x8x32xf32>
    tpu.vector_store %arg13[%c0_220, %c0_221, %c0_222], %800 {strides = array<i32>} : memref<2x8x32xf32, #tpu.memory_space<vmem>>, vector<1x8x32xf32>,
    %c1_223 = arith.constant 1 : index
    %c0_224 = arith.constant 0 : index
    %c0_225 = arith.constant 0 : index
    %801 = vector.load %arg13[%c1_223, %c0_224, %c0_225] : memref<2x8x32xf32, #tpu.memory_space<vmem>>, vector<1x8x32xf32>
    %802 = vector.shape_cast %801 : vector<1x8x32xf32> to vector<8x32xf32>
    %803 = vector.shape_cast %797 : vector<8x32xf32> to vector<1x8x32xf32>
    tpu.vector_store %arg13[%c1_223, %c0_224, %c0_225], %803 {strides = array<i32>} : memref<2x8x32xf32, #tpu.memory_space<vmem>>, vector<1x8x32xf32>,
    return
  }
  func.func @transform_0(%arg0: i32) -> (i32, i32, i32) {
    %c0_i32 = arith.constant 0 : i32
    %c0_i32_0 = arith.constant 0 : i32
    %c0_i32_1 = arith.constant 0 : i32
    return %c0_i32, %arg0, %c0_i32_0 : i32, i32, i32
  }
  func.func @transform_1(%arg0: i32) -> (i32, i32, i32) {
    %c0_i32 = arith.constant 0 : i32
    %c0_i32_0 = arith.constant 0 : i32
    %c0_i32_1 = arith.constant 0 : i32
    return %c0_i32, %arg0, %c0_i32_0 : i32, i32, i32
  }
  func.func @transform_2(%arg0: i32) -> (i32, i32, i32) {
    %c0_i32 = arith.constant 0 : i32
    %c0_i32_0 = arith.constant 0 : i32
    %c0_i32_1 = arith.constant 0 : i32
    return %c0_i32, %arg0, %c0_i32_0 : i32, i32, i32
  }
  func.func @transform_3(%arg0: i32) -> (i32, i32) {
    %c0_i32 = arith.constant 0 : i32
    %c0_i32_0 = arith.constant 0 : i32
    %c0_i32_1 = arith.constant 0 : i32
    return %c0_i32, %c0_i32_0 : i32, i32
  }
  func.func @transform_4(%arg0: i32) -> (i32, i32) {
    %c0_i32 = arith.constant 0 : i32
    %c0_i32_0 = arith.constant 0 : i32
    %c0_i32_1 = arith.constant 0 : i32
    return %c0_i32, %c0_i32_0 : i32, i32
  }
  func.func @transform_5(%arg0: i32) -> (i32, i32) {
    %c0_i32 = arith.constant 0 : i32
    %c0_i32_0 = arith.constant 0 : i32
    %c0_i32_1 = arith.constant 0 : i32
    return %c0_i32, %c0_i32_0 : i32, i32
  }
  func.func @transform_6(%arg0: i32) -> (i32, i32) {
    %c0_i32 = arith.constant 0 : i32
    %c0_i32_0 = arith.constant 0 : i32
    %c0_i32_1 = arith.constant 0 : i32
    return %c0_i32, %c0_i32_0 : i32, i32
  }
  func.func @transform_7(%arg0: i32) -> (i32, i32) {
    %c0_i32 = arith.constant 0 : i32
    %c0_i32_0 = arith.constant 0 : i32
    %c0_i32_1 = arith.constant 0 : i32
    return %c0_i32, %c0_i32_0 : i32, i32
  }
  func.func @transform_8(%arg0: i32) -> (i32, i32) {
    %c0_i32 = arith.constant 0 : i32
    %c0_i32_0 = arith.constant 0 : i32
    %c0_i32_1 = arith.constant 0 : i32
    return %c0_i32, %c0_i32_0 : i32, i32
  }
  func.func @transform_9(%arg0: i32) -> (i32, i32, i32) {
    %c0_i32 = arith.constant 0 : i32
    %c0_i32_0 = arith.constant 0 : i32
    %c0_i32_1 = arith.constant 0 : i32
    %c0_i32_2 = arith.constant 0 : i32
    return %c0_i32, %c0_i32_0, %c0_i32_1 : i32, i32, i32
  }
  func.func @transform_10(%arg0: i32) -> (i32, i32, i32) {
    %c0_i32 = arith.constant 0 : i32
    %c0_i32_0 = arith.constant 0 : i32
    %c0_i32_1 = arith.constant 0 : i32
    %c0_i32_2 = arith.constant 0 : i32
    return %c0_i32, %c0_i32_0, %c0_i32_1 : i32, i32, i32
  }
  func.func @transform_11(%arg0: i32) -> (i32, i32, i32) {
    %c0_i32 = arith.constant 0 : i32
    %c0_i32_0 = arith.constant 0 : i32
    %c0_i32_1 = arith.constant 0 : i32
    return %c0_i32, %arg0, %c0_i32_0 : i32, i32, i32
  }
  func.func @transform_12(%arg0: i32) -> (i32, i32, i32) {
    %c0_i32 = arith.constant 0 : i32
    %c0_i32_0 = arith.constant 0 : i32
    %c0_i32_1 = arith.constant 0 : i32
    return %c0_i32, %arg0, %c0_i32_0 : i32, i32, i32
  }
}

</mosaic_0001>

<llo_original>
// kernel: mavap_forward.1
$region0: #{mavap_forward.1}
  #allocation0 [shape = 'u32[]', space=smem, size = 0x4, offset = 0x4, fixed_abs, tag = 'smem constant byte address 0x4 - core index']
  #allocation1 [shape = 'u32[144,128]{1,0:T(1,128)}', space=vmem, size = 0x12000, scoped, tag = 'internal scratch']
  %s0 = inlined_call_operand.vmem [shape: f32[8,8,96], index: 0, kind: input, shape index: {}]
  %s1 = inlined_call_operand.vmem [shape: f32[8,8,128], index: 1, kind: input, shape index: {}]
  %s2 = inlined_call_operand.vmem [shape: f32[8,8,16], index: 2, kind: input, shape index: {}]
  %s3 = inlined_call_operand.vmem [shape: f32[32,96], index: 3, kind: input, shape index: {}]
  %s4 = inlined_call_operand.vmem [shape: f32[96,48], index: 4, kind: input, shape index: {}]
  %s5 = inlined_call_operand.vmem [shape: f32[1,48], index: 5, kind: input, shape index: {}]
  %s6 = inlined_call_operand.vmem [shape: f32[1,48], index: 6, kind: input, shape index: {}]
  %s7 = inlined_call_operand.vmem [shape: f32[16,32], index: 7, kind: input, shape index: {}]
  %s8 = inlined_call_operand.vmem [shape: f32[1,32], index: 8, kind: input, shape index: {}]
  %s9 = inlined_call_operand.vmem [shape: f32[2,64,128], index: 9, kind: input, shape index: {}]
  %s10 = inlined_call_operand.vmem [shape: f32[2,1,128], index: 10, kind: input, shape index: {}]
  %s11 = inlined_call_operand.vmem [shape: f32[8,8,48], index: 11, kind: output, shape index: {0}]
  %s12 = inlined_call_operand.vmem [shape: f32[2,8,32], index: 12, kind: output, shape index: {1}]
  %13 = xla_tuple %s11, %s12
  %s14 = sld [smem:[#allocation0]]
  $region62: #{mavap_forward.1} parent=0
    _
  %s16 = ssub.s32 1, %s14
  %s17 = scalar_select 0, %s16, %s14
  // Predicated region
  $region2: #{mavap_forward.1} parent=0 // pred_check
    _
  $region3: #{mavap_forward.1} parent=0 // pred_check_branch
    %19 = sbr.rel (0) target = $region5
  $region4: #{mavap_forward.1} parent=0 // pred_region
    _
  $region5: #{mavap_forward.1} parent=0 // pred_fallthru
    _
  // Predicated region
  $region6: #{mavap_forward.1} parent=0 // pred_check
    _
  $region7: #{mavap_forward.1} parent=0 // pred_check_branch
    %21 = sbr.rel (0) target = $region9
  $region8: #{mavap_forward.1} parent=0 // pred_region
    _
  $region9: #{mavap_forward.1} parent=0 // pred_fallthru
    _
  // Predicated region
  $region10: #{mavap_forward.1} parent=0 // pred_check
    _
  $region11: #{mavap_forward.1} parent=0 // pred_check_branch
    %23 = sbr.rel (0) target = $region13
  $region12: #{mavap_forward.1} parent=0 // pred_region
    _
  $region13: #{mavap_forward.1} parent=0 // pred_fallthru
    _
  // Predicated region
  $region14: #{mavap_forward.1} parent=0 // pred_check
    _
  $region15: #{mavap_forward.1} parent=0 // pred_check_branch
    %25 = sbr.rel (0) target = $region17
  $region16: #{mavap_forward.1} parent=0 // pred_region
    _
  $region17: #{mavap_forward.1} parent=0 // pred_fallthru
    _
  // Predicated region
  $region18: #{mavap_forward.1} parent=0 // pred_check
    _
  $region19: #{mavap_forward.1} parent=0 // pred_check_branch
    %27 = sbr.rel (0) target = $region21
  $region20: #{mavap_forward.1} parent=0 // pred_region
    _
  $region21: #{mavap_forward.1} parent=0 // pred_fallthru
    _
  // Predicated region
  $region22: #{mavap_forward.1} parent=0 // pred_check
    _
  $region23: #{mavap_forward.1} parent=0 // pred_check_branch
    %29 = sbr.rel (0) target = $region25
  $region24: #{mavap_forward.1} parent=0 // pred_region
    _
  $region25: #{mavap_forward.1} parent=0 // pred_fallthru
    _
  // Predicated region
  $region26: #{mavap_forward.1} parent=0 // pred_check
    _
  $region27: #{mavap_forward.1} parent=0 // pred_check_branch
    %31 = sbr.rel (0) target = $region29
  $region28: #{mavap_forward.1} parent=0 // pred_region
    _
  $region29: #{mavap_forward.1} parent=0 // pred_fallthru
    _
  // Predicated region
  $region30: #{mavap_forward.1} parent=0 // pred_check
    _
  $region31: #{mavap_forward.1} parent=0 // pred_check_branch
    %33 = sbr.rel (0) target = $region33
  $region32: #{mavap_forward.1} parent=0 // pred_region
    _
  $region33: #{mavap_forward.1} parent=0 // pred_fallthru
    _
  // Predicated region
  $region34: #{mavap_forward.1} parent=0 // pred_check
    _
  $region35: #{mavap_forward.1} parent=0 // pred_check_branch
    %35 = sbr.rel (0) target = $region37
  $region36: #{mavap_forward.1} parent=0 // pred_region
    _
  $region37: #{mavap_forward.1} parent=0 // pred_fallthru
    _
  // Predicated region
  $region38: #{mavap_forward.1} parent=0 // pred_check
    _
  $region39: #{mavap_forward.1} parent=0 // pred_check_branch
    %37 = sbr.rel (0) target = $region41
  $region40: #{mavap_forward.1} parent=0 // pred_region
    _
  $region41: #{mavap_forward.1} parent=0 // pred_fallthru
    _
  // Predicated region
  $region42: #{mavap_forward.1} parent=0 // pred_check
    _
  $region43: #{mavap_forward.1} parent=0 // pred_check_branch
    %39 = sbr.rel (0) target = $region45
  $region44: #{mavap_forward.1} parent=0 // pred_region
    _
  $region45: #{mavap_forward.1} parent=0 // pred_fallthru
    _
  %v40 = vld [vmem:[%s3] sm:$0xff]
  %v41 = vld [vmem:[%s3 + $0x8] sm:$0xff]
  %v42 = vld [vmem:[%s3 + $0x10] sm:$0xff]
  %v43 = vld [vmem:[%s3 + $0x18] sm:$0xff]
  %v44 = vld [vmem:[%s4] sm:$0xff]
  %v45 = vld [vmem:[%s4 + $0x8] sm:$0xff]
  %v46 = vld [vmem:[%s4 + $0x10] sm:$0xff]
  %v47 = vld [vmem:[%s4 + $0x18] sm:$0xff]
  %v48 = vld [vmem:[%s4 + $0x20] sm:$0xff]
  %v49 = vld [vmem:[%s4 + $0x28] sm:$0xff]
  %v50 = vld [vmem:[%s4 + $0x30] sm:$0xff]
  %v51 = vld [vmem:[%s4 + $0x38] sm:$0xff]
  %v52 = vld [vmem:[%s4 + $0x40] sm:$0xff]
  %v53 = vld [vmem:[%s4 + $0x48] sm:$0xff]
  %v54 = vld [vmem:[%s4 + $0x50] sm:$0xff]
  %v55 = vld [vmem:[%s4 + $0x58] sm:$0xff]
  %v56 = vld [vmem:[%s5] sm:$0x1]
  %v57 = vld [vmem:[%s6] sm:$0x1]
  %v58 = vld [vmem:[%s7] sm:$0xff]
  %v59 = vld [vmem:[%s7 + $0x8] sm:$0xff]
  %v60 = vld [vmem:[%s8] sm:$0x1]
  %v61 = vld [vmem:[%s9] sm:$0xff]
  %v62 = vld [vmem:[%s9 + $0x8] sm:$0xff]
  %v63 = vld [vmem:[%s9 + $0x10] sm:$0xff]
  %v64 = vld [vmem:[%s9 + $0x18] sm:$0xff]
  %v65 = vld [vmem:[%s9 + $0x20] sm:$0xff]
  %v66 = vld [vmem:[%s9 + $0x28] sm:$0xff]
  %v67 = vld [vmem:[%s9 + $0x30] sm:$0xff]
  %v68 = vld [vmem:[%s9 + $0x38] sm:$0xff]
  %s69 = scalar_lea.vmem %s9, 64
  %v70 = vld [vmem:[%s69] sm:$0xff]
  %v71 = vld [vmem:[%s69 + $0x8] sm:$0xff]
  %v72 = vld [vmem:[%s69 + $0x10] sm:$0xff]
  %v73 = vld [vmem:[%s69 + $0x18] sm:$0xff]
  %v74 = vld [vmem:[%s69 + $0x20] sm:$0xff]
  %v75 = vld [vmem:[%s69 + $0x28] sm:$0xff]
  %v76 = vld [vmem:[%s69 + $0x30] sm:$0xff]
  %v77 = vld [vmem:[%s69 + $0x38] sm:$0xff]
  %s78 = scalar_lea.vmem %s10, 1
  %v79 = vld [vmem:[%s78] sm:$0x1]
  %v80 = vld [vmem:[%s0] sm:$0xff]
  %vm81 = vcmask 261120
  %v83 = vsel %vm81, 0.0, 0
  %85 = vmatprep.subr.mxu0 0.0
  %86 = vmatpush1.msra.mxu0 %v40
  %87 = vmatprep.subr.mxu0 0.0
  %88 = vmatpush1.msra.mxu0 %v41
  %89 = vmatprep.subr.mxu0 0.0
  %90 = vmatpush1.msra.mxu0 %v42
  %91 = vmatprep.subr.mxu0 0.0
  %92 = vmatpush1.msra.mxu0 %v43
  %93 = vmatprep.subr.mxu0 0.0
  %94 = vmatpush1.msra.mxu0 0.0
  %95 = vmatprep.subr.mxu0 0.0
  %96 = vmatpush1.msra.mxu0 0.0
  %97 = vmatprep.subr.mxu0 0.0
  %98 = vmatpush1.msra.mxu0 0.0
  %99 = vmatprep.subr.mxu0 0.0
  %100 = vmatpush1.msra.mxu0 0.0
  %101 = vmatprep.subr.mxu0 0.0
  %102 = vmatpush1.msra.mxu0 0.0
  %103 = vmatprep.subr.mxu0 0.0
  %104 = vmatpush1.msra.mxu0 0.0
  %105 = vmatprep.subr.mxu0 0.0
  %106 = vmatpush1.msra.mxu0 0.0
  %107 = vmatprep.subr.mxu0 0.0
  %108 = vmatpush1.msra.mxu0 0.0
  %109 = vmatprep.subr.mxu0 0.0
  %110 = vmatpush1.msra.mxu0 0.0
  %111 = vmatprep.subr.mxu0 0.0
  %112 = vmatpush1.msra.mxu0 0.0
  %113 = vmatprep.subr.mxu0 0.0
  %114 = vmatpush1.msra.mxu0 0.0
  %115 = vmatprep.subr.mxu0 0.0
  %116 = vmatpush1.msra.mxu0 0.0
  %117 = vmatprep.subr.mxu0 0.0
  %118 = vmatpush1.msra.mxu0 0.0
  %119 = vmatprep.subr.mxu0 0.0
  %120 = vmatpush1.msra.mxu0 0.0
  %121 = vmatprep.subr.mxu0 0.0
  %122 = vmatpush1.msra.mxu0 0.0
  %123 = vmatprep.subr.mxu0 0.0
  %124 = vmatpush1.msra.mxu0 0.0
  %125 = vmatprep.subr.mxu0 0.0
  %126 = vmatpush1.msra.mxu0 0.0
  %127 = vmatprep.subr.mxu0 0.0
  %128 = vmatpush1.msra.mxu0 0.0
  %129 = vmatprep.subr.mxu0 0.0
  %130 = vmatpush1.msra.mxu0 0.0
  %131 = vmatprep.subr.mxu0 0.0
  %132 = vmatpush1.msra.mxu0 0.0
  %133 = vmatprep.subr.mxu0 0.0
  %134 = vmatpush1.msra.mxu0 0.0
  %135 = vmatprep.subr.mxu0 0.0
  %136 = vmatpush1.msra.mxu0 0.0
  %137 = vmatprep.subr.mxu0 0.0
  %138 = vmatpush1.msra.mxu0 0.0
  %139 = vmatprep.subr.mxu0 0.0
  %140 = vmatpush1.msra.mxu0 0.0
  %141 = vmatprep.subr.mxu0 0.0
  %142 = vmatpush1.msra.mxu0 0.0
  %143 = vmatprep.subr.mxu0 0.0
  %144 = vmatpush1.msra.mxu0 0.0
  %145 = vmatprep.subr.mxu0 0.0
  %146 = vmatpush1.msra.mxu0 0.0
  %147 = vmatprep.subr.mxu0 0.0
  %148 = vmatpush1.msra.mxu0 0.0
  %149 = vmatprep.mubr.f32.mxu0 0.0
  %150 = vmatmul.mubr.f32.gmra.mrb[0].mxu0 %v83
  %v151 = vpop.f32.mrb[0].mxu0
  %v152 = vadd.f32 0.0, %v151
  %v153 = vpop.f32.mrb[0].mxu0
  %154 = vdwg.mxu0
  %v155 = vadd.f32 %v80, %v152
  %v156 = vmax.f32 %v155, 0.0
  %v158 = vlaneseq
  %v159 = vshrl.u32 %v158, 7
  %v160 = vsub.s32 0, %v159
  %v161 = vrot.slane %v56, %v160
  %vm163 = vcmask 785408
  %v165 = vsel %vm163, %v156, 0
  %167 = vmatprep.subr.mxu0 0.0
  %168 = vmatpush1.msra.mxu0 %v44
  %169 = vmatprep.subr.mxu0 0.0
  %170 = vmatpush1.msra.mxu0 %v45
  %171 = vmatprep.subr.mxu0 0.0
  %172 = vmatpush1.msra.mxu0 %v46
  %173 = vmatprep.subr.mxu0 0.0
  %174 = vmatpush1.msra.mxu0 %v47
  %175 = vmatprep.subr.mxu0 0.0
  %176 = vmatpush1.msra.mxu0 %v48
  %177 = vmatprep.subr.mxu0 0.0
  %178 = vmatpush1.msra.mxu0 %v49
  %179 = vmatprep.subr.mxu0 0.0
  %180 = vmatpush1.msra.mxu0 %v50
  %181 = vmatprep.subr.mxu0 0.0
  %182 = vmatpush1.msra.mxu0 %v51
  %183 = vmatprep.subr.mxu0 0.0
  %184 = vmatpush1.msra.mxu0 %v52
  %185 = vmatprep.subr.mxu0 0.0
  %186 = vmatpush1.msra.mxu0 %v53
  %187 = vmatprep.subr.mxu0 0.0
  %188 = vmatpush1.msra.mxu0 %v54
  %189 = vmatprep.subr.mxu0 0.0
  %190 = vmatpush1.msra.mxu0 %v55
  %191 = vmatprep.subr.mxu0 0.0
  %192 = vmatpush1.msra.mxu0 0.0
  %193 = vmatprep.subr.mxu0 0.0
  %194 = vmatpush1.msra.mxu0 0.0
  %195 = vmatprep.subr.mxu0 0.0
  %196 = vmatpush1.msra.mxu0 0.0
  %197 = vmatprep.subr.mxu0 0.0
  %198 = vmatpush1.msra.mxu0 0.0
  %199 = vmatprep.subr.mxu0 0.0
  %200 = vmatpush1.msra.mxu0 0.0
  %201 = vmatprep.subr.mxu0 0.0
  %202 = vmatpush1.msra.mxu0 0.0
  %203 = vmatprep.subr.mxu0 0.0
  %204 = vmatpush1.msra.mxu0 0.0
  %205 = vmatprep.subr.mxu0 0.0
  %206 = vmatpush1.msra.mxu0 0.0
  %207 = vmatprep.subr.mxu0 0.0
  %208 = vmatpush1.msra.mxu0 0.0
  %209 = vmatprep.subr.mxu0 0.0
  %210 = vmatpush1.msra.mxu0 0.0
  %211 = vmatprep.subr.mxu0 0.0
  %212 = vmatpush1.msra.mxu0 0.0
  %213 = vmatprep.subr.mxu0 0.0
  %214 = vmatpush1.msra.mxu0 0.0
  %215 = vmatprep.subr.mxu0 0.0
  %216 = vmatpush1.msra.mxu0 0.0
  %217 = vmatprep.subr.mxu0 0.0
  %218 = vmatpush1.msra.mxu0 0.0
  %219 = vmatprep.subr.mxu0 0.0
  %220 = vmatpush1.msra.mxu0 0.0
  %221 = vmatprep.subr.mxu0 0.0
  %222 = vmatpush1.msra.mxu0 0.0
  %223 = vmatprep.subr.mxu0 0.0
  %224 = vmatpush1.msra.mxu0 0.0
  %225 = vmatprep.subr.mxu0 0.0
  %226 = vmatpush1.msra.mxu0 0.0
  %227 = vmatprep.subr.mxu0 0.0
  %228 = vmatpush1.msra.mxu0 0.0
  %229 = vmatprep.subr.mxu0 0.0
  %230 = vmatpush1.msra.mxu0 0.0
  %231 = vmatprep.mubr.f32.mxu0 0.0
  %232 = vmatmul.mubr.f32.gmra.mrb[0].mxu0 %v165
  %v233 = vpop.f32.mrb[0].mxu0
  %v234 = vadd.f32 %v161, %v233
  %v235 = vpop.f32.mrb[0].mxu0
  %236 = vdwg.mxu0
  %v237 = vmax.f32 %v234, 0.0
  %v239 = vlaneseq
  %v240 = vshrl.u32 %v239, 7
  %v241 = vsub.s32 0, %v240
  %v242 = vrot.slane %v57, %v241
  %v244 = vmul.f32 %v237, %v242
  %246 = vrot.lane.b32.xlu0 %v244, 112
  %v247 = vpop.permute.xlu0 %246
  %v249 = vadd.f32 %v244, %v247
  %250 = vrot.lane.b32.xlu0 %v244, 96
  %v251 = vpop.permute.xlu0 %250
  %v253 = vadd.f32 %v249, %v251
  %v254 = vmax.f32 %v253, 0.0
  %v255 = vand.u32 2147483647, %v253
  %v256 = vsub.f32 0.0, %v255
  %v257 = vmul.f32 %v256, 1.442695
  %v258 = vpow.pop %v257
  %v259 = vadd.f32 %v258, 1.0
  %v260 = vlog2.pop %v259
  %v261 = vmul.f32 %v260, 0.6931472
  %v262 = vmul.f32 -0.5, %v258
  %v263 = vadd.f32 %v262, 1.0
  %v264 = vmul.f32 %v263, %v258
  %v265 = vand.u32 2147483647, %v258
  %vm266 = vcmp.lt.f32.partialorder %v265, 0.0004427343
  %v267 = vsel %vm266, %v264, %v261
  %v268 = vadd.f32 %v254, %v267
  %270 = vrot.lane.b32.xlu0 %v253, 32
  %v271 = vpop.permute.xlu0 %270
  %v273 = vsel %vm81, 0.0, %v271
  %vm274 = vcmask 392192
  %275 = vst.msk [vmem:[%s11] sm:$0xff] %vm274, %v273
  %v276 = vld [vmem:[%s2] sm:$0xff]
  %v277 = vmul.f32 %v276, %v268
  %v278 = vadd.f32 %v277, %v254
  %v280 = vlaneseq
  %v281 = vshrl.u32 %v280, 7
  %v282 = vsub.s32 0, %v281
  %v283 = vrot.slane %v60, %v282
  %vm285 = vcmask 130048
  %v287 = vsel %vm285, %v278, 0
  %289 = vmatprep.subr.mxu0 0.0
  %290 = vmatpush1.msra.mxu0 %v58
  %291 = vmatprep.subr.mxu0 0.0
  %292 = vmatpush1.msra.mxu0 %v59
  %293 = vmatprep.subr.mxu0 0.0
  %294 = vmatpush1.msra.mxu0 0.0
  %295 = vmatprep.subr.mxu0 0.0
  %296 = vmatpush1.msra.mxu0 0.0
  %297 = vmatprep.subr.mxu0 0.0
  %298 = vmatpush1.msra.mxu0 0.0
  %299 = vmatprep.subr.mxu0 0.0
  %300 = vmatpush1.msra.mxu0 0.0
  %301 = vmatprep.subr.mxu0 0.0
  %302 = vmatpush1.msra.mxu0 0.0
  %303 = vmatprep.subr.mxu0 0.0
  %304 = vmatpush1.msra.mxu0 0.0
  %305 = vmatprep.subr.mxu0 0.0
  %306 = vmatpush1.msra.mxu0 0.0
  %307 = vmatprep.subr.mxu0 0.0
  %308 = vmatpush1.msra.mxu0 0.0
  %309 = vmatprep.subr.mxu0 0.0
  %310 = vmatpush1.msra.mxu0 0.0
  %311 = vmatprep.subr.mxu0 0.0
  %312 = vmatpush1.msra.mxu0 0.0
  %313 = vmatprep.subr.mxu0 0.0
  %314 = vmatpush1.msra.mxu0 0.0
  %315 = vmatprep.subr.mxu0 0.0
  %316 = vmatpush1.msra.mxu0 0.0
  %317 = vmatprep.subr.mxu0 0.0
  %318 = vmatpush1.msra.mxu0 0.0
  %319 = vmatprep.subr.mxu0 0.0
  %320 = vmatpush1.msra.mxu0 0.0
  %321 = vmatprep.subr.mxu0 0.0
  %322 = vmatpush1.msra.mxu0 0.0
  %323 = vmatprep.subr.mxu0 0.0
  %324 = vmatpush1.msra.mxu0 0.0
  %325 = vmatprep.subr.mxu0 0.0
  %326 = vmatpush1.msra.mxu0 0.0
  %327 = vmatprep.subr.mxu0 0.0
  %328 = vmatpush1.msra.mxu0 0.0
  %329 = vmatprep.subr.mxu0 0.0
  %330 = vmatpush1.msra.mxu0 0.0
  %331 = vmatprep.subr.mxu0 0.0
  %332 = vmatpush1.msra.mxu0 0.0
  %333 = vmatprep.subr.mxu0 0.0
  %334 = vmatpush1.msra.mxu0 0.0
  %335 = vmatprep.subr.mxu0 0.0
  %336 = vmatpush1.msra.mxu0 0.0
  %337 = vmatprep.subr.mxu0 0.0
  %338 = vmatpush1.msra.mxu0 0.0
  %339 = vmatprep.subr.mxu0 0.0
  %340 = vmatpush1.msra.mxu0 0.0
  %341 = vmatprep.subr.mxu0 0.0
  %342 = vmatpush1.msra.mxu0 0.0
  %343 = vmatprep.subr.mxu0 0.0
  %344 = vmatpush1.msra.mxu0 0.0
  %345 = vmatprep.subr.mxu0 0.0
  %346 = vmatpush1.msra.mxu0 0.0
  %347 = vmatprep.subr.mxu0 0.0
  %348 = vmatpush1.msra.mxu0 0.0
  %349 = vmatprep.subr.mxu0 0.0
  %350 = vmatpush1.msra.mxu0 0.0
  %351 = vmatprep.subr.mxu0 0.0
  %352 = vmatpush1.msra.mxu0 0.0
  %353 = vmatprep.mubr.f32.mxu0 0.0
  %354 = vmatmul.mubr.f32.gmra.mrb[0].mxu0 %v287
  %v355 = vpop.f32.mrb[0].mxu0
  %v356 = vadd.f32 %v283, %v355
  %v357 = vpop.f32.mrb[0].mxu0
  %358 = vdwg.mxu0
  %v359 = vmax.f32 %v356, 0.0
  %v360 = vld [vmem:[%s1] sm:$0xff]
  %v361 = vsel %vm81, %v359, 0.0
  %vm362 = vcmask 523264
  %v364 = vsel %vm362, %v361, 0
  %366 = vmatprep.subr.mxu0 0.0
  %367 = vmatpush1.msra.mxu0 %v61
  %368 = vmatprep.subr.mxu0 0.0
  %369 = vmatpush1.msra.mxu0 %v62
  %370 = vmatprep.subr.mxu0 0.0
  %371 = vmatpush1.msra.mxu0 %v63
  %372 = vmatprep.subr.mxu0 0.0
  %373 = vmatpush1.msra.mxu0 %v64
  %374 = vmatprep.subr.mxu0 0.0
  %375 = vmatpush1.msra.mxu0 %v65
  %376 = vmatprep.subr.mxu0 0.0
  %377 = vmatpush1.msra.mxu0 %v66
  %378 = vmatprep.subr.mxu0 0.0
  %379 = vmatpush1.msra.mxu0 %v67
  %380 = vmatprep.subr.mxu0 0.0
  %381 = vmatpush1.msra.mxu0 %v68
  %382 = vmatprep.subr.mxu0 0.0
  %383 = vmatpush1.msra.mxu0 0.0
  %384 = vmatprep.subr.mxu0 0.0
  %385 = vmatpush1.msra.mxu0 0.0
  %386 = vmatprep.subr.mxu0 0.0
  %387 = vmatpush1.msra.mxu0 0.0
  %388 = vmatprep.subr.mxu0 0.0
  %389 = vmatpush1.msra.mxu0 0.0
  %390 = vmatprep.subr.mxu0 0.0
  %391 = vmatpush1.msra.mxu0 0.0
  %392 = vmatprep.subr.mxu0 0.0
  %393 = vmatpush1.msra.mxu0 0.0
  %394 = vmatprep.subr.mxu0 0.0
  %395 = vmatpush1.msra.mxu0 0.0
  %396 = vmatprep.subr.mxu0 0.0
  %397 = vmatpush1.msra.mxu0 0.0
  %398 = vmatprep.subr.mxu0 0.0
  %399 = vmatpush1.msra.mxu0 0.0
  %400 = vmatprep.subr.mxu0 0.0
  %401 = vmatpush1.msra.mxu0 0.0
  %402 = vmatprep.subr.mxu0 0.0
  %403 = vmatpush1.msra.mxu0 0.0
  %404 = vmatprep.subr.mxu0 0.0
  %405 = vmatpush1.msra.mxu0 0.0
  %406 = vmatprep.subr.mxu0 0.0
  %407 = vmatpush1.msra.mxu0 0.0
  %408 = vmatprep.subr.mxu0 0.0
  %409 = vmatpush1.msra.mxu0 0.0
  %410 = vmatprep.subr.mxu0 0.0
  %411 = vmatpush1.msra.mxu0 0.0
  %412 = vmatprep.subr.mxu0 0.0
  %413 = vmatpush1.msra.mxu0 0.0
  %414 = vmatprep.subr.mxu0 0.0
  %415 = vmatpush1.msra.mxu0 0.0
  %416 = vmatprep.subr.mxu0 0.0
  %417 = vmatpush1.msra.mxu0 0.0
  %418 = vmatprep.subr.mxu0 0.0
  %419 = vmatpush1.msra.mxu0 0.0
  %420 = vmatprep.subr.mxu0 0.0
  %421 = vmatpush1.msra.mxu0 0.0
  %422 = vmatprep.subr.mxu0 0.0
  %423 = vmatpush1.msra.mxu0 0.0
  %424 = vmatprep.subr.mxu0 0.0
  %425 = vmatpush1.msra.mxu0 0.0
  %426 = vmatprep.subr.mxu0 0.0
  %427 = vmatpush1.msra.mxu0 0.0
  %428 = vmatprep.subr.mxu0 0.0
  %429 = vmatpush1.msra.mxu0 0.0
  %430 = vmatprep.mubr.f32.mxu0 0.0
  %431 = vmatmul.mubr.f32.gmra.mrb[0].mxu0 %v364
  %v432 = vpop.f32.mrb[0].mxu0
  %v433 = vadd.f32 %v360, %v432
  %v434 = vpop.f32.mrb[0].mxu0
  %435 = vdwg.mxu0
  %v436 = vxor.u32 %v433, 2147483648
  %v437 = vmul.f32 %v436, 1.442695
  %v438 = vpow.pop %v437
  %v439 = vadd.f32 %v438, 1.0
  %v440 = vrcp.pop %v439
  %v441 = vmul.f32 1.0, %v440
  %443 = vrot.lane.b32.xlu0 %v433, 32
  %v444 = vpop.permute.xlu0 %443
  %v446 = vmul.f32 %v441, %v444
  %448 = vrot.lane.b32.xlu0 %v446, 64
  %v449 = vpop.permute.xlu0 %448
  %v451 = vadd.f32 %v433, %v449
  %v452 = vtanh.pop %v451
  %v453 = vsub.f32 1.0, %v441
  %455 = vrot.lane.b32.xlu0 %v452, 96
  %v456 = vpop.permute.xlu0 %455
  %v458 = vmul.f32 %v453, %v456
  %v459 = vmul.f32 %v441, 0.0
  %v460 = vadd.f32 %v458, %v459
  %462 = vrot.lane.b32.xlu0 %v460, 96
  %v463 = vpop.permute.xlu0 %462
  %v465 = vsel %vm81, %v463, 0.0
  %v467 = vlaneseq
  %v468 = vshrl.u32 %v467, 7
  %v469 = vsub.s32 0, %v468
  %v470 = vrot.slane %v79, %v469
  %v473 = vsel %vm362, %v465, 0
  %475 = vmatprep.subr.mxu0 0.0
  %476 = vmatpush1.msra.mxu0 %v70
  %477 = vmatprep.subr.mxu0 0.0
  %478 = vmatpush1.msra.mxu0 %v71
  %479 = vmatprep.subr.mxu0 0.0
  %480 = vmatpush1.msra.mxu0 %v72
  %481 = vmatprep.subr.mxu0 0.0
  %482 = vmatpush1.msra.mxu0 %v73
  %483 = vmatprep.subr.mxu0 0.0
  %484 = vmatpush1.msra.mxu0 %v74
  %485 = vmatprep.subr.mxu0 0.0
  %486 = vmatpush1.msra.mxu0 %v75
  %487 = vmatprep.subr.mxu0 0.0
  %488 = vmatpush1.msra.mxu0 %v76
  %489 = vmatprep.subr.mxu0 0.0
  %490 = vmatpush1.msra.mxu0 %v77
  %491 = vmatprep.subr.mxu0 0.0
  %492 = vmatpush1.msra.mxu0 0.0
  %493 = vmatprep.subr.mxu0 0.0
  %494 = vmatpush1.msra.mxu0 0.0
  %495 = vmatprep.subr.mxu0 0.0
  %496 = vmatpush1.msra.mxu0 0.0
  %497 = vmatprep.subr.mxu0 0.0
  %498 = vmatpush1.msra.mxu0 0.0
  %499 = vmatprep.subr.mxu0 0.0
  %500 = vmatpush1.msra.mxu0 0.0
  %501 = vmatprep.subr.mxu0 0.0
  %502 = vmatpush1.msra.mxu0 0.0
  %503 = vmatprep.subr.mxu0 0.0
  %504 = vmatpush1.msra.mxu0 0.0
  %505 = vmatprep.subr.mxu0 0.0
  %506 = vmatpush1.msra.mxu0 0.0
  %507 = vmatprep.subr.mxu0 0.0
  %508 = vmatpush1.msra.mxu0 0.0
  %509 = vmatprep.subr.mxu0 0.0
  %510 = vmatpush1.msra.mxu0 0.0
  %511 = vmatprep.subr.mxu0 0.0
  %512 = vmatpush1.msra.mxu0 0.0
  %513 = vmatprep.subr.mxu0 0.0
  %514 = vmatpush1.msra.mxu0 0.0
  %515 = vmatprep.subr.mxu0 0.0
  %516 = vmatpush1.msra.mxu0 0.0
  %517 = vmatprep.subr.mxu0 0.0
  %518 = vmatpush1.msra.mxu0 0.0
  %519 = vmatprep.subr.mxu0 0.0
  %520 = vmatpush1.msra.mxu0 0.0
  %521 = vmatprep.subr.mxu0 0.0
  %522 = vmatpush1.msra.mxu0 0.0
  %523 = vmatprep.subr.mxu0 0.0
  %524 = vmatpush1.msra.mxu0 0.0
  %525 = vmatprep.subr.mxu0 0.0
  %526 = vmatpush1.msra.mxu0 0.0
  %527 = vmatprep.subr.mxu0 0.0
  %528 = vmatpush1.msra.mxu0 0.0
  %529 = vmatprep.subr.mxu0 0.0
  %530 = vmatpush1.msra.mxu0 0.0
  %531 = vmatprep.subr.mxu0 0.0
  %532 = vmatpush1.msra.mxu0 0.0
  %533 = vmatprep.subr.mxu0 0.0
  %534 = vmatpush1.msra.mxu0 0.0
  %535 = vmatprep.subr.mxu0 0.0
  %536 = vmatpush1.msra.mxu0 0.0
  %537 = vmatprep.subr.mxu0 0.0
  %538 = vmatpush1.msra.mxu0 0.0
  %539 = vmatprep.mubr.f32.mxu0 0.0
  %540 = vmatmul.mubr.f32.gmra.mrb[0].mxu0 %v473
  %v541 = vpop.f32.mrb[0].mxu0
  %v542 = vadd.f32 %v470, %v541
  %v543 = vpop.f32.mrb[0].mxu0
  %544 = vdwg.mxu0
  %v545 = vxor.u32 %v542, 2147483648
  %v546 = vmul.f32 %v545, 1.442695
  %v547 = vpow.pop %v546
  %v548 = vadd.f32 %v547, 1.0
  %v549 = vrcp.pop %v548
  %v550 = vmul.f32 1.0, %v549
  %552 = vrot.lane.b32.xlu0 %v542, 32
  %v553 = vpop.permute.xlu0 %552
  %v555 = vmul.f32 %v550, %v553
  %557 = vrot.lane.b32.xlu0 %v555, 64
  %v558 = vpop.permute.xlu0 %557
  %v560 = vadd.f32 %v542, %v558
  %v561 = vtanh.pop %v560
  %v562 = vsub.f32 1.0, %v550
  %564 = vrot.lane.b32.xlu0 %v561, 96
  %v565 = vpop.permute.xlu0 %564
  %v567 = vmul.f32 %v562, %v565
  %v568 = vmul.f32 %v550, 0.0
  %v569 = vadd.f32 %v567, %v568
  %s570 = scalar_lea.vmem %s0, 8
  %v571 = vld [vmem:[%s570] sm:$0xff]
  %573 = vrot.lane.b32.xlu0 %v569, 96
  %v574 = vpop.permute.xlu0 %573
  %v575 = vsel %vm81, %v574, 0
  %577 = vmatprep.subr.mxu0 0.0
  %578 = vmatpush1.msra.mxu0 %v40
  %579 = vmatprep.subr.mxu0 0.0
  %580 = vmatpush1.msra.mxu0 %v41
  %581 = vmatprep.subr.mxu0 0.0
  %582 = vmatpush1.msra.mxu0 %v42
  %583 = vmatprep.subr.mxu0 0.0
  %584 = vmatpush1.msra.mxu0 %v43
  %585 = vmatprep.subr.mxu0 0.0
  %586 = vmatpush1.msra.mxu0 0.0
  %587 = vmatprep.subr.mxu0 0.0
  %588 = vmatpush1.msra.mxu0 0.0
  %589 = vmatprep.subr.mxu0 0.0
  %590 = vmatpush1.msra.mxu0 0.0
  %591 = vmatprep.subr.mxu0 0.0
  %592 = vmatpush1.msra.mxu0 0.0
  %593 = vmatprep.subr.mxu0 0.0
  %594 = vmatpush1.msra.mxu0 0.0
  %595 = vmatprep.subr.mxu0 0.0
  %596 = vmatpush1.msra.mxu0 0.0
  %597 = vmatprep.subr.mxu0 0.0
  %598 = vmatpush1.msra.mxu0 0.0
  %599 = vmatprep.subr.mxu0 0.0
  %600 = vmatpush1.msra.mxu0 0.0
  %601 = vmatprep.subr.mxu0 0.0
  %602 = vmatpush1.msra.mxu0 0.0
  %603 = vmatprep.subr.mxu0 0.0
  %604 = vmatpush1.msra.mxu0 0.0
  %605 = vmatprep.subr.mxu0 0.0
  %606 = vmatpush1.msra.mxu0 0.0
  %607 = vmatprep.subr.mxu0 0.0
  %608 = vmatpush1.msra.mxu0 0.0
  %609 = vmatprep.subr.mxu0 0.0
  %610 = vmatpush1.msra.mxu0 0.0
  %611 = vmatprep.subr.mxu0 0.0
  %612 = vmatpush1.msra.mxu0 0.0
  %613 = vmatprep.subr.mxu0 0.0
  %614 = vmatpush1.msra.mxu0 0.0
  %615 = vmatprep.subr.mxu0 0.0
  %616 = vmatpush1.msra.mxu0 0.0
  %617 = vmatprep.subr.mxu0 0.0
  %618 = vmatpush1.msra.mxu0 0.0
  %619 = vmatprep.subr.mxu0 0.0
  %620 = vmatpush1.msra.mxu0 0.0
  %621 = vmatprep.subr.mxu0 0.0
  %622 = vmatpush1.msra.mxu0 0.0
  %623 = vmatprep.subr.mxu0 0.0
  %624 = vmatpush1.msra.mxu0 0.0
  %625 = vmatprep.subr.mxu0 0.0
  %626 = vmatpush1.msra.mxu0 0.0
  %627 = vmatprep.subr.mxu0 0.0
  %628 = vmatpush1.msra.mxu0 0.0
  %629 = vmatprep.subr.mxu0 0.0
  %630 = vmatpush1.msra.mxu0 0.0
  %631 = vmatprep.subr.mxu0 0.0
  %632 = vmatpush1.msra.mxu0 0.0
  %633 = vmatprep.subr.mxu0 0.0
  %634 = vmatpush1.msra.mxu0 0.0
  %635 = vmatprep.subr.mxu0 0.0
  %636 = vmatpush1.msra.mxu0 0.0
  %637 = vmatprep.subr.mxu0 0.0
  %638 = vmatpush1.msra.mxu0 0.0
  %639 = vmatprep.subr.mxu0 0.0
  %640 = vmatpush1.msra.mxu0 0.0
  %641 = vmatprep.mubr.f32.mxu0 0.0
  %642 = vmatmul.mubr.f32.gmra.mrb[0].mxu0 %v575
  %v643 = vpop.f32.mrb[0].mxu0
  %v644 = vadd.f32 0.0, %v643
  %v645 = vpop.f32.mrb[0].mxu0
  %646 = vdwg.mxu0
  %v647 = vadd.f32 %v571, %v644
  %v648 = vmax.f32 %v647, 0.0
  %v650 = vsel %vm163, %v648, 0
  %652 = vmatprep.subr.mxu0 0.0
  %653 = vmatpush1.msra.mxu0 %v44
  %654 = vmatprep.subr.mxu0 0.0
  %655 = vmatpush1.msra.mxu0 %v45
  %656 = vmatprep.subr.mxu0 0.0
  %657 = vmatpush1.msra.mxu0 %v46
  %658 = vmatprep.subr.mxu0 0.0
  %659 = vmatpush1.msra.mxu0 %v47
  %660 = vmatprep.subr.mxu0 0.0
  %661 = vmatpush1.msra.mxu0 %v48
  %662 = vmatprep.subr.mxu0 0.0
  %663 = vmatpush1.msra.mxu0 %v49
  %664 = vmatprep.subr.mxu0 0.0
  %665 = vmatpush1.msra.mxu0 %v50
  %666 = vmatprep.subr.mxu0 0.0
  %667 = vmatpush1.msra.mxu0 %v51
  %668 = vmatprep.subr.mxu0 0.0
  %669 = vmatpush1.msra.mxu0 %v52
  %670 = vmatprep.subr.mxu0 0.0
  %671 = vmatpush1.msra.mxu0 %v53
  %672 = vmatprep.subr.mxu0 0.0
  %673 = vmatpush1.msra.mxu0 %v54
  %674 = vmatprep.subr.mxu0 0.0
  %675 = vmatpush1.msra.mxu0 %v55
  %676 = vmatprep.subr.mxu0 0.0
  %677 = vmatpush1.msra.mxu0 0.0
  %678 = vmatprep.subr.mxu0 0.0
  %679 = vmatpush1.msra.mxu0 0.0
  %680 = vmatprep.subr.mxu0 0.0
  %681 = vmatpush1.msra.mxu0 0.0
  %682 = vmatprep.subr.mxu0 0.0
  %683 = vmatpush1.msra.mxu0 0.0
  %684 = vmatprep.subr.mxu0 0.0
  %685 = vmatpush1.msra.mxu0 0.0
  %686 = vmatprep.subr.mxu0 0.0
  %687 = vmatpush1.msra.mxu0 0.0
  %688 = vmatprep.subr.mxu0 0.0
  %689 = vmatpush1.msra.mxu0 0.0
  %690 = vmatprep.subr.mxu0 0.0
  %691 = vmatpush1.msra.mxu0 0.0
  %692 = vmatprep.subr.mxu0 0.0
  %693 = vmatpush1.msra.mxu0 0.0
  %694 = vmatprep.subr.mxu0 0.0
  %695 = vmatpush1.msra.mxu0 0.0
  %696 = vmatprep.subr.mxu0 0.0
  %697 = vmatpush1.msra.mxu0 0.0
  %698 = vmatprep.subr.mxu0 0.0
  %699 = vmatpush1.msra.mxu0 0.0
  %700 = vmatprep.subr.mxu0 0.0
  %701 = vmatpush1.msra.mxu0 0.0
  %702 = vmatprep.subr.mxu0 0.0
  %703 = vmatpush1.msra.mxu0 0.0
  %704 = vmatprep.subr.mxu0 0.0
  %705 = vmatpush1.msra.mxu0 0.0
  %706 = vmatprep.subr.mxu0 0.0
  %707 = vmatpush1.msra.mxu0 0.0
  %708 = vmatprep.subr.mxu0 0.0
  %709 = vmatpush1.msra.mxu0 0.0
  %710 = vmatprep.subr.mxu0 0.0
  %711 = vmatpush1.msra.mxu0 0.0
  %712 = vmatprep.subr.mxu0 0.0
  %713 = vmatpush1.msra.mxu0 0.0
  %714 = vmatprep.subr.mxu0 0.0
  %715 = vmatpush1.msra.mxu0 0.0
  %716 = vmatprep.mubr.f32.mxu0 0.0
  %717 = vmatmul.mubr.f32.gmra.mrb[0].mxu0 %v650
  %v718 = vpop.f32.mrb[0].mxu0
  %v719 = vadd.f32 %v161, %v718
  %v720 = vpop.f32.mrb[0].mxu0
  %721 = vdwg.mxu0
  %v722 = vmax.f32 %v719, 0.0
  %v723 = vmul.f32 %v722, %v242
  %725 = vrot.lane.b32.xlu0 %v723, 112
  %v726 = vpop.permute.xlu0 %725
  %v728 = vadd.f32 %v723, %v726
  %729 = vrot.lane.b32.xlu0 %v723, 96
  %v730 = vpop.permute.xlu0 %729
  %v732 = vadd.f32 %v728, %v730
  %v733 = vmax.f32 %v732, 0.0
  %v734 = vand.u32 2147483647, %v732
  %v735 = vsub.f32 0.0, %v734
  %v736 = vmul.f32 %v735, 1.442695
  %v737 = vpow.pop %v736
  %v738 = vadd.f32 %v737, 1.0
  %v739 = vlog2.pop %v738
  %v740 = vmul.f32 %v739, 0.6931472
  %v741 = vmul.f32 -0.5, %v737
  %v742 = vadd.f32 %v741, 1.0
  %v743 = vmul.f32 %v742, %v737
  %v744 = vand.u32 2147483647, %v737
  %vm745 = vcmp.lt.f32.partialorder %v744, 0.0004427343
  %v746 = vsel %vm745, %v743, %v740
  %v747 = vadd.f32 %v733, %v746
  %750 = vrot.lane.b32.xlu0 %v732, 32
  %v751 = vpop.permute.xlu0 %750
  %v753 = vsel %vm81, %v574, %v751
  %s754 = scalar_lea.vmem %s11, 8
  %755 = vst.msk [vmem:[%s754] sm:$0xff] %vm274, %v753
  %s756 = scalar_lea.vmem %s2, 8
  %v757 = vld [vmem:[%s756] sm:$0xff]
  %v758 = vmul.f32 %v757, %v747
  %v759 = vadd.f32 %v758, %v733
  %v761 = vsel %vm285, %v759, 0
  %763 = vmatprep.subr.mxu0 0.0
  %764 = vmatpush1.msra.mxu0 %v58
  %765 = vmatprep.subr.mxu0 0.0
  %766 = vmatpush1.msra.mxu0 %v59
  %767 = vmatprep.subr.mxu0 0.0
  %768 = vmatpush1.msra.mxu0 0.0
  %769 = vmatprep.subr.mxu0 0.0
  %770 = vmatpush1.msra.mxu0 0.0
  %771 = vmatprep.subr.mxu0 0.0
  %772 = vmatpush1.msra.mxu0 0.0
  %773 = vmatprep.subr.mxu0 0.0
  %774 = vmatpush1.msra.mxu0 0.0
  %775 = vmatprep.subr.mxu0 0.0
  %776 = vmatpush1.msra.mxu0 0.0
  %777 = vmatprep.subr.mxu0 0.0
  %778 = vmatpush1.msra.mxu0 0.0
  %779 = vmatprep.subr.mxu0 0.0
  %780 = vmatpush1.msra.mxu0 0.0
  %781 = vmatprep.subr.mxu0 0.0
  %782 = vmatpush1.msra.mxu0 0.0
  %783 = vmatprep.subr.mxu0 0.0
  %784 = vmatpush1.msra.mxu0 0.0
  %785 = vmatprep.subr.mxu0 0.0
  %786 = vmatpush1.msra.mxu0 0.0
  %787 = vmatprep.subr.mxu0 0.0
  %788 = vmatpush1.msra.mxu0 0.0
  %789 = vmatprep.subr.mxu0 0.0
  %790 = vmatpush1.msra.mxu0 0.0
  %791 = vmatprep.subr.mxu0 0.0
  %792 = vmatpush1.msra.mxu0 0.0
  %793 = vmatprep.subr.mxu0 0.0
  %794 = vmatpush1.msra.mxu0 0.0
  %795 = vmatprep.subr.mxu0 0.0
  %796 = vmatpush1.msra.mxu0 0.0
  %797 = vmatprep.subr.mxu0 0.0
  %798 = vmatpush1.msra.mxu0 0.0
  %799 = vmatprep.subr.mxu0 0.0
  %800 = vmatpush1.msra.mxu0 0.0
  %801 = vmatprep.subr.mxu0 0.0
  %802 = vmatpush1.msra.mxu0 0.0
  %803 = vmatprep.subr.mxu0 0.0
  %804 = vmatpush1.msra.mxu0 0.0
  %805 = vmatprep.subr.mxu0 0.0
  %806 = vmatpush1.msra.mxu0 0.0
  %807 = vmatprep.subr.mxu0 0.0
  %808 = vmatpush1.msra.mxu0 0.0
  %809 = vmatprep.subr.mxu0 0.0
  %810 = vmatpush1.msra.mxu0 0.0
  %811 = vmatprep.subr.mxu0 0.0
  %812 = vmatpush1.msra.mxu0 0.0
  %813 = vmatprep.subr.mxu0 0.0
  %814 = vmatpush1.msra.mxu0 0.0
  %815 = vmatprep.subr.mxu0 0.0
  %816 = vmatpush1.msra.mxu0 0.0
  %817 = vmatprep.subr.mxu0 0.0
  %818 = vmatpush1.msra.mxu0 0.0
  %819 = vmatprep.subr.mxu0 0.0
  %820 = vmatpush1.msra.mxu0 0.0
  %821 = vmatprep.subr.mxu0 0.0
  %822 = vmatpush1.msra.mxu0 0.0
  %823 = vmatprep.subr.mxu0 0.0
  %824 = vmatpush1.msra.mxu0 0.0
  %825 = vmatprep.subr.mxu0 0.0
  %826 = vmatpush1.msra.mxu0 0.0
  %827 = vmatprep.mubr.f32.mxu0 0.0
  %828 = vmatmul.mubr.f32.gmra.mrb[0].mxu0 %v761
  %v829 = vpop.f32.mrb[0].mxu0
  %v830 = vadd.f32 %v283, %v829
  %v831 = vpop.f32.mrb[0].mxu0
  %832 = vdwg.mxu0
  %v833 = vmax.f32 %v830, 0.0
  %s834 = scalar_lea.vmem %s1, 8
  %v835 = vld [vmem:[%s834] sm:$0xff]
  %v836 = vsel %vm81, %v833, %v460
  %v838 = vsel %vm362, %v836, 0
  %840 = vmatprep.subr.mxu0 0.0
  %841 = vmatpush1.msra.mxu0 %v61
  %842 = vmatprep.subr.mxu0 0.0
  %843 = vmatpush1.msra.mxu0 %v62
  %844 = vmatprep.subr.mxu0 0.0
  %845 = vmatpush1.msra.mxu0 %v63
  %846 = vmatprep.subr.mxu0 0.0
  %847 = vmatpush1.msra.mxu0 %v64
  %848 = vmatprep.subr.mxu0 0.0
  %849 = vmatpush1.msra.mxu0 %v65
  %850 = vmatprep.subr.mxu0 0.0
  %851 = vmatpush1.msra.mxu0 %v66
  %852 = vmatprep.subr.mxu0 0.0
  %853 = vmatpush1.msra.mxu0 %v67
  %854 = vmatprep.subr.mxu0 0.0
  %855 = vmatpush1.msra.mxu0 %v68
  %856 = vmatprep.subr.mxu0 0.0
  %857 = vmatpush1.msra.mxu0 0.0
  %858 = vmatprep.subr.mxu0 0.0
  %859 = vmatpush1.msra.mxu0 0.0
  %860 = vmatprep.subr.mxu0 0.0
  %861 = vmatpush1.msra.mxu0 0.0
  %862 = vmatprep.subr.mxu0 0.0
  %863 = vmatpush1.msra.mxu0 0.0
  %864 = vmatprep.subr.mxu0 0.0
  %865 = vmatpush1.msra.mxu0 0.0
  %866 = vmatprep.subr.mxu0 0.0
  %867 = vmatpush1.msra.mxu0 0.0
  %868 = vmatprep.subr.mxu0 0.0
  %869 = vmatpush1.msra.mxu0 0.0
  %870 = vmatprep.subr.mxu0 0.0
  %871 = vmatpush1.msra.mxu0 0.0
  %872 = vmatprep.subr.mxu0 0.0
  %873 = vmatpush1.msra.mxu0 0.0
  %874 = vmatprep.subr.mxu0 0.0
  %875 = vmatpush1.msra.mxu0 0.0
  %876 = vmatprep.subr.mxu0 0.0
  %877 = vmatpush1.msra.mxu0 0.0
  %878 = vmatprep.subr.mxu0 0.0
  %879 = vmatpush1.msra.mxu0 0.0
  %880 = vmatprep.subr.mxu0 0.0
  %881 = vmatpush1.msra.mxu0 0.0
  %882 = vmatprep.subr.mxu0 0.0
  %883 = vmatpush1.msra.mxu0 0.0
  %884 = vmatprep.subr.mxu0 0.0
  %885 = vmatpush1.msra.mxu0 0.0
  %886 = vmatprep.subr.mxu0 0.0
  %887 = vmatpush1.msra.mxu0 0.0
  %888 = vmatprep.subr.mxu0 0.0
  %889 = vmatpush1.msra.mxu0 0.0
  %890 = vmatprep.subr.mxu0 0.0
  %891 = vmatpush1.msra.mxu0 0.0
  %892 = vmatprep.subr.mxu0 0.0
  %893 = vmatpush1.msra.mxu0 0.0
  %894 = vmatprep.subr.mxu0 0.0
  %895 = vmatpush1.msra.mxu0 0.0
  %896 = vmatprep.subr.mxu0 0.0
  %897 = vmatpush1.msra.mxu0 0.0
  %898 = vmatprep.subr.mxu0 0.0
  %899 = vmatpush1.msra.mxu0 0.0
  %900 = vmatprep.subr.mxu0 0.0
  %901 = vmatpush1.msra.mxu0 0.0
  %902 = vmatprep.subr.mxu0 0.0
  %903 = vmatpush1.msra.mxu0 0.0
  %904 = vmatprep.mubr.f32.mxu0 0.0
  %905 = vmatmul.mubr.f32.gmra.mrb[0].mxu0 %v838
  %v906 = vpop.f32.mrb[0].mxu0
  %v907 = vadd.f32 %v835, %v906
  %v908 = vpop.f32.mrb[0].mxu0
  %909 = vdwg.mxu0
  %v910 = vxor.u32 %v907, 2147483648
  %v911 = vmul.f32 %v910, 1.442695
  %v912 = vpow.pop %v911
  %v913 = vadd.f32 %v912, 1.0
  %v914 = vrcp.pop %v913
  %v915 = vmul.f32 1.0, %v914
  %917 = vrot.lane.b32.xlu0 %v907, 32
  %v918 = vpop.permute.xlu0 %917
  %v920 = vmul.f32 %v915, %v918
  %922 = vrot.lane.b32.xlu0 %v920, 64
  %v923 = vpop.permute.xlu0 %922
  %v925 = vadd.f32 %v907, %v923
  %v926 = vtanh.pop %v925
  %v927 = vsub.f32 1.0, %v915
  %929 = vrot.lane.b32.xlu0 %v926, 96
  %v930 = vpop.permute.xlu0 %929
  %v932 = vmul.f32 %v927, %v930
  %v933 = vmul.f32 %v915, %v460
  %v934 = vadd.f32 %v932, %v933
  %936 = vrot.lane.b32.xlu0 %v934, 96
  %v937 = vpop.permute.xlu0 %936
  %v939 = vsel %vm81, %v937, %v569
  %v941 = vsel %vm362, %v939, 0
  %943 = vmatprep.subr.mxu0 0.0
  %944 = vmatpush1.msra.mxu0 %v70
  %945 = vmatprep.subr.mxu0 0.0
  %946 = vmatpush1.msra.mxu0 %v71
  %947 = vmatprep.subr.mxu0 0.0
  %948 = vmatpush1.msra.mxu0 %v72
  %949 = vmatprep.subr.mxu0 0.0
  %950 = vmatpush1.msra.mxu0 %v73
  %951 = vmatprep.subr.mxu0 0.0
  %952 = vmatpush1.msra.mxu0 %v74
  %953 = vmatprep.subr.mxu0 0.0
  %954 = vmatpush1.msra.mxu0 %v75
  %955 = vmatprep.subr.mxu0 0.0
  %956 = vmatpush1.msra.mxu0 %v76
  %957 = vmatprep.subr.mxu0 0.0
  %958 = vmatpush1.msra.mxu0 %v77
  %959 = vmatprep.subr.mxu0 0.0
  %960 = vmatpush1.msra.mxu0 0.0
  %961 = vmatprep.subr.mxu0 0.0
  %962 = vmatpush1.msra.mxu0 0.0
  %963 = vmatprep.subr.mxu0 0.0
  %964 = vmatpush1.msra.mxu0 0.0
  %965 = vmatprep.subr.mxu0 0.0
  %966 = vmatpush1.msra.mxu0 0.0
  %967 = vmatprep.subr.mxu0 0.0
  %968 = vmatpush1.msra.mxu0 0.0
  %969 = vmatprep.subr.mxu0 0.0
  %970 = vmatpush1.msra.mxu0 0.0
  %971 = vmatprep.subr.mxu0 0.0
  %972 = vmatpush1.msra.mxu0 0.0
  %973 = vmatprep.subr.mxu0 0.0
  %974 = vmatpush1.msra.mxu0 0.0
  %975 = vmatprep.subr.mxu0 0.0
  %976 = vmatpush1.msra.mxu0 0.0
  %977 = vmatprep.subr.mxu0 0.0
  %978 = vmatpush1.msra.mxu0 0.0
  %979 = vmatprep.subr.mxu0 0.0
  %980 = vmatpush1.msra.mxu0 0.0
  %981 = vmatprep.subr.mxu0 0.0
  %982 = vmatpush1.msra.mxu0 0.0
  %983 = vmatprep.subr.mxu0 0.0
  %984 = vmatpush1.msra.mxu0 0.0
  %985 = vmatprep.subr.mxu0 0.0
  %986 = vmatpush1.msra.mxu0 0.0
  %987 = vmatprep.subr.mxu0 0.0
  %988 = vmatpush1.msra.mxu0 0.0
  %989 = vmatprep.subr.mxu0 0.0
  %990 = vmatpush1.msra.mxu0 0.0
  %991 = vmatprep.subr.mxu0 0.0
  %992 = vmatpush1.msra.mxu0 0.0
  %993 = vmatprep.subr.mxu0 0.0
  %994 = vmatpush1.msra.mxu0 0.0
  %995 = vmatprep.subr.mxu0 0.0
  %996 = vmatpush1.msra.mxu0 0.0
  %997 = vmatprep.subr.mxu0 0.0
  %998 = vmatpush1.msra.mxu0 0.0
  %999 = vmatprep.subr.mxu0 0.0
  %1000 = vmatpush1.msra.mxu0 0.0
  %1001 = vmatprep.subr.mxu0 0.0
  %1002 = vmatpush1.msra.mxu0 0.0
  %1003 = vmatprep.subr.mxu0 0.0
  %1004 = vmatpush1.msra.mxu0 0.0
  %1005 = vmatprep.subr.mxu0 0.0
  %1006 = vmatpush1.msra.mxu0 0.0
  %1007 = vmatprep.mubr.f32.mxu0 0.0
  %1008 = vmatmul.mubr.f32.gmra.mrb[0].mxu0 %v941
  %v1009 = vpop.f32.mrb[0].mxu0
  %v1010 = vadd.f32 %v470, %v1009
  %v1011 = vpop.f32.mrb[0].mxu0
  %1012 = vdwg.mxu0
  %v1013 = vxor.u32 %v1010, 2147483648
  %v1014 = vmul.f32 %v1013, 1.442695
  %v1015 = vpow.pop %v1014
  %v1016 = vadd.f32 %v1015, 1.0
  %v1017 = vrcp.pop %v1016
  %v1018 = vmul.f32 1.0, %v1017
  %1020 = vrot.lane.b32.xlu0 %v1010, 32
  %v1021 = vpop.permute.xlu0 %1020
  %v1023 = vmul.f32 %v1018, %v1021
  %1025 = vrot.lane.b32.xlu0 %v1023, 64
  %v1026 = vpop.permute.xlu0 %1025
  %v1028 = vadd.f32 %v1010, %v1026
  %v1029 = vtanh.pop %v1028
  %v1030 = vsub.f32 1.0, %v1018
  %1032 = vrot.lane.b32.xlu0 %v1029, 96
  %v1033 = vpop.permute.xlu0 %1032
  %v1035 = vmul.f32 %v1030, %v1033
  %v1036 = vmul.f32 %v1018, %v569
  %v1037 = vadd.f32 %v1035, %v1036
  %s1038 = scalar_lea.vmem %s0, 16
  %v1039 = vld [vmem:[%s1038] sm:$0xff]
  %1041 = vrot.lane.b32.xlu0 %v1037, 96
  %v1042 = vpop.permute.xlu0 %1041
  %v1043 = vsel %vm81, %v1042, 0
  %1045 = vmatprep.subr.mxu0 0.0
  %1046 = vmatpush1.msra.mxu0 %v40
  %1047 = vmatprep.subr.mxu0 0.0
  %1048 = vmatpush1.msra.mxu0 %v41
  %1049 = vmatprep.subr.mxu0 0.0
  %1050 = vmatpush1.msra.mxu0 %v42
  %1051 = vmatprep.subr.mxu0 0.0
  %1052 = vmatpush1.msra.mxu0 %v43
  %1053 = vmatprep.subr.mxu0 0.0
  %1054 = vmatpush1.msra.mxu0 0.0
  %1055 = vmatprep.subr.mxu0 0.0
  %1056 = vmatpush1.msra.mxu0 0.0
  %1057 = vmatprep.subr.mxu0 0.0
  %1058 = vmatpush1.msra.mxu0 0.0
  %1059 = vmatprep.subr.mxu0 0.0
  %1060 = vmatpush1.msra.mxu0 0.0
  %1061 = vmatprep.subr.mxu0 0.0
  %1062 = vmatpush1.msra.mxu0 0.0
  %1063 = vmatprep.subr.mxu0 0.0
  %1064 = vmatpush1.msra.mxu0 0.0
  %1065 = vmatprep.subr.mxu0 0.0
  %1066 = vmatpush1.msra.mxu0 0.0
  %1067 = vmatprep.subr.mxu0 0.0
  %1068 = vmatpush1.msra.mxu0 0.0
  %1069 = vmatprep.subr.mxu0 0.0
  %1070 = vmatpush1.msra.mxu0 0.0
  %1071 = vmatprep.subr.mxu0 0.0
  %1072 = vmatpush1.msra.mxu0 0.0
  %1073 = vmatprep.subr.mxu0 0.0
  %1074 = vmatpush1.msra.mxu0 0.0
  %1075 = vmatprep.subr.mxu0 0.0
  %1076 = vmatpush1.msra.mxu0 0.0
  %1077 = vmatprep.subr.mxu0 0.0
  %1078 = vmatpush1.msra.mxu0 0.0
  %1079 = vmatprep.subr.mxu0 0.0
  %1080 = vmatpush1.msra.mxu0 0.0
  %1081 = vmatprep.subr.mxu0 0.0
  %1082 = vmatpush1.msra.mxu0 0.0
  %1083 = vmatprep.subr.mxu0 0.0
  %1084 = vmatpush1.msra.mxu0 0.0
  %1085 = vmatprep.subr.mxu0 0.0
  %1086 = vmatpush1.msra.mxu0 0.0
  %1087 = vmatprep.subr.mxu0 0.0
  %1088 = vmatpush1.msra.mxu0 0.0
  %1089 = vmatprep.subr.mxu0 0.0
  %1090 = vmatpush1.msra.mxu0 0.0
  %1091 = vmatprep.subr.mxu0 0.0
  %1092 = vmatpush1.msra.mxu0 0.0
  %1093 = vmatprep.subr.mxu0 0.0
  %1094 = vmatpush1.msra.mxu0 0.0
  %1095 = vmatprep.subr.mxu0 0.0
  %1096 = vmatpush1.msra.mxu0 0.0
  %1097 = vmatprep.subr.mxu0 0.0
  %1098 = vmatpush1.msra.mxu0 0.0
  %1099 = vmatprep.subr.mxu0 0.0
  %1100 = vmatpush1.msra.mxu0 0.0
  %1101 = vmatprep.subr.mxu0 0.0
  %1102 = vmatpush1.msra.mxu0 0.0
  %1103 = vmatprep.subr.mxu0 0.0
  %1104 = vmatpush1.msra.mxu0 0.0
  %1105 = vmatprep.subr.mxu0 0.0
  %1106 = vmatpush1.msra.mxu0 0.0
  %1107 = vmatprep.subr.mxu0 0.0
  %1108 = vmatpush1.msra.mxu0 0.0
  %1109 = vmatprep.mubr.f32.mxu0 0.0
  %1110 = vmatmul.mubr.f32.gmra.mrb[0].mxu0 %v1043
  %v1111 = vpop.f32.mrb[0].mxu0
  %v1112 = vadd.f32 0.0, %v1111
  %v1113 = vpop.f32.mrb[0].mxu0
  %1114 = vdwg.mxu0
  %v1115 = vadd.f32 %v1039, %v1112
  %v1116 = vmax.f32 %v1115, 0.0
  %v1118 = vsel %vm163, %v1116, 0
  %1120 = vmatprep.subr.mxu0 0.0
  %1121 = vmatpush1.msra.mxu0 %v44
  %1122 = vmatprep.subr.mxu0 0.0
  %1123 = vmatpush1.msra.mxu0 %v45
  %1124 = vmatprep.subr.mxu0 0.0
  %1125 = vmatpush1.msra.mxu0 %v46
  %1126 = vmatprep.subr.mxu0 0.0
  %1127 = vmatpush1.msra.mxu0 %v47
  %1128 = vmatprep.subr.mxu0 0.0
  %1129 = vmatpush1.msra.mxu0 %v48
  %1130 = vmatprep.subr.mxu0 0.0
  %1131 = vmatpush1.msra.mxu0 %v49
  %1132 = vmatprep.subr.mxu0 0.0
  %1133 = vmatpush1.msra.mxu0 %v50
  %1134 = vmatprep.subr.mxu0 0.0
  %1135 = vmatpush1.msra.mxu0 %v51
  %1136 = vmatprep.subr.mxu0 0.0
  %1137 = vmatpush1.msra.mxu0 %v52
  %1138 = vmatprep.subr.mxu0 0.0
  %1139 = vmatpush1.msra.mxu0 %v53
  %1140 = vmatprep.subr.mxu0 0.0
  %1141 = vmatpush1.msra.mxu0 %v54
  %1142 = vmatprep.subr.mxu0 0.0
  %1143 = vmatpush1.msra.mxu0 %v55
  %1144 = vmatprep.subr.mxu0 0.0
  %1145 = vmatpush1.msra.mxu0 0.0
  %1146 = vmatprep.subr.mxu0 0.0
  %1147 = vmatpush1.msra.mxu0 0.0
  %1148 = vmatprep.subr.mxu0 0.0
  %1149 = vmatpush1.msra.mxu0 0.0
  %1150 = vmatprep.subr.mxu0 0.0
  %1151 = vmatpush1.msra.mxu0 0.0
  %1152 = vmatprep.subr.mxu0 0.0
  %1153 = vmatpush1.msra.mxu0 0.0
  %1154 = vmatprep.subr.mxu0 0.0
  %1155 = vmatpush1.msra.mxu0 0.0
  %1156 = vmatprep.subr.mxu0 0.0
  %1157 = vmatpush1.msra.mxu0 0.0
  %1158 = vmatprep.subr.mxu0 0.0
  %1159 = vmatpush1.msra.mxu0 0.0
  %1160 = vmatprep.subr.mxu0 0.0
  %1161 = vmatpush1.msra.mxu0 0.0
  %1162 = vmatprep.subr.mxu0 0.0
  %1163 = vmatpush1.msra.mxu0 0.0
  %1164 = vmatprep.subr.mxu0 0.0
  %1165 = vmatpush1.msra.mxu0 0.0
  %1166 = vmatprep.subr.mxu0 0.0
  %1167 = vmatpush1.msra.mxu0 0.0
  %1168 = vmatprep.subr.mxu0 0.0
  %1169 = vmatpush1.msra.mxu0 0.0
  %1170 = vmatprep.subr.mxu0 0.0
  %1171 = vmatpush1.msra.mxu0 0.0
  %1172 = vmatprep.subr.mxu0 0.0
  %1173 = vmatpush1.msra.mxu0 0.0
  %1174 = vmatprep.subr.mxu0 0.0
  %1175 = vmatpush1.msra.mxu0 0.0
  %1176 = vmatprep.subr.mxu0 0.0
  %1177 = vmatpush1.msra.mxu0 0.0
  %1178 = vmatprep.subr.mxu0 0.0
  %1179 = vmatpush1.msra.mxu0 0.0
  %1180 = vmatprep.subr.mxu0 0.0
  %1181 = vmatpush1.msra.mxu0 0.0
  %1182 = vmatprep.subr.mxu0 0.0
  %1183 = vmatpush1.msra.mxu0 0.0
  %1184 = vmatprep.mubr.f32.mxu0 0.0
  %1185 = vmatmul.mubr.f32.gmra.mrb[0].mxu0 %v1118
  %v1186 = vpop.f32.mrb[0].mxu0
  %v1187 = vadd.f32 %v161, %v1186
  %v1188 = vpop.f32.mrb[0].mxu0
  %1189 = vdwg.mxu0
  %v1190 = vmax.f32 %v1187, 0.0
  %v1191 = vmul.f32 %v1190, %v242
  %1193 = vrot.lane.b32.xlu0 %v1191, 112
  %v1194 = vpop.permute.xlu0 %1193
  %v1196 = vadd.f32 %v1191, %v1194
  %1197 = vrot.lane.b32.xlu0 %v1191, 96
  %v1198 = vpop.permute.xlu0 %1197
  %v1200 = vadd.f32 %v1196, %v1198
  %v1201 = vmax.f32 %v1200, 0.0
  %v1202 = vand.u32 2147483647, %v1200
  %v1203 = vsub.f32 0.0, %v1202
  %v1204 = vmul.f32 %v1203, 1.442695
  %v1205 = vpow.pop %v1204
  %v1206 = vadd.f32 %v1205, 1.0
  %v1207 = vlog2.pop %v1206
  %v1208 = vmul.f32 %v1207, 0.6931472
  %v1209 = vmul.f32 -0.5, %v1205
  %v1210 = vadd.f32 %v1209, 1.0
  %v1211 = vmul.f32 %v1210, %v1205
  %v1212 = vand.u32 2147483647, %v1205
  %vm1213 = vcmp.lt.f32.partialorder %v1212, 0.0004427343
  %v1214 = vsel %vm1213, %v1211, %v1208
  %v1215 = vadd.f32 %v1201, %v1214
  %1218 = vrot.lane.b32.xlu0 %v1200, 32
  %v1219 = vpop.permute.xlu0 %1218
  %v1221 = vsel %vm81, %v1042, %v1219
  %s1222 = scalar_lea.vmem %s11, 16
  %1223 = vst.msk [vmem:[%s1222] sm:$0xff] %vm274, %v1221
  %s1224 = scalar_lea.vmem %s2, 16
  %v1225 = vld [vmem:[%s1224] sm:$0xff]
  %v1226 = vmul.f32 %v1225, %v1215
  %v1227 = vadd.f32 %v1226, %v1201
  %v1229 = vsel %vm285, %v1227, 0
  %1231 = vmatprep.subr.mxu0 0.0
  %1232 = vmatpush1.msra.mxu0 %v58
  %1233 = vmatprep.subr.mxu0 0.0
  %1234 = vmatpush1.msra.mxu0 %v59
  %1235 = vmatprep.subr.mxu0 0.0
  %1236 = vmatpush1.msra.mxu0 0.0
  %1237 = vmatprep.subr.mxu0 0.0
  %1238 = vmatpush1.msra.mxu0 0.0
  %1239 = vmatprep.subr.mxu0 0.0
  %1240 = vmatpush1.msra.mxu0 0.0
  %1241 = vmatprep.subr.mxu0 0.0
  %1242 = vmatpush1.msra.mxu0 0.0
  %1243 = vmatprep.subr.mxu0 0.0
  %1244 = vmatpush1.msra.mxu0 0.0
  %1245 = vmatprep.subr.mxu0 0.0
  %1246 = vmatpush1.msra.mxu0 0.0
  %1247 = vmatprep.subr.mxu0 0.0
  %1248 = vmatpush1.msra.mxu0 0.0
  %1249 = vmatprep.subr.mxu0 0.0
  %1250 = vmatpush1.msra.mxu0 0.0
  %1251 = vmatprep.subr.mxu0 0.0
  %1252 = vmatpush1.msra.mxu0 0.0
  %1253 = vmatprep.subr.mxu0 0.0
  %1254 = vmatpush1.msra.mxu0 0.0
  %1255 = vmatprep.subr.mxu0 0.0
  %1256 = vmatpush1.msra.mxu0 0.0
  %1257 = vmatprep.subr.mxu0 0.0
  %1258 = vmatpush1.msra.mxu0 0.0
  %1259 = vmatprep.subr.mxu0 0.0
  %1260 = vmatpush1.msra.mxu0 0.0
  %1261 = vmatprep.subr.mxu0 0.0
  %1262 = vmatpush1.msra.mxu0 0.0
  %1263 = vmatprep.subr.mxu0 0.0
  %1264 = vmatpush1.msra.mxu0 0.0
  %1265 = vmatprep.subr.mxu0 0.0
  %1266 = vmatpush1.msra.mxu0 0.0
  %1267 = vmatprep.subr.mxu0 0.0
  %1268 = vmatpush1.msra.mxu0 0.0
  %1269 = vmatprep.subr.mxu0 0.0
  %1270 = vmatpush1.msra.mxu0 0.0
  %1271 = vmatprep.subr.mxu0 0.0
  %1272 = vmatpush1.msra.mxu0 0.0
  %1273 = vmatprep.subr.mxu0 0.0
  %1274 = vmatpush1.msra.mxu0 0.0
  %1275 = vmatprep.subr.mxu0 0.0
  %1276 = vmatpush1.msra.mxu0 0.0
  %1277 = vmatprep.subr.mxu0 0.0
  %1278 = vmatpush1.msra.mxu0 0.0
  %1279 = vmatprep.subr.mxu0 0.0
  %1280 = vmatpush1.msra.mxu0 0.0
  %1281 = vmatprep.subr.mxu0 0.0
  %1282 = vmatpush1.msra.mxu0 0.0
  %1283 = vmatprep.subr.mxu0 0.0
  %1284 = vmatpush1.msra.mxu0 0.0
  %1285 = vmatprep.subr.mxu0 0.0
  %1286 = vmatpush1.msra.mxu0 0.0
  %1287 = vmatprep.subr.mxu0 0.0
  %1288 = vmatpush1.msra.mxu0 0.0
  %1289 = vmatprep.subr.mxu0 0.0
  %1290 = vmatpush1.msra.mxu0 0.0
  %1291 = vmatprep.subr.mxu0 0.0
  %1292 = vmatpush1.msra.mxu0 0.0
  %1293 = vmatprep.subr.mxu0 0.0
  %1294 = vmatpush1.msra.mxu0 0.0
  %1295 = vmatprep.mubr.f32.mxu0 0.0
  %1296 = vmatmul.mubr.f32.gmra.mrb[0].mxu0 %v1229
  %v1297 = vpop.f32.mrb[0].mxu0
  %v1298 = vadd.f32 %v283, %v1297
  %v1299 = vpop.f32.mrb[0].mxu0
  %1300 = vdwg.mxu0
  %v1301 = vmax.f32 %v1298, 0.0
  %s1302 = scalar_lea.vmem %s1, 16
  %v1303 = vld [vmem:[%s1302] sm:$0xff]
  %v1304 = vsel %vm81, %v1301, %v934
  %v1306 = vsel %vm362, %v1304, 0
  %1308 = vmatprep.subr.mxu0 0.0
  %1309 = vmatpush1.msra.mxu0 %v61
  %1310 = vmatprep.subr.mxu0 0.0
  %1311 = vmatpush1.msra.mxu0 %v62
  %1312 = vmatprep.subr.mxu0 0.0
  %1313 = vmatpush1.msra.mxu0 %v63
  %1314 = vmatprep.subr.mxu0 0.0
  %1315 = vmatpush1.msra.mxu0 %v64
  %1316 = vmatprep.subr.mxu0 0.0
  %1317 = vmatpush1.msra.mxu0 %v65
  %1318 = vmatprep.subr.mxu0 0.0
  %1319 = vmatpush1.msra.mxu0 %v66
  %1320 = vmatprep.subr.mxu0 0.0
  %1321 = vmatpush1.msra.mxu0 %v67
  %1322 = vmatprep.subr.mxu0 0.0
  %1323 = vmatpush1.msra.mxu0 %v68
  %1324 = vmatprep.subr.mxu0 0.0
  %1325 = vmatpush1.msra.mxu0 0.0
  %1326 = vmatprep.subr.mxu0 0.0
  %1327 = vmatpush1.msra.mxu0 0.0
  %1328 = vmatprep.subr.mxu0 0.0
  %1329 = vmatpush1.msra.mxu0 0.0
  %1330 = vmatprep.subr.mxu0 0.0
  %1331 = vmatpush1.msra.mxu0 0.0
  %1332 = vmatprep.subr.mxu0 0.0
  %1333 = vmatpush1.msra.mxu0 0.0
  %1334 = vmatprep.subr.mxu0 0.0
  %1335 = vmatpush1.msra.mxu0 0.0
  %1336 = vmatprep.subr.mxu0 0.0
  %1337 = vmatpush1.msra.mxu0 0.0
  %1338 = vmatprep.subr.mxu0 0.0
  %1339 = vmatpush1.msra.mxu0 0.0
  %1340 = vmatprep.subr.mxu0 0.0
  %1341 = vmatpush1.msra.mxu0 0.0
  %1342 = vmatprep.subr.mxu0 0.0
  %1343 = vmatpush1.msra.mxu0 0.0
  %1344 = vmatprep.subr.mxu0 0.0
  %1345 = vmatpush1.msra.mxu0 0.0
  %1346 = vmatprep.subr.mxu0 0.0
  %1347 = vmatpush1.msra.mxu0 0.0
  %1348 = vmatprep.subr.mxu0 0.0
  %1349 = vmatpush1.msra.mxu0 0.0
  %1350 = vmatprep.subr.mxu0 0.0
  %1351 = vmatpush1.msra.mxu0 0.0
  %1352 = vmatprep.subr.mxu0 0.0
  %1353 = vmatpush1.msra.mxu0 0.0
  %1354 = vmatprep.subr.mxu0 0.0
  %1355 = vmatpush1.msra.mxu0 0.0
  %1356 = vmatprep.subr.mxu0 0.0
  %1357 = vmatpush1.msra.mxu0 0.0
  %1358 = vmatprep.subr.mxu0 0.0
  %1359 = vmatpush1.msra.mxu0 0.0
  %1360 = vmatprep.subr.mxu0 0.0
  %1361 = vmatpush1.msra.mxu0 0.0
  %1362 = vmatprep.subr.mxu0 0.0
  %1363 = vmatpush1.msra.mxu0 0.0
  %1364 = vmatprep.subr.mxu0 0.0
  %1365 = vmatpush1.msra.mxu0 0.0
  %1366 = vmatprep.subr.mxu0 0.0
  %1367 = vmatpush1.msra.mxu0 0.0
  %1368 = vmatprep.subr.mxu0 0.0
  %1369 = vmatpush1.msra.mxu0 0.0
  %1370 = vmatprep.subr.mxu0 0.0
  %1371 = vmatpush1.msra.mxu0 0.0
  %1372 = vmatprep.mubr.f32.mxu0 0.0
  %1373 = vmatmul.mubr.f32.gmra.mrb[0].mxu0 %v1306
  %v1374 = vpop.f32.mrb[0].mxu0
  %v1375 = vadd.f32 %v1303, %v1374
  %v1376 = vpop.f32.mrb[0].mxu0
  %1377 = vdwg.mxu0
  %v1378 = vxor.u32 %v1375, 2147483648
  %v1379 = vmul.f32 %v1378, 1.442695
  %v1380 = vpow.pop %v1379
  %v1381 = vadd.f32 %v1380, 1.0
  %v1382 = vrcp.pop %v1381
  %v1383 = vmul.f32 1.0, %v1382
  %1385 = vrot.lane.b32.xlu0 %v1375, 32
  %v1386 = vpop.permute.xlu0 %1385
  %v1388 = vmul.f32 %v1383, %v1386
  %1390 = vrot.lane.b32.xlu0 %v1388, 64
  %v1391 = vpop.permute.xlu0 %1390
  %v1393 = vadd.f32 %v1375, %v1391
  %v1394 = vtanh.pop %v1393
  %v1395 = vsub.f32 1.0, %v1383
  %1397 = vrot.lane.b32.xlu0 %v1394, 96
  %v1398 = vpop.permute.xlu0 %1397
  %v1400 = vmul.f32 %v1395, %v1398
  %v1401 = vmul.f32 %v1383, %v934
  %v1402 = vadd.f32 %v1400, %v1401
  %1404 = vrot.lane.b32.xlu0 %v1402, 96
  %v1405 = vpop.permute.xlu0 %1404
  %v1407 = vsel %vm81, %v1405, %v1037
  %v1409 = vsel %vm362, %v1407, 0
  %1411 = vmatprep.subr.mxu0 0.0
  %1412 = vmatpush1.msra.mxu0 %v70
  %1413 = vmatprep.subr.mxu0 0.0
  %1414 = vmatpush1.msra.mxu0 %v71
  %1415 = vmatprep.subr.mxu0 0.0
  %1416 = vmatpush1.msra.mxu0 %v72
  %1417 = vmatprep.subr.mxu0 0.0
  %1418 = vmatpush1.msra.mxu0 %v73
  %1419 = vmatprep.subr.mxu0 0.0
  %1420 = vmatpush1.msra.mxu0 %v74
  %1421 = vmatprep.subr.mxu0 0.0
  %1422 = vmatpush1.msra.mxu0 %v75
  %1423 = vmatprep.subr.mxu0 0.0
  %1424 = vmatpush1.msra.mxu0 %v76
  %1425 = vmatprep.subr.mxu0 0.0
  %1426 = vmatpush1.msra.mxu0 %v77
  %1427 = vmatprep.subr.mxu0 0.0
  %1428 = vmatpush1.msra.mxu0 0.0
  %1429 = vmatprep.subr.mxu0 0.0
  %1430 = vmatpush1.msra.mxu0 0.0
  %1431 = vmatprep.subr.mxu0 0.0
  %1432 = vmatpush1.msra.mxu0 0.0
  %1433 = vmatprep.subr.mxu0 0.0
  %1434 = vmatpush1.msra.mxu0 0.0
  %1435 = vmatprep.subr.mxu0 0.0
  %1436 = vmatpush1.msra.mxu0 0.0
  %1437 = vmatprep.subr.mxu0 0.0
  %1438 = vmatpush1.msra.mxu0 0.0
  %1439 = vmatprep.subr.mxu0 0.0
  %1440 = vmatpush1.msra.mxu0 0.0
  %1441 = vmatprep.subr.mxu0 0.0
  %1442 = vmatpush1.msra.mxu0 0.0
  %1443 = vmatprep.subr.mxu0 0.0
  %1444 = vmatpush1.msra.mxu0 0.0
  %1445 = vmatprep.subr.mxu0 0.0
  %1446 = vmatpush1.msra.mxu0 0.0
  %1447 = vmatprep.subr.mxu0 0.0
  %1448 = vmatpush1.msra.mxu0 0.0
  %1449 = vmatprep.subr.mxu0 0.0
  %1450 = vmatpush1.msra.mxu0 0.0
  %1451 = vmatprep.subr.mxu0 0.0
  %1452 = vmatpush1.msra.mxu0 0.0
  %1453 = vmatprep.subr.mxu0 0.0
  %1454 = vmatpush1.msra.mxu0 0.0
  %1455 = vmatprep.subr.mxu0 0.0
  %1456 = vmatpush1.msra.mxu0 0.0
  %1457 = vmatprep.subr.mxu0 0.0
  %1458 = vmatpush1.msra.mxu0 0.0
  %1459 = vmatprep.subr.mxu0 0.0
  %1460 = vmatpush1.msra.mxu0 0.0
  %1461 = vmatprep.subr.mxu0 0.0
  %1462 = vmatpush1.msra.mxu0 0.0
  %1463 = vmatprep.subr.mxu0 0.0
  %1464 = vmatpush1.msra.mxu0 0.0
  %1465 = vmatprep.subr.mxu0 0.0
  %1466 = vmatpush1.msra.mxu0 0.0
  %1467 = vmatprep.subr.mxu0 0.0
  %1468 = vmatpush1.msra.mxu0 0.0
  %1469 = vmatprep.subr.mxu0 0.0
  %1470 = vmatpush1.msra.mxu0 0.0
  %1471 = vmatprep.subr.mxu0 0.0
  %1472 = vmatpush1.msra.mxu0 0.0
  %1473 = vmatprep.subr.mxu0 0.0
  %1474 = vmatpush1.msra.mxu0 0.0
  %1475 = vmatprep.mubr.f32.mxu0 0.0
  %1476 = vmatmul.mubr.f32.gmra.mrb[0].mxu0 %v1409
  %v1477 = vpop.f32.mrb[0].mxu0
  %v1478 = vadd.f32 %v470, %v1477
  %v1479 = vpop.f32.mrb[0].mxu0
  %1480 = vdwg.mxu0
  %v1481 = vxor.u32 %v1478, 2147483648
  %v1482 = vmul.f32 %v1481, 1.442695
  %v1483 = vpow.pop %v1482
  %v1484 = vadd.f32 %v1483, 1.0
  %v1485 = vrcp.pop %v1484
  %v1486 = vmul.f32 1.0, %v1485
  %1488 = vrot.lane.b32.xlu0 %v1478, 32
  %v1489 = vpop.permute.xlu0 %1488
  %v1491 = vmul.f32 %v1486, %v1489
  %1493 = vrot.lane.b32.xlu0 %v1491, 64
  %v1494 = vpop.permute.xlu0 %1493
  %v1496 = vadd.f32 %v1478, %v1494
  %v1497 = vtanh.pop %v1496
  %v1498 = vsub.f32 1.0, %v1486
  %1500 = vrot.lane.b32.xlu0 %v1497, 96
  %v1501 = vpop.permute.xlu0 %1500
  %v1503 = vmul.f32 %v1498, %v1501
  %v1504 = vmul.f32 %v1486, %v1037
  %v1505 = vadd.f32 %v1503, %v1504
  %s1506 = scalar_lea.vmem %s0, 24
  %v1507 = vld [vmem:[%s1506] sm:$0xff]
  %1509 = vrot.lane.b32.xlu0 %v1505, 96
  %v1510 = vpop.permute.xlu0 %1509
  %v1511 = vsel %vm81, %v1510, 0
  %1513 = vmatprep.subr.mxu0 0.0
  %1514 = vmatpush1.msra.mxu0 %v40
  %1515 = vmatprep.subr.mxu0 0.0
  %1516 = vmatpush1.msra.mxu0 %v41
  %1517 = vmatprep.subr.mxu0 0.0
  %1518 = vmatpush1.msra.mxu0 %v42
  %1519 = vmatprep.subr.mxu0 0.0
  %1520 = vmatpush1.msra.mxu0 %v43
  %1521 = vmatprep.subr.mxu0 0.0
  %1522 = vmatpush1.msra.mxu0 0.0
  %1523 = vmatprep.subr.mxu0 0.0
  %1524 = vmatpush1.msra.mxu0 0.0
  %1525 = vmatprep.subr.mxu0 0.0
  %1526 = vmatpush1.msra.mxu0 0.0
  %1527 = vmatprep.subr.mxu0 0.0
  %1528 = vmatpush1.msra.mxu0 0.0
  %1529 = vmatprep.subr.mxu0 0.0
  %1530 = vmatpush1.msra.mxu0 0.0
  %1531 = vmatprep.subr.mxu0 0.0
  %1532 = vmatpush1.msra.mxu0 0.0
  %1533 = vmatprep.subr.mxu0 0.0
  %1534 = vmatpush1.msra.mxu0 0.0
  %1535 = vmatprep.subr.mxu0 0.0
  %1536 = vmatpush1.msra.mxu0 0.0
  %1537 = vmatprep.subr.mxu0 0.0
  %1538 = vmatpush1.msra.mxu0 0.0
  %1539 = vmatprep.subr.mxu0 0.0
  %1540 = vmatpush1.msra.mxu0 0.0
  %1541 = vmatprep.subr.mxu0 0.0
  %1542 = vmatpush1.msra.mxu0 0.0
  %1543 = vmatprep.subr.mxu0 0.0
  %1544 = vmatpush1.msra.mxu0 0.0
  %1545 = vmatprep.subr.mxu0 0.0
  %1546 = vmatpush1.msra.mxu0 0.0
  %1547 = vmatprep.subr.mxu0 0.0
  %1548 = vmatpush1.msra.mxu0 0.0
  %1549 = vmatprep.subr.mxu0 0.0
  %1550 = vmatpush1.msra.mxu0 0.0
  %1551 = vmatprep.subr.mxu0 0.0
  %1552 = vmatpush1.msra.mxu0 0.0
  %1553 = vmatprep.subr.mxu0 0.0
  %1554 = vmatpush1.msra.mxu0 0.0
  %1555 = vmatprep.subr.mxu0 0.0
  %1556 = vmatpush1.msra.mxu0 0.0
  %1557 = vmatprep.subr.mxu0 0.0
  %1558 = vmatpush1.msra.mxu0 0.0
  %1559 = vmatprep.subr.mxu0 0.0
  %1560 = vmatpush1.msra.mxu0 0.0
  %1561 = vmatprep.subr.mxu0 0.0
  %1562 = vmatpush1.msra.mxu0 0.0
  %1563 = vmatprep.subr.mxu0 0.0
  %1564 = vmatpush1.msra.mxu0 0.0
  %1565 = vmatprep.subr.mxu0 0.0
  %1566 = vmatpush1.msra.mxu0 0.0
  %1567 = vmatprep.subr.mxu0 0.0
  %1568 = vmatpush1.msra.mxu0 0.0
  %1569 = vmatprep.subr.mxu0 0.0
  %1570 = vmatpush1.msra.mxu0 0.0
  %1571 = vmatprep.subr.mxu0 0.0
  %1572 = vmatpush1.msra.mxu0 0.0
  %1573 = vmatprep.subr.mxu0 0.0
  %1574 = vmatpush1.msra.mxu0 0.0
  %1575 = vmatprep.subr.mxu0 0.0
  %1576 = vmatpush1.msra.mxu0 0.0
  %1577 = vmatprep.mubr.f32.mxu0 0.0
  %1578 = vmatmul.mubr.f32.gmra.mrb[0].mxu0 %v1511
  %v1579 = vpop.f32.mrb[0].mxu0
  %v1580 = vadd.f32 0.0, %v1579
  %v1581 = vpop.f32.mrb[0].mxu0
  %1582 = vdwg.mxu0
  %v1583 = vadd.f32 %v1507, %v1580
  %v1584 = vmax.f32 %v1583, 0.0
  %v1586 = vsel %vm163, %v1584, 0
  %1588 = vmatprep.subr.mxu0 0.0
  %1589 = vmatpush1.msra.mxu0 %v44
  %1590 = vmatprep.subr.mxu0 0.0
  %1591 = vmatpush1.msra.mxu0 %v45
  %1592 = vmatprep.subr.mxu0 0.0
  %1593 = vmatpush1.msra.mxu0 %v46
  %1594 = vmatprep.subr.mxu0 0.0
  %1595 = vmatpush1.msra.mxu0 %v47
  %1596 = vmatprep.subr.mxu0 0.0
  %1597 = vmatpush1.msra.mxu0 %v48
  %1598 = vmatprep.subr.mxu0 0.0
  %1599 = vmatpush1.msra.mxu0 %v49
  %1600 = vmatprep.subr.mxu0 0.0
  %1601 = vmatpush1.msra.mxu0 %v50
  %1602 = vmatprep.subr.mxu0 0.0
  %1603 = vmatpush1.msra.mxu0 %v51
  %1604 = vmatprep.subr.mxu0 0.0
  %1605 = vmatpush1.msra.mxu0 %v52
  %1606 = vmatprep.subr.mxu0 0.0
  %1607 = vmatpush1.msra.mxu0 %v53
  %1608 = vmatprep.subr.mxu0 0.0
  %1609 = vmatpush1.msra.mxu0 %v54
  %1610 = vmatprep.subr.mxu0 0.0
  %1611 = vmatpush1.msra.mxu0 %v55
  %1612 = vmatprep.subr.mxu0 0.0
  %1613 = vmatpush1.msra.mxu0 0.0
  %1614 = vmatprep.subr.mxu0 0.0
  %1615 = vmatpush1.msra.mxu0 0.0
  %1616 = vmatprep.subr.mxu0 0.0
  %1617 = vmatpush1.msra.mxu0 0.0
  %1618 = vmatprep.subr.mxu0 0.0
  %1619 = vmatpush1.msra.mxu0 0.0
  %1620 = vmatprep.subr.mxu0 0.0
  %1621 = vmatpush1.msra.mxu0 0.0
  %1622 = vmatprep.subr.mxu0 0.0
  %1623 = vmatpush1.msra.mxu0 0.0
  %1624 = vmatprep.subr.mxu0 0.0
  %1625 = vmatpush1.msra.mxu0 0.0
  %1626 = vmatprep.subr.mxu0 0.0
  %1627 = vmatpush1.msra.mxu0 0.0
  %1628 = vmatprep.subr.mxu0 0.0
  %1629 = vmatpush1.msra.mxu0 0.0
  %1630 = vmatprep.subr.mxu0 0.0
  %1631 = vmatpush1.msra.mxu0 0.0
  %1632 = vmatprep.subr.mxu0 0.0
  %1633 = vmatpush1.msra.mxu0 0.0
  %1634 = vmatprep.subr.mxu0 0.0
  %1635 = vmatpush1.msra.mxu0 0.0
  %1636 = vmatprep.subr.mxu0 0.0
  %1637 = vmatpush1.msra.mxu0 0.0
  %1638 = vmatprep.subr.mxu0 0.0
  %1639 = vmatpush1.msra.mxu0 0.0
  %1640 = vmatprep.subr.mxu0 0.0
  %1641 = vmatpush1.msra.mxu0 0.0
  %1642 = vmatprep.subr.mxu0 0.0
  %1643 = vmatpush1.msra.mxu0 0.0
  %1644 = vmatprep.subr.mxu0 0.0
  %1645 = vmatpush1.msra.mxu0 0.0
  %1646 = vmatprep.subr.mxu0 0.0
  %1647 = vmatpush1.msra.mxu0 0.0
  %1648 = vmatprep.subr.mxu0 0.0
  %1649 = vmatpush1.msra.mxu0 0.0
  %1650 = vmatprep.subr.mxu0 0.0
  %1651 = vmatpush1.msra.mxu0 0.0
  %1652 = vmatprep.mubr.f32.mxu0 0.0
  %1653 = vmatmul.mubr.f32.gmra.mrb[0].mxu0 %v1586
  %v1654 = vpop.f32.mrb[0].mxu0
  %v1655 = vadd.f32 %v161, %v1654
  %v1656 = vpop.f32.mrb[0].mxu0
  %1657 = vdwg.mxu0
  %v1658 = vmax.f32 %v1655, 0.0
  %v1659 = vmul.f32 %v1658, %v242
  %1661 = vrot.lane.b32.xlu0 %v1659, 112
  %v1662 = vpop.permute.xlu0 %1661
  %v1664 = vadd.f32 %v1659, %v1662
  %1665 = vrot.lane.b32.xlu0 %v1659, 96
  %v1666 = vpop.permute.xlu0 %1665
  %v1668 = vadd.f32 %v1664, %v1666
  %v1669 = vmax.f32 %v1668, 0.0
  %v1670 = vand.u32 2147483647, %v1668
  %v1671 = vsub.f32 0.0, %v1670
  %v1672 = vmul.f32 %v1671, 1.442695
  %v1673 = vpow.pop %v1672
  %v1674 = vadd.f32 %v1673, 1.0
  %v1675 = vlog2.pop %v1674
  %v1676 = vmul.f32 %v1675, 0.6931472
  %v1677 = vmul.f32 -0.5, %v1673
  %v1678 = vadd.f32 %v1677, 1.0
  %v1679 = vmul.f32 %v1678, %v1673
  %v1680 = vand.u32 2147483647, %v1673
  %vm1681 = vcmp.lt.f32.partialorder %v1680, 0.0004427343
  %v1682 = vsel %vm1681, %v1679, %v1676
  %v1683 = vadd.f32 %v1669, %v1682
  %1686 = vrot.lane.b32.xlu0 %v1668, 32
  %v1687 = vpop.permute.xlu0 %1686
  %v1689 = vsel %vm81, %v1510, %v1687
  %s1690 = scalar_lea.vmem %s11, 24
  %1691 = vst.msk [vmem:[%s1690] sm:$0xff] %vm274, %v1689
  %s1692 = scalar_lea.vmem %s2, 24
  %v1693 = vld [vmem:[%s1692] sm:$0xff]
  %v1694 = vmul.f32 %v1693, %v1683
  %v1695 = vadd.f32 %v1694, %v1669
  %v1697 = vsel %vm285, %v1695, 0
  %1699 = vmatprep.subr.mxu0 0.0
  %1700 = vmatpush1.msra.mxu0 %v58
  %1701 = vmatprep.subr.mxu0 0.0
  %1702 = vmatpush1.msra.mxu0 %v59
  %1703 = vmatprep.subr.mxu0 0.0
  %1704 = vmatpush1.msra.mxu0 0.0
  %1705 = vmatprep.subr.mxu0 0.0
  %1706 = vmatpush1.msra.mxu0 0.0
  %1707 = vmatprep.subr.mxu0 0.0
  %1708 = vmatpush1.msra.mxu0 0.0
  %1709 = vmatprep.subr.mxu0 0.0
  %1710 = vmatpush1.msra.mxu0 0.0
  %1711 = vmatprep.subr.mxu0 0.0
  %1712 = vmatpush1.msra.mxu0 0.0
  %1713 = vmatprep.subr.mxu0 0.0
  %1714 = vmatpush1.msra.mxu0 0.0
  %1715 = vmatprep.subr.mxu0 0.0
  %1716 = vmatpush1.msra.mxu0 0.0
  %1717 = vmatprep.subr.mxu0 0.0
  %1718 = vmatpush1.msra.mxu0 0.0
  %1719 = vmatprep.subr.mxu0 0.0
  %1720 = vmatpush1.msra.mxu0 0.0
  %1721 = vmatprep.subr.mxu0 0.0
  %1722 = vmatpush1.msra.mxu0 0.0
  %1723 = vmatprep.subr.mxu0 0.0
  %1724 = vmatpush1.msra.mxu0 0.0
  %1725 = vmatprep.subr.mxu0 0.0
  %1726 = vmatpush1.msra.mxu0 0.0
  %1727 = vmatprep.subr.mxu0 0.0
  %1728 = vmatpush1.msra.mxu0 0.0
  %1729 = vmatprep.subr.mxu0 0.0
  %1730 = vmatpush1.msra.mxu0 0.0
  %1731 = vmatprep.subr.mxu0 0.0
  %1732 = vmatpush1.msra.mxu0 0.0
  %1733 = vmatprep.subr.mxu0 0.0
  %1734 = vmatpush1.msra.mxu0 0.0
  %1735 = vmatprep.subr.mxu0 0.0
  %1736 = vmatpush1.msra.mxu0 0.0
  %1737 = vmatprep.subr.mxu0 0.0
  %1738 = vmatpush1.msra.mxu0 0.0
  %1739 = vmatprep.subr.mxu0 0.0
  %1740 = vmatpush1.msra.mxu0 0.0
  %1741 = vmatprep.subr.mxu0 0.0
  %1742 = vmatpush1.msra.mxu0 0.0
  %1743 = vmatprep.subr.mxu0 0.0
  %1744 = vmatpush1.msra.mxu0 0.0
  %1745 = vmatprep.subr.mxu0 0.0
  %1746 = vmatpush1.msra.mxu0 0.0
  %1747 = vmatprep.subr.mxu0 0.0
  %1748 = vmatpush1.msra.mxu0 0.0
  %1749 = vmatprep.subr.mxu0 0.0
  %1750 = vmatpush1.msra.mxu0 0.0
  %1751 = vmatprep.subr.mxu0 0.0
  %1752 = vmatpush1.msra.mxu0 0.0
  %1753 = vmatprep.subr.mxu0 0.0
  %1754 = vmatpush1.msra.mxu0 0.0
  %1755 = vmatprep.subr.mxu0 0.0
  %1756 = vmatpush1.msra.mxu0 0.0
  %1757 = vmatprep.subr.mxu0 0.0
  %1758 = vmatpush1.msra.mxu0 0.0
  %1759 = vmatprep.subr.mxu0 0.0
  %1760 = vmatpush1.msra.mxu0 0.0
  %1761 = vmatprep.subr.mxu0 0.0
  %1762 = vmatpush1.msra.mxu0 0.0
  %1763 = vmatprep.mubr.f32.mxu0 0.0
  %1764 = vmatmul.mubr.f32.gmra.mrb[0].mxu0 %v1697
  %v1765 = vpop.f32.mrb[0].mxu0
  %v1766 = vadd.f32 %v283, %v1765
  %v1767 = vpop.f32.mrb[0].mxu0
  %1768 = vdwg.mxu0
  %v1769 = vmax.f32 %v1766, 0.0
  %s1770 = scalar_lea.vmem %s1, 24
  %v1771 = vld [vmem:[%s1770] sm:$0xff]
  %v1772 = vsel %vm81, %v1769, %v1402
  %v1774 = vsel %vm362, %v1772, 0
  %1776 = vmatprep.subr.mxu0 0.0
  %1777 = vmatpush1.msra.mxu0 %v61
  %1778 = vmatprep.subr.mxu0 0.0
  %1779 = vmatpush1.msra.mxu0 %v62
  %1780 = vmatprep.subr.mxu0 0.0
  %1781 = vmatpush1.msra.mxu0 %v63
  %1782 = vmatprep.subr.mxu0 0.0
  %1783 = vmatpush1.msra.mxu0 %v64
  %1784 = vmatprep.subr.mxu0 0.0
  %1785 = vmatpush1.msra.mxu0 %v65
  %1786 = vmatprep.subr.mxu0 0.0
  %1787 = vmatpush1.msra.mxu0 %v66
  %1788 = vmatprep.subr.mxu0 0.0
  %1789 = vmatpush1.msra.mxu0 %v67
  %1790 = vmatprep.subr.mxu0 0.0
  %1791 = vmatpush1.msra.mxu0 %v68
  %1792 = vmatprep.subr.mxu0 0.0
  %1793 = vmatpush1.msra.mxu0 0.0
  %1794 = vmatprep.subr.mxu0 0.0
  %1795 = vmatpush1.msra.mxu0 0.0
  %1796 = vmatprep.subr.mxu0 0.0
  %1797 = vmatpush1.msra.mxu0 0.0
  %1798 = vmatprep.subr.mxu0 0.0
  %1799 = vmatpush1.msra.mxu0 0.0
  %1800 = vmatprep.subr.mxu0 0.0
  %1801 = vmatpush1.msra.mxu0 0.0
  %1802 = vmatprep.subr.mxu0 0.0
  %1803 = vmatpush1.msra.mxu0 0.0
  %1804 = vmatprep.subr.mxu0 0.0
  %1805 = vmatpush1.msra.mxu0 0.0
  %1806 = vmatprep.subr.mxu0 0.0
  %1807 = vmatpush1.msra.mxu0 0.0
  %1808 = vmatprep.subr.mxu0 0.0
  %1809 = vmatpush1.msra.mxu0 0.0
  %1810 = vmatprep.subr.mxu0 0.0
  %1811 = vmatpush1.msra.mxu0 0.0
  %1812 = vmatprep.subr.mxu0 0.0
  %1813 = vmatpush1.msra.mxu0 0.0
  %1814 = vmatprep.subr.mxu0 0.0
  %1815 = vmatpush1.msra.mxu0 0.0
  %1816 = vmatprep.subr.mxu0 0.0
  %1817 = vmatpush1.msra.mxu0 0.0
  %1818 = vmatprep.subr.mxu0 0.0
  %1819 = vmatpush1.msra.mxu0 0.0
  %1820 = vmatprep.subr.mxu0 0.0
  %1821 = vmatpush1.msra.mxu0 0.0
  %1822 = vmatprep.subr.mxu0 0.0
  %1823 = vmatpush1.msra.mxu0 0.0
  %1824 = vmatprep.subr.mxu0 0.0
  %1825 = vmatpush1.msra.mxu0 0.0
  %1826 = vmatprep.subr.mxu0 0.0
  %1827 = vmatpush1.msra.mxu0 0.0
  %1828 = vmatprep.subr.mxu0 0.0
  %1829 = vmatpush1.msra.mxu0 0.0
  %1830 = vmatprep.subr.mxu0 0.0
  %1831 = vmatpush1.msra.mxu0 0.0
  %1832 = vmatprep.subr.mxu0 0.0
  %1833 = vmatpush1.msra.mxu0 0.0
  %1834 = vmatprep.subr.mxu0 0.0
  %1835 = vmatpush1.msra.mxu0 0.0
  %1836 = vmatprep.subr.mxu0 0.0
  %1837 = vmatpush1.msra.mxu0 0.0
  %1838 = vmatprep.subr.mxu0 0.0
  %1839 = vmatpush1.msra.mxu0 0.0
  %1840 = vmatprep.mubr.f32.mxu0 0.0
  %1841 = vmatmul.mubr.f32.gmra.mrb[0].mxu0 %v1774
  %v1842 = vpop.f32.mrb[0].mxu0
  %v1843 = vadd.f32 %v1771, %v1842
  %v1844 = vpop.f32.mrb[0].mxu0
  %1845 = vdwg.mxu0
  %v1846 = vxor.u32 %v1843, 2147483648
  %v1847 = vmul.f32 %v1846, 1.442695
  %v1848 = vpow.pop %v1847
  %v1849 = vadd.f32 %v1848, 1.0
  %v1850 = vrcp.pop %v1849
  %v1851 = vmul.f32 1.0, %v1850
  %1853 = vrot.lane.b32.xlu0 %v1843, 32
  %v1854 = vpop.permute.xlu0 %1853
  %v1856 = vmul.f32 %v1851, %v1854
  %1858 = vrot.lane.b32.xlu0 %v1856, 64
  %v1859 = vpop.permute.xlu0 %1858
  %v1861 = vadd.f32 %v1843, %v1859
  %v1862 = vtanh.pop %v1861
  %v1863 = vsub.f32 1.0, %v1851
  %1865 = vrot.lane.b32.xlu0 %v1862, 96
  %v1866 = vpop.permute.xlu0 %1865
  %v1868 = vmul.f32 %v1863, %v1866
  %v1869 = vmul.f32 %v1851, %v1402
  %v1870 = vadd.f32 %v1868, %v1869
  %1872 = vrot.lane.b32.xlu0 %v1870, 96
  %v1873 = vpop.permute.xlu0 %1872
  %v1875 = vsel %vm81, %v1873, %v1505
  %v1877 = vsel %vm362, %v1875, 0
  %1879 = vmatprep.subr.mxu0 0.0
  %1880 = vmatpush1.msra.mxu0 %v70
  %1881 = vmatprep.subr.mxu0 0.0
  %1882 = vmatpush1.msra.mxu0 %v71
  %1883 = vmatprep.subr.mxu0 0.0
  %1884 = vmatpush1.msra.mxu0 %v72
  %1885 = vmatprep.subr.mxu0 0.0
  %1886 = vmatpush1.msra.mxu0 %v73
  %1887 = vmatprep.subr.mxu0 0.0
  %1888 = vmatpush1.msra.mxu0 %v74
  %1889 = vmatprep.subr.mxu0 0.0
  %1890 = vmatpush1.msra.mxu0 %v75
  %1891 = vmatprep.subr.mxu0 0.0
  %1892 = vmatpush1.msra.mxu0 %v76
  %1893 = vmatprep.subr.mxu0 0.0
  %1894 = vmatpush1.msra.mxu0 %v77
  %1895 = vmatprep.subr.mxu0 0.0
  %1896 = vmatpush1.msra.mxu0 0.0
  %1897 = vmatprep.subr.mxu0 0.0
  %1898 = vmatpush1.msra.mxu0 0.0
  %1899 = vmatprep.subr.mxu0 0.0
  %1900 = vmatpush1.msra.mxu0 0.0
  %1901 = vmatprep.subr.mxu0 0.0
  %1902 = vmatpush1.msra.mxu0 0.0
  %1903 = vmatprep.subr.mxu0 0.0
  %1904 = vmatpush1.msra.mxu0 0.0
  %1905 = vmatprep.subr.mxu0 0.0
  %1906 = vmatpush1.msra.mxu0 0.0
  %1907 = vmatprep.subr.mxu0 0.0
  %1908 = vmatpush1.msra.mxu0 0.0
  %1909 = vmatprep.subr.mxu0 0.0
  %1910 = vmatpush1.msra.mxu0 0.0
  %1911 = vmatprep.subr.mxu0 0.0
  %1912 = vmatpush1.msra.mxu0 0.0
  %1913 = vmatprep.subr.mxu0 0.0
  %1914 = vmatpush1.msra.mxu0 0.0
  %1915 = vmatprep.subr.mxu0 0.0
  %1916 = vmatpush1.msra.mxu0 0.0
  %1917 = vmatprep.subr.mxu0 0.0
  %1918 = vmatpush1.msra.mxu0 0.0
  %1919 = vmatprep.subr.mxu0 0.0
  %1920 = vmatpush1.msra.mxu0 0.0
  %1921 = vmatprep.subr.mxu0 0.0
  %1922 = vmatpush1.msra.mxu0 0.0
  %1923 = vmatprep.subr.mxu0 0.0
  %1924 = vmatpush1.msra.mxu0 0.0
  %1925 = vmatprep.subr.mxu0 0.0
  %1926 = vmatpush1.msra.mxu0 0.0
  %1927 = vmatprep.subr.mxu0 0.0
  %1928 = vmatpush1.msra.mxu0 0.0
  %1929 = vmatprep.subr.mxu0 0.0
  %1930 = vmatpush1.msra.mxu0 0.0
  %1931 = vmatprep.subr.mxu0 0.0
  %1932 = vmatpush1.msra.mxu0 0.0
  %1933 = vmatprep.subr.mxu0 0.0
  %1934 = vmatpush1.msra.mxu0 0.0
  %1935 = vmatprep.subr.mxu0 0.0
  %1936 = vmatpush1.msra.mxu0 0.0
  %1937 = vmatprep.subr.mxu0 0.0
  %1938 = vmatpush1.msra.mxu0 0.0
  %1939 = vmatprep.subr.mxu0 0.0
  %1940 = vmatpush1.msra.mxu0 0.0
  %1941 = vmatprep.subr.mxu0 0.0
  %1942 = vmatpush1.msra.mxu0 0.0
  %1943 = vmatprep.mubr.f32.mxu0 0.0
  %1944 = vmatmul.mubr.f32.gmra.mrb[0].mxu0 %v1877
  %v1945 = vpop.f32.mrb[0].mxu0
  %v1946 = vadd.f32 %v470, %v1945
  %v1947 = vpop.f32.mrb[0].mxu0
  %1948 = vdwg.mxu0
  %v1949 = vxor.u32 %v1946, 2147483648
  %v1950 = vmul.f32 %v1949, 1.442695
  %v1951 = vpow.pop %v1950
  %v1952 = vadd.f32 %v1951, 1.0
  %v1953 = vrcp.pop %v1952
  %v1954 = vmul.f32 1.0, %v1953
  %1956 = vrot.lane.b32.xlu0 %v1946, 32
  %v1957 = vpop.permute.xlu0 %1956
  %v1959 = vmul.f32 %v1954, %v1957
  %1961 = vrot.lane.b32.xlu0 %v1959, 64
  %v1962 = vpop.permute.xlu0 %1961
  %v1964 = vadd.f32 %v1946, %v1962
  %v1965 = vtanh.pop %v1964
  %v1966 = vsub.f32 1.0, %v1954
  %1968 = vrot.lane.b32.xlu0 %v1965, 96
  %v1969 = vpop.permute.xlu0 %1968
  %v1971 = vmul.f32 %v1966, %v1969
  %v1972 = vmul.f32 %v1954, %v1505
  %v1973 = vadd.f32 %v1971, %v1972
  %s1974 = scalar_lea.vmem %s0, 32
  %v1975 = vld [vmem:[%s1974] sm:$0xff]
  %1977 = vrot.lane.b32.xlu0 %v1973, 96
  %v1978 = vpop.permute.xlu0 %1977
  %v1979 = vsel %vm81, %v1978, 0
  %1981 = vmatprep.subr.mxu0 0.0
  %1982 = vmatpush1.msra.mxu0 %v40
  %1983 = vmatprep.subr.mxu0 0.0
  %1984 = vmatpush1.msra.mxu0 %v41
  %1985 = vmatprep.subr.mxu0 0.0
  %1986 = vmatpush1.msra.mxu0 %v42
  %1987 = vmatprep.subr.mxu0 0.0
  %1988 = vmatpush1.msra.mxu0 %v43
  %1989 = vmatprep.subr.mxu0 0.0
  %1990 = vmatpush1.msra.mxu0 0.0
  %1991 = vmatprep.subr.mxu0 0.0
  %1992 = vmatpush1.msra.mxu0 0.0
  %1993 = vmatprep.subr.mxu0 0.0
  %1994 = vmatpush1.msra.mxu0 0.0
  %1995 = vmatprep.subr.mxu0 0.0
  %1996 = vmatpush1.msra.mxu0 0.0
  %1997 = vmatprep.subr.mxu0 0.0
  %1998 = vmatpush1.msra.mxu0 0.0
  %1999 = vmatprep.subr.mxu0 0.0
  %2000 = vmatpush1.msra.mxu0 0.0
  %2001 = vmatprep.subr.mxu0 0.0
  %2002 = vmatpush1.msra.mxu0 0.0
  %2003 = vmatprep.subr.mxu0 0.0
  %2004 = vmatpush1.msra.mxu0 0.0
  %2005 = vmatprep.subr.mxu0 0.0
  %2006 = vmatpush1.msra.mxu0 0.0
  %2007 = vmatprep.subr.mxu0 0.0
  %2008 = vmatpush1.msra.mxu0 0.0
  %2009 = vmatprep.subr.mxu0 0.0
  %2010 = vmatpush1.msra.mxu0 0.0
  %2011 = vmatprep.subr.mxu0 0.0
  %2012 = vmatpush1.msra.mxu0 0.0
  %2013 = vmatprep.subr.mxu0 0.0
  %2014 = vmatpush1.msra.mxu0 0.0
  %2015 = vmatprep.subr.mxu0 0.0
  %2016 = vmatpush1.msra.mxu0 0.0
  %2017 = vmatprep.subr.mxu0 0.0
  %2018 = vmatpush1.msra.mxu0 0.0
  %2019 = vmatprep.subr.mxu0 0.0
  %2020 = vmatpush1.msra.mxu0 0.0
  %2021 = vmatprep.subr.mxu0 0.0
  %2022 = vmatpush1.msra.mxu0 0.0
  %2023 = vmatprep.subr.mxu0 0.0
  %2024 = vmatpush1.msra.mxu0 0.0
  %2025 = vmatprep.subr.mxu0 0.0
  %2026 = vmatpush1.msra.mxu0 0.0
  %2027 = vmatprep.subr.mxu0 0.0
  %2028 = vmatpush1.msra.mxu0 0.0
  %2029 = vmatprep.subr.mxu0 0.0
  %2030 = vmatpush1.msra.mxu0 0.0
  %2031 = vmatprep.subr.mxu0 0.0
  %2032 = vmatpush1.msra.mxu0 0.0
  %2033 = vmatprep.subr.mxu0 0.0
  %2034 = vmatpush1.msra.mxu0 0.0
  %2035 = vmatprep.subr.mxu0 0.0
  %2036 = vmatpush1.msra.mxu0 0.0
  %2037 = vmatprep.subr.mxu0 0.0
  %2038 = vmatpush1.msra.mxu0 0.0
  %2039 = vmatprep.subr.mxu0 0.0
  %2040 = vmatpush1.msra.mxu0 0.0
  %2041 = vmatprep.subr.mxu0 0.0
  %2042 = vmatpush1.msra.mxu0 0.0
  %2043 = vmatprep.subr.mxu0 0.0
  %2044 = vmatpush1.msra.mxu0 0.0
  %2045 = vmatprep.mubr.f32.mxu0 0.0
  %2046 = vmatmul.mubr.f32.gmra.mrb[0].mxu0 %v1979
  %v2047 = vpop.f32.mrb[0].mxu0
  %v2048 = vadd.f32 0.0, %v2047
  %v2049 = vpop.f32.mrb[0].mxu0
  %2050 = vdwg.mxu0
  %v2051 = vadd.f32 %v1975, %v2048
  %v2052 = vmax.f32 %v2051, 0.0
  %v2054 = vsel %vm163, %v2052, 0
  %2056 = vmatprep.subr.mxu0 0.0
  %2057 = vmatpush1.msra.mxu0 %v44
  %2058 = vmatprep.subr.mxu0 0.0
  %2059 = vmatpush1.msra.mxu0 %v45
  %2060 = vmatprep.subr.mxu0 0.0
  %2061 = vmatpush1.msra.mxu0 %v46
  %2062 = vmatprep.subr.mxu0 0.0
  %2063 = vmatpush1.msra.mxu0 %v47
  %2064 = vmatprep.subr.mxu0 0.0
  %2065 = vmatpush1.msra.mxu0 %v48
  %2066 = vmatprep.subr.mxu0 0.0
  %2067 = vmatpush1.msra.mxu0 %v49
  %2068 = vmatprep.subr.mxu0 0.0
  %2069 = vmatpush1.msra.mxu0 %v50
  %2070 = vmatprep.subr.mxu0 0.0
  %2071 = vmatpush1.msra.mxu0 %v51
  %2072 = vmatprep.subr.mxu0 0.0
  %2073 = vmatpush1.msra.mxu0 %v52
  %2074 = vmatprep.subr.mxu0 0.0
  %2075 = vmatpush1.msra.mxu0 %v53
  %2076 = vmatprep.subr.mxu0 0.0
  %2077 = vmatpush1.msra.mxu0 %v54
  %2078 = vmatprep.subr.mxu0 0.0
  %2079 = vmatpush1.msra.mxu0 %v55
  %2080 = vmatprep.subr.mxu0 0.0
  %2081 = vmatpush1.msra.mxu0 0.0
  %2082 = vmatprep.subr.mxu0 0.0
  %2083 = vmatpush1.msra.mxu0 0.0
  %2084 = vmatprep.subr.mxu0 0.0
  %2085 = vmatpush1.msra.mxu0 0.0
  %2086 = vmatprep.subr.mxu0 0.0
  %2087 = vmatpush1.msra.mxu0 0.0
  %2088 = vmatprep.subr.mxu0 0.0
  %2089 = vmatpush1.msra.mxu0 0.0
  %2090 = vmatprep.subr.mxu0 0.0
  %2091 = vmatpush1.msra.mxu0 0.0
  %2092 = vmatprep.subr.mxu0 0.0
  %2093 = vmatpush1.msra.mxu0 0.0
  %2094 = vmatprep.subr.mxu0 0.0
  %2095 = vmatpush1.msra.mxu0 0.0
  %2096 = vmatprep.subr.mxu0 0.0
  %2097 = vmatpush1.msra.mxu0 0.0
  %2098 = vmatprep.subr.mxu0 0.0
  %2099 = vmatpush1.msra.mxu0 0.0
  %2100 = vmatprep.subr.mxu0 0.0
  %2101 = vmatpush1.msra.mxu0 0.0
  %2102 = vmatprep.subr.mxu0 0.0
  %2103 = vmatpush1.msra.mxu0 0.0
  %2104 = vmatprep.subr.mxu0 0.0
  %2105 = vmatpush1.msra.mxu0 0.0
  %2106 = vmatprep.subr.mxu0 0.0
  %2107 = vmatpush1.msra.mxu0 0.0
  %2108 = vmatprep.subr.mxu0 0.0
  %2109 = vmatpush1.msra.mxu0 0.0
  %2110 = vmatprep.subr.mxu0 0.0
  %2111 = vmatpush1.msra.mxu0 0.0
  %2112 = vmatprep.subr.mxu0 0.0
  %2113 = vmatpush1.msra.mxu0 0.0
  %2114 = vmatprep.subr.mxu0 0.0
  %2115 = vmatpush1.msra.mxu0 0.0
  %2116 = vmatprep.subr.mxu0 0.0
  %2117 = vmatpush1.msra.mxu0 0.0
  %2118 = vmatprep.subr.mxu0 0.0
  %2119 = vmatpush1.msra.mxu0 0.0
  %2120 = vmatprep.mubr.f32.mxu0 0.0
  %2121 = vmatmul.mubr.f32.gmra.mrb[0].mxu0 %v2054
  %v2122 = vpop.f32.mrb[0].mxu0
  %v2123 = vadd.f32 %v161, %v2122
  %v2124 = vpop.f32.mrb[0].mxu0
  %2125 = vdwg.mxu0
  %v2126 = vmax.f32 %v2123, 0.0
  %v2127 = vmul.f32 %v2126, %v242
  %2129 = vrot.lane.b32.xlu0 %v2127, 112
  %v2130 = vpop.permute.xlu0 %2129
  %v2132 = vadd.f32 %v2127, %v2130
  %2133 = vrot.lane.b32.xlu0 %v2127, 96
  %v2134 = vpop.permute.xlu0 %2133
  %v2136 = vadd.f32 %v2132, %v2134
  %v2137 = vmax.f32 %v2136, 0.0
  %v2138 = vand.u32 2147483647, %v2136
  %v2139 = vsub.f32 0.0, %v2138
  %v2140 = vmul.f32 %v2139, 1.442695
  %v2141 = vpow.pop %v2140
  %v2142 = vadd.f32 %v2141, 1.0
  %v2143 = vlog2.pop %v2142
  %v2144 = vmul.f32 %v2143, 0.6931472
  %v2145 = vmul.f32 -0.5, %v2141
  %v2146 = vadd.f32 %v2145, 1.0
  %v2147 = vmul.f32 %v2146, %v2141
  %v2148 = vand.u32 2147483647, %v2141
  %vm2149 = vcmp.lt.f32.partialorder %v2148, 0.0004427343
  %v2150 = vsel %vm2149, %v2147, %v2144
  %v2151 = vadd.f32 %v2137, %v2150
  %2154 = vrot.lane.b32.xlu0 %v2136, 32
  %v2155 = vpop.permute.xlu0 %2154
  %v2157 = vsel %vm81, %v1978, %v2155
  %s2158 = scalar_lea.vmem %s11, 32
  %2159 = vst.msk [vmem:[%s2158] sm:$0xff] %vm274, %v2157
  %s2160 = scalar_lea.vmem %s2, 32
  %v2161 = vld [vmem:[%s2160] sm:$0xff]
  %v2162 = vmul.f32 %v2161, %v2151
  %v2163 = vadd.f32 %v2162, %v2137
  %v2165 = vsel %vm285, %v2163, 0
  %2167 = vmatprep.subr.mxu0 0.0
  %2168 = vmatpush1.msra.mxu0 %v58
  %2169 = vmatprep.subr.mxu0 0.0
  %2170 = vmatpush1.msra.mxu0 %v59
  %2171 = vmatprep.subr.mxu0 0.0
  %2172 = vmatpush1.msra.mxu0 0.0
  %2173 = vmatprep.subr.mxu0 0.0
  %2174 = vmatpush1.msra.mxu0 0.0
  %2175 = vmatprep.subr.mxu0 0.0
  %2176 = vmatpush1.msra.mxu0 0.0
  %2177 = vmatprep.subr.mxu0 0.0
  %2178 = vmatpush1.msra.mxu0 0.0
  %2179 = vmatprep.subr.mxu0 0.0
  %2180 = vmatpush1.msra.mxu0 0.0
  %2181 = vmatprep.subr.mxu0 0.0
  %2182 = vmatpush1.msra.mxu0 0.0
  %2183 = vmatprep.subr.mxu0 0.0
  %2184 = vmatpush1.msra.mxu0 0.0
  %2185 = vmatprep.subr.mxu0 0.0
  %2186 = vmatpush1.msra.mxu0 0.0
  %2187 = vmatprep.subr.mxu0 0.0
  %2188 = vmatpush1.msra.mxu0 0.0
  %2189 = vmatprep.subr.mxu0 0.0
  %2190 = vmatpush1.msra.mxu0 0.0
  %2191 = vmatprep.subr.mxu0 0.0
  %2192 = vmatpush1.msra.mxu0 0.0
  %2193 = vmatprep.subr.mxu0 0.0
  %2194 = vmatpush1.msra.mxu0 0.0
  %2195 = vmatprep.subr.mxu0 0.0
  %2196 = vmatpush1.msra.mxu0 0.0
  %2197 = vmatprep.subr.mxu0 0.0
  %2198 = vmatpush1.msra.mxu0 0.0
  %2199 = vmatprep.subr.mxu0 0.0
  %2200 = vmatpush1.msra.mxu0 0.0
  %2201 = vmatprep.subr.mxu0 0.0
  %2202 = vmatpush1.msra.mxu0 0.0
  %2203 = vmatprep.subr.mxu0 0.0
  %2204 = vmatpush1.msra.mxu0 0.0
  %2205 = vmatprep.subr.mxu0 0.0
  %2206 = vmatpush1.msra.mxu0 0.0
  %2207 = vmatprep.subr.mxu0 0.0
  %2208 = vmatpush1.msra.mxu0 0.0
  %2209 = vmatprep.subr.mxu0 0.0
  %2210 = vmatpush1.msra.mxu0 0.0
  %2211 = vmatprep.subr.mxu0 0.0
  %2212 = vmatpush1.msra.mxu0 0.0
  %2213 = vmatprep.subr.mxu0 0.0
  %2214 = vmatpush1.msra.mxu0 0.0
  %2215 = vmatprep.subr.mxu0 0.0
  %2216 = vmatpush1.msra.mxu0 0.0
  %2217 = vmatprep.subr.mxu0 0.0
  %2218 = vmatpush1.msra.mxu0 0.0
  %2219 = vmatprep.subr.mxu0 0.0
  %2220 = vmatpush1.msra.mxu0 0.0
  %2221 = vmatprep.subr.mxu0 0.0
  %2222 = vmatpush1.msra.mxu0 0.0
  %2223 = vmatprep.subr.mxu0 0.0
  %2224 = vmatpush1.msra.mxu0 0.0
  %2225 = vmatprep.subr.mxu0 0.0
  %2226 = vmatpush1.msra.mxu0 0.0
  %2227 = vmatprep.subr.mxu0 0.0
  %2228 = vmatpush1.msra.mxu0 0.0
  %2229 = vmatprep.subr.mxu0 0.0
  %2230 = vmatpush1.msra.mxu0 0.0
  %2231 = vmatprep.mubr.f32.mxu0 0.0
  %2232 = vmatmul.mubr.f32.gmra.mrb[0].mxu0 %v2165
  %v2233 = vpop.f32.mrb[0].mxu0
  %v2234 = vadd.f32 %v283, %v2233
  %v2235 = vpop.f32.mrb[0].mxu0
  %2236 = vdwg.mxu0
  %v2237 = vmax.f32 %v2234, 0.0
  %s2238 = scalar_lea.vmem %s1, 32
  %v2239 = vld [vmem:[%s2238] sm:$0xff]
  %v2240 = vsel %vm81, %v2237, %v1870
  %v2242 = vsel %vm362, %v2240, 0
  %2244 = vmatprep.subr.mxu0 0.0
  %2245 = vmatpush1.msra.mxu0 %v61
  %2246 = vmatprep.subr.mxu0 0.0
  %2247 = vmatpush1.msra.mxu0 %v62
  %2248 = vmatprep.subr.mxu0 0.0
  %2249 = vmatpush1.msra.mxu0 %v63
  %2250 = vmatprep.subr.mxu0 0.0
  %2251 = vmatpush1.msra.mxu0 %v64
  %2252 = vmatprep.subr.mxu0 0.0
  %2253 = vmatpush1.msra.mxu0 %v65
  %2254 = vmatprep.subr.mxu0 0.0
  %2255 = vmatpush1.msra.mxu0 %v66
  %2256 = vmatprep.subr.mxu0 0.0
  %2257 = vmatpush1.msra.mxu0 %v67
  %2258 = vmatprep.subr.mxu0 0.0
  %2259 = vmatpush1.msra.mxu0 %v68
  %2260 = vmatprep.subr.mxu0 0.0
  %2261 = vmatpush1.msra.mxu0 0.0
  %2262 = vmatprep.subr.mxu0 0.0
  %2263 = vmatpush1.msra.mxu0 0.0
  %2264 = vmatprep.subr.mxu0 0.0
  %2265 = vmatpush1.msra.mxu0 0.0
  %2266 = vmatprep.subr.mxu0 0.0
  %2267 = vmatpush1.msra.mxu0 0.0
  %2268 = vmatprep.subr.mxu0 0.0
  %2269 = vmatpush1.msra.mxu0 0.0
  %2270 = vmatprep.subr.mxu0 0.0
  %2271 = vmatpush1.msra.mxu0 0.0
  %2272 = vmatprep.subr.mxu0 0.0
  %2273 = vmatpush1.msra.mxu0 0.0
  %2274 = vmatprep.subr.mxu0 0.0
  %2275 = vmatpush1.msra.mxu0 0.0
  %2276 = vmatprep.subr.mxu0 0.0
  %2277 = vmatpush1.msra.mxu0 0.0
  %2278 = vmatprep.subr.mxu0 0.0
  %2279 = vmatpush1.msra.mxu0 0.0
  %2280 = vmatprep.subr.mxu0 0.0
  %2281 = vmatpush1.msra.mxu0 0.0
  %2282 = vmatprep.subr.mxu0 0.0
  %2283 = vmatpush1.msra.mxu0 0.0
  %2284 = vmatprep.subr.mxu0 0.0
  %2285 = vmatpush1.msra.mxu0 0.0
  %2286 = vmatprep.subr.mxu0 0.0
  %2287 = vmatpush1.msra.mxu0 0.0
  %2288 = vmatprep.subr.mxu0 0.0
  %2289 = vmatpush1.msra.mxu0 0.0
  %2290 = vmatprep.subr.mxu0 0.0
  %2291 = vmatpush1.msra.mxu0 0.0
  %2292 = vmatprep.subr.mxu0 0.0
  %2293 = vmatpush1.msra.mxu0 0.0
  %2294 = vmatprep.subr.mxu0 0.0
  %2295 = vmatpush1.msra.mxu0 0.0
  %2296 = vmatprep.subr.mxu0 0.0
  %2297 = vmatpush1.msra.mxu0 0.0
  %2298 = vmatprep.subr.mxu0 0.0
  %2299 = vmatpush1.msra.mxu0 0.0
  %2300 = vmatprep.subr.mxu0 0.0
  %2301 = vmatpush1.msra.mxu0 0.0
  %2302 = vmatprep.subr.mxu0 0.0
  %2303 = vmatpush1.msra.mxu0 0.0
  %2304 = vmatprep.subr.mxu0 0.0
  %2305 = vmatpush1.msra.mxu0 0.0
  %2306 = vmatprep.subr.mxu0 0.0
  %2307 = vmatpush1.msra.mxu0 0.0
  %2308 = vmatprep.mubr.f32.mxu0 0.0
  %2309 = vmatmul.mubr.f32.gmra.mrb[0].mxu0 %v2242
  %v2310 = vpop.f32.mrb[0].mxu0
  %v2311 = vadd.f32 %v2239, %v2310
  %v2312 = vpop.f32.mrb[0].mxu0
  %2313 = vdwg.mxu0
  %v2314 = vxor.u32 %v2311, 2147483648
  %v2315 = vmul.f32 %v2314, 1.442695
  %v2316 = vpow.pop %v2315
  %v2317 = vadd.f32 %v2316, 1.0
  %v2318 = vrcp.pop %v2317
  %v2319 = vmul.f32 1.0, %v2318
  %2321 = vrot.lane.b32.xlu0 %v2311, 32
  %v2322 = vpop.permute.xlu0 %2321
  %v2324 = vmul.f32 %v2319, %v2322
  %2326 = vrot.lane.b32.xlu0 %v2324, 64
  %v2327 = vpop.permute.xlu0 %2326
  %v2329 = vadd.f32 %v2311, %v2327
  %v2330 = vtanh.pop %v2329
  %v2331 = vsub.f32 1.0, %v2319
  %2333 = vrot.lane.b32.xlu0 %v2330, 96
  %v2334 = vpop.permute.xlu0 %2333
  %v2336 = vmul.f32 %v2331, %v2334
  %v2337 = vmul.f32 %v2319, %v1870
  %v2338 = vadd.f32 %v2336, %v2337
  %2340 = vrot.lane.b32.xlu0 %v2338, 96
  %v2341 = vpop.permute.xlu0 %2340
  %v2343 = vsel %vm81, %v2341, %v1973
  %v2345 = vsel %vm362, %v2343, 0
  %2347 = vmatprep.subr.mxu0 0.0
  %2348 = vmatpush1.msra.mxu0 %v70
  %2349 = vmatprep.subr.mxu0 0.0
  %2350 = vmatpush1.msra.mxu0 %v71
  %2351 = vmatprep.subr.mxu0 0.0
  %2352 = vmatpush1.msra.mxu0 %v72
  %2353 = vmatprep.subr.mxu0 0.0
  %2354 = vmatpush1.msra.mxu0 %v73
  %2355 = vmatprep.subr.mxu0 0.0
  %2356 = vmatpush1.msra.mxu0 %v74
  %2357 = vmatprep.subr.mxu0 0.0
  %2358 = vmatpush1.msra.mxu0 %v75
  %2359 = vmatprep.subr.mxu0 0.0
  %2360 = vmatpush1.msra.mxu0 %v76
  %2361 = vmatprep.subr.mxu0 0.0
  %2362 = vmatpush1.msra.mxu0 %v77
  %2363 = vmatprep.subr.mxu0 0.0
  %2364 = vmatpush1.msra.mxu0 0.0
  %2365 = vmatprep.subr.mxu0 0.0
  %2366 = vmatpush1.msra.mxu0 0.0
  %2367 = vmatprep.subr.mxu0 0.0
  %2368 = vmatpush1.msra.mxu0 0.0
  %2369 = vmatprep.subr.mxu0 0.0
  %2370 = vmatpush1.msra.mxu0 0.0
  %2371 = vmatprep.subr.mxu0 0.0
  %2372 = vmatpush1.msra.mxu0 0.0
  %2373 = vmatprep.subr.mxu0 0.0
  %2374 = vmatpush1.msra.mxu0 0.0
  %2375 = vmatprep.subr.mxu0 0.0
  %2376 = vmatpush1.msra.mxu0 0.0
  %2377 = vmatprep.subr.mxu0 0.0
  %2378 = vmatpush1.msra.mxu0 0.0
  %2379 = vmatprep.subr.mxu0 0.0
  %2380 = vmatpush1.msra.mxu0 0.0
  %2381 = vmatprep.subr.mxu0 0.0
  %2382 = vmatpush1.msra.mxu0 0.0
  %2383 = vmatprep.subr.mxu0 0.0
  %2384 = vmatpush1.msra.mxu0 0.0
  %2385 = vmatprep.subr.mxu0 0.0
  %2386 = vmatpush1.msra.mxu0 0.0
  %2387 = vmatprep.subr.mxu0 0.0
  %2388 = vmatpush1.msra.mxu0 0.0
  %2389 = vmatprep.subr.mxu0 0.0
  %2390 = vmatpush1.msra.mxu0 0.0
  %2391 = vmatprep.subr.mxu0 0.0
  %2392 = vmatpush1.msra.mxu0 0.0
  %2393 = vmatprep.subr.mxu0 0.0
  %2394 = vmatpush1.msra.mxu0 0.0
  %2395 = vmatprep.subr.mxu0 0.0
  %2396 = vmatpush1.msra.mxu0 0.0
  %2397 = vmatprep.subr.mxu0 0.0
  %2398 = vmatpush1.msra.mxu0 0.0
  %2399 = vmatprep.subr.mxu0 0.0
  %2400 = vmatpush1.msra.mxu0 0.0
  %2401 = vmatprep.subr.mxu0 0.0
  %2402 = vmatpush1.msra.mxu0 0.0
  %2403 = vmatprep.subr.mxu0 0.0
  %2404 = vmatpush1.msra.mxu0 0.0
  %2405 = vmatprep.subr.mxu0 0.0
  %2406 = vmatpush1.msra.mxu0 0.0
  %2407 = vmatprep.subr.mxu0 0.0
  %2408 = vmatpush1.msra.mxu0 0.0
  %2409 = vmatprep.subr.mxu0 0.0
  %2410 = vmatpush1.msra.mxu0 0.0
  %2411 = vmatprep.mubr.f32.mxu0 0.0
  %2412 = vmatmul.mubr.f32.gmra.mrb[0].mxu0 %v2345
  %v2413 = vpop.f32.mrb[0].mxu0
  %v2414 = vadd.f32 %v470, %v2413
  %v2415 = vpop.f32.mrb[0].mxu0
  %2416 = vdwg.mxu0
  %v2417 = vxor.u32 %v2414, 2147483648
  %v2418 = vmul.f32 %v2417, 1.442695
  %v2419 = vpow.pop %v2418
  %v2420 = vadd.f32 %v2419, 1.0
  %v2421 = vrcp.pop %v2420
  %v2422 = vmul.f32 1.0, %v2421
  %2424 = vrot.lane.b32.xlu0 %v2414, 32
  %v2425 = vpop.permute.xlu0 %2424
  %v2427 = vmul.f32 %v2422, %v2425
  %2429 = vrot.lane.b32.xlu0 %v2427, 64
  %v2430 = vpop.permute.xlu0 %2429
  %v2432 = vadd.f32 %v2414, %v2430
  %v2433 = vtanh.pop %v2432
  %v2434 = vsub.f32 1.0, %v2422
  %2436 = vrot.lane.b32.xlu0 %v2433, 96
  %v2437 = vpop.permute.xlu0 %2436
  %v2439 = vmul.f32 %v2434, %v2437
  %v2440 = vmul.f32 %v2422, %v1973
  %v2441 = vadd.f32 %v2439, %v2440
  %s2442 = scalar_lea.vmem %s0, 40
  %v2443 = vld [vmem:[%s2442] sm:$0xff]
  %2445 = vrot.lane.b32.xlu0 %v2441, 96
  %v2446 = vpop.permute.xlu0 %2445
  %v2447 = vsel %vm81, %v2446, 0
  %2449 = vmatprep.subr.mxu0 0.0
  %2450 = vmatpush1.msra.mxu0 %v40
  %2451 = vmatprep.subr.mxu0 0.0
  %2452 = vmatpush1.msra.mxu0 %v41
  %2453 = vmatprep.subr.mxu0 0.0
  %2454 = vmatpush1.msra.mxu0 %v42
  %2455 = vmatprep.subr.mxu0 0.0
  %2456 = vmatpush1.msra.mxu0 %v43
  %2457 = vmatprep.subr.mxu0 0.0
  %2458 = vmatpush1.msra.mxu0 0.0
  %2459 = vmatprep.subr.mxu0 0.0
  %2460 = vmatpush1.msra.mxu0 0.0
  %2461 = vmatprep.subr.mxu0 0.0
  %2462 = vmatpush1.msra.mxu0 0.0
  %2463 = vmatprep.subr.mxu0 0.0
  %2464 = vmatpush1.msra.mxu0 0.0
  %2465 = vmatprep.subr.mxu0 0.0
  %2466 = vmatpush1.msra.mxu0 0.0
  %2467 = vmatprep.subr.mxu0 0.0
  %2468 = vmatpush1.msra.mxu0 0.0
  %2469 = vmatprep.subr.mxu0 0.0
  %2470 = vmatpush1.msra.mxu0 0.0
  %2471 = vmatprep.subr.mxu0 0.0
  %2472 = vmatpush1.msra.mxu0 0.0
  %2473 = vmatprep.subr.mxu0 0.0
  %2474 = vmatpush1.msra.mxu0 0.0
  %2475 = vmatprep.subr.mxu0 0.0
  %2476 = vmatpush1.msra.mxu0 0.0
  %2477 = vmatprep.subr.mxu0 0.0
  %2478 = vmatpush1.msra.mxu0 0.0
  %2479 = vmatprep.subr.mxu0 0.0
  %2480 = vmatpush1.msra.mxu0 0.0
  %2481 = vmatprep.subr.mxu0 0.0
  %2482 = vmatpush1.msra.mxu0 0.0
  %2483 = vmatprep.subr.mxu0 0.0
  %2484 = vmatpush1.msra.mxu0 0.0
  %2485 = vmatprep.subr.mxu0 0.0
  %2486 = vmatpush1.msra.mxu0 0.0
  %2487 = vmatprep.subr.mxu0 0.0
  %2488 = vmatpush1.msra.mxu0 0.0
  %2489 = vmatprep.subr.mxu0 0.0
  %2490 = vmatpush1.msra.mxu0 0.0
  %2491 = vmatprep.subr.mxu0 0.0
  %2492 = vmatpush1.msra.mxu0 0.0
  %2493 = vmatprep.subr.mxu0 0.0
  %2494 = vmatpush1.msra.mxu0 0.0
  %2495 = vmatprep.subr.mxu0 0.0
  %2496 = vmatpush1.msra.mxu0 0.0
  %2497 = vmatprep.subr.mxu0 0.0
  %2498 = vmatpush1.msra.mxu0 0.0
  %2499 = vmatprep.subr.mxu0 0.0
  %2500 = vmatpush1.msra.mxu0 0.0
  %2501 = vmatprep.subr.mxu0 0.0
  %2502 = vmatpush1.msra.mxu0 0.0
  %2503 = vmatprep.subr.mxu0 0.0
  %2504 = vmatpush1.msra.mxu0 0.0
  %2505 = vmatprep.subr.mxu0 0.0
  %2506 = vmatpush1.msra.mxu0 0.0
  %2507 = vmatprep.subr.mxu0 0.0
  %2508 = vmatpush1.msra.mxu0 0.0
  %2509 = vmatprep.subr.mxu0 0.0
  %2510 = vmatpush1.msra.mxu0 0.0
  %2511 = vmatprep.subr.mxu0 0.0
  %2512 = vmatpush1.msra.mxu0 0.0
  %2513 = vmatprep.mubr.f32.mxu0 0.0
  %2514 = vmatmul.mubr.f32.gmra.mrb[0].mxu0 %v2447
  %v2515 = vpop.f32.mrb[0].mxu0
  %v2516 = vadd.f32 0.0, %v2515
  %v2517 = vpop.f32.mrb[0].mxu0
  %2518 = vdwg.mxu0
  %v2519 = vadd.f32 %v2443, %v2516
  %v2520 = vmax.f32 %v2519, 0.0
  %v2522 = vsel %vm163, %v2520, 0
  %2524 = vmatprep.subr.mxu0 0.0
  %2525 = vmatpush1.msra.mxu0 %v44
  %2526 = vmatprep.subr.mxu0 0.0
  %2527 = vmatpush1.msra.mxu0 %v45
  %2528 = vmatprep.subr.mxu0 0.0
  %2529 = vmatpush1.msra.mxu0 %v46
  %2530 = vmatprep.subr.mxu0 0.0
  %2531 = vmatpush1.msra.mxu0 %v47
  %2532 = vmatprep.subr.mxu0 0.0
  %2533 = vmatpush1.msra.mxu0 %v48
  %2534 = vmatprep.subr.mxu0 0.0
  %2535 = vmatpush1.msra.mxu0 %v49
  %2536 = vmatprep.subr.mxu0 0.0
  %2537 = vmatpush1.msra.mxu0 %v50
  %2538 = vmatprep.subr.mxu0 0.0
  %2539 = vmatpush1.msra.mxu0 %v51
  %2540 = vmatprep.subr.mxu0 0.0
  %2541 = vmatpush1.msra.mxu0 %v52
  %2542 = vmatprep.subr.mxu0 0.0
  %2543 = vmatpush1.msra.mxu0 %v53
  %2544 = vmatprep.subr.mxu0 0.0
  %2545 = vmatpush1.msra.mxu0 %v54
  %2546 = vmatprep.subr.mxu0 0.0
  %2547 = vmatpush1.msra.mxu0 %v55
  %2548 = vmatprep.subr.mxu0 0.0
  %2549 = vmatpush1.msra.mxu0 0.0
  %2550 = vmatprep.subr.mxu0 0.0
  %2551 = vmatpush1.msra.mxu0 0.0
  %2552 = vmatprep.subr.mxu0 0.0
  %2553 = vmatpush1.msra.mxu0 0.0
  %2554 = vmatprep.subr.mxu0 0.0
  %2555 = vmatpush1.msra.mxu0 0.0
  %2556 = vmatprep.subr.mxu0 0.0
  %2557 = vmatpush1.msra.mxu0 0.0
  %2558 = vmatprep.subr.mxu0 0.0
  %2559 = vmatpush1.msra.mxu0 0.0
  %2560 = vmatprep.subr.mxu0 0.0
  %2561 = vmatpush1.msra.mxu0 0.0
  %2562 = vmatprep.subr.mxu0 0.0
  %2563 = vmatpush1.msra.mxu0 0.0
  %2564 = vmatprep.subr.mxu0 0.0
  %2565 = vmatpush1.msra.mxu0 0.0
  %2566 = vmatprep.subr.mxu0 0.0
  %2567 = vmatpush1.msra.mxu0 0.0
  %2568 = vmatprep.subr.mxu0 0.0
  %2569 = vmatpush1.msra.mxu0 0.0
  %2570 = vmatprep.subr.mxu0 0.0
  %2571 = vmatpush1.msra.mxu0 0.0
  %2572 = vmatprep.subr.mxu0 0.0
  %2573 = vmatpush1.msra.mxu0 0.0
  %2574 = vmatprep.subr.mxu0 0.0
  %2575 = vmatpush1.msra.mxu0 0.0
  %2576 = vmatprep.subr.mxu0 0.0
  %2577 = vmatpush1.msra.mxu0 0.0
  %2578 = vmatprep.subr.mxu0 0.0
  %2579 = vmatpush1.msra.mxu0 0.0
  %2580 = vmatprep.subr.mxu0 0.0
  %2581 = vmatpush1.msra.mxu0 0.0
  %2582 = vmatprep.subr.mxu0 0.0
  %2583 = vmatpush1.msra.mxu0 0.0
  %2584 = vmatprep.subr.mxu0 0.0
  %2585 = vmatpush1.msra.mxu0 0.0
  %2586 = vmatprep.subr.mxu0 0.0
  %2587 = vmatpush1.msra.mxu0 0.0
  %2588 = vmatprep.mubr.f32.mxu0 0.0
  %2589 = vmatmul.mubr.f32.gmra.mrb[0].mxu0 %v2522
  %v2590 = vpop.f32.mrb[0].mxu0
  %v2591 = vadd.f32 %v161, %v2590
  %v2592 = vpop.f32.mrb[0].mxu0
  %2593 = vdwg.mxu0
  %v2594 = vmax.f32 %v2591, 0.0
  %v2595 = vmul.f32 %v2594, %v242
  %2597 = vrot.lane.b32.xlu0 %v2595, 112
  %v2598 = vpop.permute.xlu0 %2597
  %v2600 = vadd.f32 %v2595, %v2598
  %2601 = vrot.lane.b32.xlu0 %v2595, 96
  %v2602 = vpop.permute.xlu0 %2601
  %v2604 = vadd.f32 %v2600, %v2602
  %v2605 = vmax.f32 %v2604, 0.0
  %v2606 = vand.u32 2147483647, %v2604
  %v2607 = vsub.f32 0.0, %v2606
  %v2608 = vmul.f32 %v2607, 1.442695
  %v2609 = vpow.pop %v2608
  %v2610 = vadd.f32 %v2609, 1.0
  %v2611 = vlog2.pop %v2610
  %v2612 = vmul.f32 %v2611, 0.6931472
  %v2613 = vmul.f32 -0.5, %v2609
  %v2614 = vadd.f32 %v2613, 1.0
  %v2615 = vmul.f32 %v2614, %v2609
  %v2616 = vand.u32 2147483647, %v2609
  %vm2617 = vcmp.lt.f32.partialorder %v2616, 0.0004427343
  %v2618 = vsel %vm2617, %v2615, %v2612
  %v2619 = vadd.f32 %v2605, %v2618
  %2622 = vrot.lane.b32.xlu0 %v2604, 32
  %v2623 = vpop.permute.xlu0 %2622
  %v2625 = vsel %vm81, %v2446, %v2623
  %s2626 = scalar_lea.vmem %s11, 40
  %2627 = vst.msk [vmem:[%s2626] sm:$0xff] %vm274, %v2625
  %s2628 = scalar_lea.vmem %s2, 40
  %v2629 = vld [vmem:[%s2628] sm:$0xff]
  %v2630 = vmul.f32 %v2629, %v2619
  %v2631 = vadd.f32 %v2630, %v2605
  %v2633 = vsel %vm285, %v2631, 0
  %2635 = vmatprep.subr.mxu0 0.0
  %2636 = vmatpush1.msra.mxu0 %v58
  %2637 = vmatprep.subr.mxu0 0.0
  %2638 = vmatpush1.msra.mxu0 %v59
  %2639 = vmatprep.subr.mxu0 0.0
  %2640 = vmatpush1.msra.mxu0 0.0
  %2641 = vmatprep.subr.mxu0 0.0
  %2642 = vmatpush1.msra.mxu0 0.0
  %2643 = vmatprep.subr.mxu0 0.0
  %2644 = vmatpush1.msra.mxu0 0.0
  %2645 = vmatprep.subr.mxu0 0.0
  %2646 = vmatpush1.msra.mxu0 0.0
  %2647 = vmatprep.subr.mxu0 0.0
  %2648 = vmatpush1.msra.mxu0 0.0
  %2649 = vmatprep.subr.mxu0 0.0
  %2650 = vmatpush1.msra.mxu0 0.0
  %2651 = vmatprep.subr.mxu0 0.0
  %2652 = vmatpush1.msra.mxu0 0.0
  %2653 = vmatprep.subr.mxu0 0.0
  %2654 = vmatpush1.msra.mxu0 0.0
  %2655 = vmatprep.subr.mxu0 0.0
  %2656 = vmatpush1.msra.mxu0 0.0
  %2657 = vmatprep.subr.mxu0 0.0
  %2658 = vmatpush1.msra.mxu0 0.0
  %2659 = vmatprep.subr.mxu0 0.0
  %2660 = vmatpush1.msra.mxu0 0.0
  %2661 = vmatprep.subr.mxu0 0.0
  %2662 = vmatpush1.msra.mxu0 0.0
  %2663 = vmatprep.subr.mxu0 0.0
  %2664 = vmatpush1.msra.mxu0 0.0
  %2665 = vmatprep.subr.mxu0 0.0
  %2666 = vmatpush1.msra.mxu0 0.0
  %2667 = vmatprep.subr.mxu0 0.0
  %2668 = vmatpush1.msra.mxu0 0.0
  %2669 = vmatprep.subr.mxu0 0.0
  %2670 = vmatpush1.msra.mxu0 0.0
  %2671 = vmatprep.subr.mxu0 0.0
  %2672 = vmatpush1.msra.mxu0 0.0
  %2673 = vmatprep.subr.mxu0 0.0
  %2674 = vmatpush1.msra.mxu0 0.0
  %2675 = vmatprep.subr.mxu0 0.0
  %2676 = vmatpush1.msra.mxu0 0.0
  %2677 = vmatprep.subr.mxu0 0.0
  %2678 = vmatpush1.msra.mxu0 0.0
  %2679 = vmatprep.subr.mxu0 0.0
  %2680 = vmatpush1.msra.mxu0 0.0
  %2681 = vmatprep.subr.mxu0 0.0
  %2682 = vmatpush1.msra.mxu0 0.0
  %2683 = vmatprep.subr.mxu0 0.0
  %2684 = vmatpush1.msra.mxu0 0.0
  %2685 = vmatprep.subr.mxu0 0.0
  %2686 = vmatpush1.msra.mxu0 0.0
  %2687 = vmatprep.subr.mxu0 0.0
  %2688 = vmatpush1.msra.mxu0 0.0
  %2689 = vmatprep.subr.mxu0 0.0
  %2690 = vmatpush1.msra.mxu0 0.0
  %2691 = vmatprep.subr.mxu0 0.0
  %2692 = vmatpush1.msra.mxu0 0.0
  %2693 = vmatprep.subr.mxu0 0.0
  %2694 = vmatpush1.msra.mxu0 0.0
  %2695 = vmatprep.subr.mxu0 0.0
  %2696 = vmatpush1.msra.mxu0 0.0
  %2697 = vmatprep.subr.mxu0 0.0
  %2698 = vmatpush1.msra.mxu0 0.0
  %2699 = vmatprep.mubr.f32.mxu0 0.0
  %2700 = vmatmul.mubr.f32.gmra.mrb[0].mxu0 %v2633
  %v2701 = vpop.f32.mrb[0].mxu0
  %v2702 = vadd.f32 %v283, %v2701
  %v2703 = vpop.f32.mrb[0].mxu0
  %2704 = vdwg.mxu0
  %v2705 = vmax.f32 %v2702, 0.0
  %s2706 = scalar_lea.vmem %s1, 40
  %v2707 = vld [vmem:[%s2706] sm:$0xff]
  %v2708 = vsel %vm81, %v2705, %v2338
  %v2710 = vsel %vm362, %v2708, 0
  %2712 = vmatprep.subr.mxu0 0.0
  %2713 = vmatpush1.msra.mxu0 %v61
  %2714 = vmatprep.subr.mxu0 0.0
  %2715 = vmatpush1.msra.mxu0 %v62
  %2716 = vmatprep.subr.mxu0 0.0
  %2717 = vmatpush1.msra.mxu0 %v63
  %2718 = vmatprep.subr.mxu0 0.0
  %2719 = vmatpush1.msra.mxu0 %v64
  %2720 = vmatprep.subr.mxu0 0.0
  %2721 = vmatpush1.msra.mxu0 %v65
  %2722 = vmatprep.subr.mxu0 0.0
  %2723 = vmatpush1.msra.mxu0 %v66
  %2724 = vmatprep.subr.mxu0 0.0
  %2725 = vmatpush1.msra.mxu0 %v67
  %2726 = vmatprep.subr.mxu0 0.0
  %2727 = vmatpush1.msra.mxu0 %v68
  %2728 = vmatprep.subr.mxu0 0.0
  %2729 = vmatpush1.msra.mxu0 0.0
  %2730 = vmatprep.subr.mxu0 0.0
  %2731 = vmatpush1.msra.mxu0 0.0
  %2732 = vmatprep.subr.mxu0 0.0
  %2733 = vmatpush1.msra.mxu0 0.0
  %2734 = vmatprep.subr.mxu0 0.0
  %2735 = vmatpush1.msra.mxu0 0.0
  %2736 = vmatprep.subr.mxu0 0.0
  %2737 = vmatpush1.msra.mxu0 0.0
  %2738 = vmatprep.subr.mxu0 0.0
  %2739 = vmatpush1.msra.mxu0 0.0
  %2740 = vmatprep.subr.mxu0 0.0
  %2741 = vmatpush1.msra.mxu0 0.0
  %2742 = vmatprep.subr.mxu0 0.0
  %2743 = vmatpush1.msra.mxu0 0.0
  %2744 = vmatprep.subr.mxu0 0.0
  %2745 = vmatpush1.msra.mxu0 0.0
  %2746 = vmatprep.subr.mxu0 0.0
  %2747 = vmatpush1.msra.mxu0 0.0
  %2748 = vmatprep.subr.mxu0 0.0
  %2749 = vmatpush1.msra.mxu0 0.0
  %2750 = vmatprep.subr.mxu0 0.0
  %2751 = vmatpush1.msra.mxu0 0.0
  %2752 = vmatprep.subr.mxu0 0.0
  %2753 = vmatpush1.msra.mxu0 0.0
  %2754 = vmatprep.subr.mxu0 0.0
  %2755 = vmatpush1.msra.mxu0 0.0
  %2756 = vmatprep.subr.mxu0 0.0
  %2757 = vmatpush1.msra.mxu0 0.0
  %2758 = vmatprep.subr.mxu0 0.0
  %2759 = vmatpush1.msra.mxu0 0.0
  %2760 = vmatprep.subr.mxu0 0.0
  %2761 = vmatpush1.msra.mxu0 0.0
  %2762 = vmatprep.subr.mxu0 0.0
  %2763 = vmatpush1.msra.mxu0 0.0
  %2764 = vmatprep.subr.mxu0 0.0
  %2765 = vmatpush1.msra.mxu0 0.0
  %2766 = vmatprep.subr.mxu0 0.0
  %2767 = vmatpush1.msra.mxu0 0.0
  %2768 = vmatprep.subr.mxu0 0.0
  %2769 = vmatpush1.msra.mxu0 0.0
  %2770 = vmatprep.subr.mxu0 0.0
  %2771 = vmatpush1.msra.mxu0 0.0
  %2772 = vmatprep.subr.mxu0 0.0
  %2773 = vmatpush1.msra.mxu0 0.0
  %2774 = vmatprep.subr.mxu0 0.0
  %2775 = vmatpush1.msra.mxu0 0.0
  %2776 = vmatprep.mubr.f32.mxu0 0.0
  %2777 = vmatmul.mubr.f32.gmra.mrb[0].mxu0 %v2710
  %v2778 = vpop.f32.mrb[0].mxu0
  %v2779 = vadd.f32 %v2707, %v2778
  %v2780 = vpop.f32.mrb[0].mxu0
  %2781 = vdwg.mxu0
  %v2782 = vxor.u32 %v2779, 2147483648
  %v2783 = vmul.f32 %v2782, 1.442695
  %v2784 = vpow.pop %v2783
  %v2785 = vadd.f32 %v2784, 1.0
  %v2786 = vrcp.pop %v2785
  %v2787 = vmul.f32 1.0, %v2786
  %2789 = vrot.lane.b32.xlu0 %v2779, 32
  %v2790 = vpop.permute.xlu0 %2789
  %v2792 = vmul.f32 %v2787, %v2790
  %2794 = vrot.lane.b32.xlu0 %v2792, 64
  %v2795 = vpop.permute.xlu0 %2794
  %v2797 = vadd.f32 %v2779, %v2795
  %v2798 = vtanh.pop %v2797
  %v2799 = vsub.f32 1.0, %v2787
  %2801 = vrot.lane.b32.xlu0 %v2798, 96
  %v2802 = vpop.permute.xlu0 %2801
  %v2804 = vmul.f32 %v2799, %v2802
  %v2805 = vmul.f32 %v2787, %v2338
  %v2806 = vadd.f32 %v2804, %v2805
  %2808 = vrot.lane.b32.xlu0 %v2806, 96
  %v2809 = vpop.permute.xlu0 %2808
  %v2811 = vsel %vm81, %v2809, %v2441
  %v2813 = vsel %vm362, %v2811, 0
  %2815 = vmatprep.subr.mxu0 0.0
  %2816 = vmatpush1.msra.mxu0 %v70
  %2817 = vmatprep.subr.mxu0 0.0
  %2818 = vmatpush1.msra.mxu0 %v71
  %2819 = vmatprep.subr.mxu0 0.0
  %2820 = vmatpush1.msra.mxu0 %v72
  %2821 = vmatprep.subr.mxu0 0.0
  %2822 = vmatpush1.msra.mxu0 %v73
  %2823 = vmatprep.subr.mxu0 0.0
  %2824 = vmatpush1.msra.mxu0 %v74
  %2825 = vmatprep.subr.mxu0 0.0
  %2826 = vmatpush1.msra.mxu0 %v75
  %2827 = vmatprep.subr.mxu0 0.0
  %2828 = vmatpush1.msra.mxu0 %v76
  %2829 = vmatprep.subr.mxu0 0.0
  %2830 = vmatpush1.msra.mxu0 %v77
  %2831 = vmatprep.subr.mxu0 0.0
  %2832 = vmatpush1.msra.mxu0 0.0
  %2833 = vmatprep.subr.mxu0 0.0
  %2834 = vmatpush1.msra.mxu0 0.0
  %2835 = vmatprep.subr.mxu0 0.0
  %2836 = vmatpush1.msra.mxu0 0.0
  %2837 = vmatprep.subr.mxu0 0.0
  %2838 = vmatpush1.msra.mxu0 0.0
  %2839 = vmatprep.subr.mxu0 0.0
  %2840 = vmatpush1.msra.mxu0 0.0
  %2841 = vmatprep.subr.mxu0 0.0
  %2842 = vmatpush1.msra.mxu0 0.0
  %2843 = vmatprep.subr.mxu0 0.0
  %2844 = vmatpush1.msra.mxu0 0.0
  %2845 = vmatprep.subr.mxu0 0.0
  %2846 = vmatpush1.msra.mxu0 0.0
  %2847 = vmatprep.subr.mxu0 0.0
  %2848 = vmatpush1.msra.mxu0 0.0
  %2849 = vmatprep.subr.mxu0 0.0
  %2850 = vmatpush1.msra.mxu0 0.0
  %2851 = vmatprep.subr.mxu0 0.0
  %2852 = vmatpush1.msra.mxu0 0.0
  %2853 = vmatprep.subr.mxu0 0.0
  %2854 = vmatpush1.msra.mxu0 0.0
  %2855 = vmatprep.subr.mxu0 0.0
  %2856 = vmatpush1.msra.mxu0 0.0
  %2857 = vmatprep.subr.mxu0 0.0
  %2858 = vmatpush1.msra.mxu0 0.0
  %2859 = vmatprep.subr.mxu0 0.0
  %2860 = vmatpush1.msra.mxu0 0.0
  %2861 = vmatprep.subr.mxu0 0.0
  %2862 = vmatpush1.msra.mxu0 0.0
  %2863 = vmatprep.subr.mxu0 0.0
  %2864 = vmatpush1.msra.mxu0 0.0
  %2865 = vmatprep.subr.mxu0 0.0
  %2866 = vmatpush1.msra.mxu0 0.0
  %2867 = vmatprep.subr.mxu0 0.0
  %2868 = vmatpush1.msra.mxu0 0.0
  %2869 = vmatprep.subr.mxu0 0.0
  %2870 = vmatpush1.msra.mxu0 0.0
  %2871 = vmatprep.subr.mxu0 0.0
  %2872 = vmatpush1.msra.mxu0 0.0
  %2873 = vmatprep.subr.mxu0 0.0
  %2874 = vmatpush1.msra.mxu0 0.0
  %2875 = vmatprep.subr.mxu0 0.0
  %2876 = vmatpush1.msra.mxu0 0.0
  %2877 = vmatprep.subr.mxu0 0.0
  %2878 = vmatpush1.msra.mxu0 0.0
  %2879 = vmatprep.mubr.f32.mxu0 0.0
  %2880 = vmatmul.mubr.f32.gmra.mrb[0].mxu0 %v2813
  %v2881 = vpop.f32.mrb[0].mxu0
  %v2882 = vadd.f32 %v470, %v2881
  %v2883 = vpop.f32.mrb[0].mxu0
  %2884 = vdwg.mxu0
  %v2885 = vxor.u32 %v2882, 2147483648
  %v2886 = vmul.f32 %v2885, 1.442695
  %v2887 = vpow.pop %v2886
  %v2888 = vadd.f32 %v2887, 1.0
  %v2889 = vrcp.pop %v2888
  %v2890 = vmul.f32 1.0, %v2889
  %2892 = vrot.lane.b32.xlu0 %v2882, 32
  %v2893 = vpop.permute.xlu0 %2892
  %v2895 = vmul.f32 %v2890, %v2893
  %2897 = vrot.lane.b32.xlu0 %v2895, 64
  %v2898 = vpop.permute.xlu0 %2897
  %v2900 = vadd.f32 %v2882, %v2898
  %v2901 = vtanh.pop %v2900
  %v2902 = vsub.f32 1.0, %v2890
  %2904 = vrot.lane.b32.xlu0 %v2901, 96
  %v2905 = vpop.permute.xlu0 %2904
  %v2907 = vmul.f32 %v2902, %v2905
  %v2908 = vmul.f32 %v2890, %v2441
  %v2909 = vadd.f32 %v2907, %v2908
  %s2910 = scalar_lea.vmem %s0, 48
  %v2911 = vld [vmem:[%s2910] sm:$0xff]
  %2913 = vrot.lane.b32.xlu0 %v2909, 96
  %v2914 = vpop.permute.xlu0 %2913
  %v2915 = vsel %vm81, %v2914, 0
  %2917 = vmatprep.subr.mxu0 0.0
  %2918 = vmatpush1.msra.mxu0 %v40
  %2919 = vmatprep.subr.mxu0 0.0
  %2920 = vmatpush1.msra.mxu0 %v41
  %2921 = vmatprep.subr.mxu0 0.0
  %2922 = vmatpush1.msra.mxu0 %v42
  %2923 = vmatprep.subr.mxu0 0.0
  %2924 = vmatpush1.msra.mxu0 %v43
  %2925 = vmatprep.subr.mxu0 0.0
  %2926 = vmatpush1.msra.mxu0 0.0
  %2927 = vmatprep.subr.mxu0 0.0
  %2928 = vmatpush1.msra.mxu0 0.0
  %2929 = vmatprep.subr.mxu0 0.0
  %2930 = vmatpush1.msra.mxu0 0.0
  %2931 = vmatprep.subr.mxu0 0.0
  %2932 = vmatpush1.msra.mxu0 0.0
  %2933 = vmatprep.subr.mxu0 0.0
  %2934 = vmatpush1.msra.mxu0 0.0
  %2935 = vmatprep.subr.mxu0 0.0
  %2936 = vmatpush1.msra.mxu0 0.0
  %2937 = vmatprep.subr.mxu0 0.0
  %2938 = vmatpush1.msra.mxu0 0.0
  %2939 = vmatprep.subr.mxu0 0.0
  %2940 = vmatpush1.msra.mxu0 0.0
  %2941 = vmatprep.subr.mxu0 0.0
  %2942 = vmatpush1.msra.mxu0 0.0
  %2943 = vmatprep.subr.mxu0 0.0
  %2944 = vmatpush1.msra.mxu0 0.0
  %2945 = vmatprep.subr.mxu0 0.0
  %2946 = vmatpush1.msra.mxu0 0.0
  %2947 = vmatprep.subr.mxu0 0.0
  %2948 = vmatpush1.msra.mxu0 0.0
  %2949 = vmatprep.subr.mxu0 0.0
  %2950 = vmatpush1.msra.mxu0 0.0
  %2951 = vmatprep.subr.mxu0 0.0
  %2952 = vmatpush1.msra.mxu0 0.0
  %2953 = vmatprep.subr.mxu0 0.0
  %2954 = vmatpush1.msra.mxu0 0.0
  %2955 = vmatprep.subr.mxu0 0.0
  %2956 = vmatpush1.msra.mxu0 0.0
  %2957 = vmatprep.subr.mxu0 0.0
  %2958 = vmatpush1.msra.mxu0 0.0
  %2959 = vmatprep.subr.mxu0 0.0
  %2960 = vmatpush1.msra.mxu0 0.0
  %2961 = vmatprep.subr.mxu0 0.0
  %2962 = vmatpush1.msra.mxu0 0.0
  %2963 = vmatprep.subr.mxu0 0.0
  %2964 = vmatpush1.msra.mxu0 0.0
  %2965 = vmatprep.subr.mxu0 0.0
  %2966 = vmatpush1.msra.mxu0 0.0
  %2967 = vmatprep.subr.mxu0 0.0
  %2968 = vmatpush1.msra.mxu0 0.0
  %2969 = vmatprep.subr.mxu0 0.0
  %2970 = vmatpush1.msra.mxu0 0.0
  %2971 = vmatprep.subr.mxu0 0.0
  %2972 = vmatpush1.msra.mxu0 0.0
  %2973 = vmatprep.subr.mxu0 0.0
  %2974 = vmatpush1.msra.mxu0 0.0
  %2975 = vmatprep.subr.mxu0 0.0
  %2976 = vmatpush1.msra.mxu0 0.0
  %2977 = vmatprep.subr.mxu0 0.0
  %2978 = vmatpush1.msra.mxu0 0.0
  %2979 = vmatprep.subr.mxu0 0.0
  %2980 = vmatpush1.msra.mxu0 0.0
  %2981 = vmatprep.mubr.f32.mxu0 0.0
  %2982 = vmatmul.mubr.f32.gmra.mrb[0].mxu0 %v2915
  %v2983 = vpop.f32.mrb[0].mxu0
  %v2984 = vadd.f32 0.0, %v2983
  %v2985 = vpop.f32.mrb[0].mxu0
  %2986 = vdwg.mxu0
  %v2987 = vadd.f32 %v2911, %v2984
  %v2988 = vmax.f32 %v2987, 0.0
  %v2990 = vsel %vm163, %v2988, 0
  %2992 = vmatprep.subr.mxu0 0.0
  %2993 = vmatpush1.msra.mxu0 %v44
  %2994 = vmatprep.subr.mxu0 0.0
  %2995 = vmatpush1.msra.mxu0 %v45
  %2996 = vmatprep.subr.mxu0 0.0
  %2997 = vmatpush1.msra.mxu0 %v46
  %2998 = vmatprep.subr.mxu0 0.0
  %2999 = vmatpush1.msra.mxu0 %v47
  %3000 = vmatprep.subr.mxu0 0.0
  %3001 = vmatpush1.msra.mxu0 %v48
  %3002 = vmatprep.subr.mxu0 0.0
  %3003 = vmatpush1.msra.mxu0 %v49
  %3004 = vmatprep.subr.mxu0 0.0
  %3005 = vmatpush1.msra.mxu0 %v50
  %3006 = vmatprep.subr.mxu0 0.0
  %3007 = vmatpush1.msra.mxu0 %v51
  %3008 = vmatprep.subr.mxu0 0.0
  %3009 = vmatpush1.msra.mxu0 %v52
  %3010 = vmatprep.subr.mxu0 0.0
  %3011 = vmatpush1.msra.mxu0 %v53
  %3012 = vmatprep.subr.mxu0 0.0
  %3013 = vmatpush1.msra.mxu0 %v54
  %3014 = vmatprep.subr.mxu0 0.0
  %3015 = vmatpush1.msra.mxu0 %v55
  %3016 = vmatprep.subr.mxu0 0.0
  %3017 = vmatpush1.msra.mxu0 0.0
  %3018 = vmatprep.subr.mxu0 0.0
  %3019 = vmatpush1.msra.mxu0 0.0
  %3020 = vmatprep.subr.mxu0 0.0
  %3021 = vmatpush1.msra.mxu0 0.0
  %3022 = vmatprep.subr.mxu0 0.0
  %3023 = vmatpush1.msra.mxu0 0.0
  %3024 = vmatprep.subr.mxu0 0.0
  %3025 = vmatpush1.msra.mxu0 0.0
  %3026 = vmatprep.subr.mxu0 0.0
  %3027 = vmatpush1.msra.mxu0 0.0
  %3028 = vmatprep.subr.mxu0 0.0
  %3029 = vmatpush1.msra.mxu0 0.0
  %3030 = vmatprep.subr.mxu0 0.0
  %3031 = vmatpush1.msra.mxu0 0.0
  %3032 = vmatprep.subr.mxu0 0.0
  %3033 = vmatpush1.msra.mxu0 0.0
  %3034 = vmatprep.subr.mxu0 0.0
  %3035 = vmatpush1.msra.mxu0 0.0
  %3036 = vmatprep.subr.mxu0 0.0
  %3037 = vmatpush1.msra.mxu0 0.0
  %3038 = vmatprep.subr.mxu0 0.0
  %3039 = vmatpush1.msra.mxu0 0.0
  %3040 = vmatprep.subr.mxu0 0.0
  %3041 = vmatpush1.msra.mxu0 0.0
  %3042 = vmatprep.subr.mxu0 0.0
  %3043 = vmatpush1.msra.mxu0 0.0
  %3044 = vmatprep.subr.mxu0 0.0
  %3045 = vmatpush1.msra.mxu0 0.0
  %3046 = vmatprep.subr.mxu0 0.0
  %3047 = vmatpush1.msra.mxu0 0.0
  %3048 = vmatprep.subr.mxu0 0.0
  %3049 = vmatpush1.msra.mxu0 0.0
  %3050 = vmatprep.subr.mxu0 0.0
  %3051 = vmatpush1.msra.mxu0 0.0
  %3052 = vmatprep.subr.mxu0 0.0
  %3053 = vmatpush1.msra.mxu0 0.0
  %3054 = vmatprep.subr.mxu0 0.0
  %3055 = vmatpush1.msra.mxu0 0.0
  %3056 = vmatprep.mubr.f32.mxu0 0.0
  %3057 = vmatmul.mubr.f32.gmra.mrb[0].mxu0 %v2990
  %v3058 = vpop.f32.mrb[0].mxu0
  %v3059 = vadd.f32 %v161, %v3058
  %v3060 = vpop.f32.mrb[0].mxu0
  %3061 = vdwg.mxu0
  %v3062 = vmax.f32 %v3059, 0.0
  %v3063 = vmul.f32 %v3062, %v242
  %3065 = vrot.lane.b32.xlu0 %v3063, 112
  %v3066 = vpop.permute.xlu0 %3065
  %v3068 = vadd.f32 %v3063, %v3066
  %3069 = vrot.lane.b32.xlu0 %v3063, 96
  %v3070 = vpop.permute.xlu0 %3069
  %v3072 = vadd.f32 %v3068, %v3070
  %v3073 = vmax.f32 %v3072, 0.0
  %v3074 = vand.u32 2147483647, %v3072
  %v3075 = vsub.f32 0.0, %v3074
  %v3076 = vmul.f32 %v3075, 1.442695
  %v3077 = vpow.pop %v3076
  %v3078 = vadd.f32 %v3077, 1.0
  %v3079 = vlog2.pop %v3078
  %v3080 = vmul.f32 %v3079, 0.6931472
  %v3081 = vmul.f32 -0.5, %v3077
  %v3082 = vadd.f32 %v3081, 1.0
  %v3083 = vmul.f32 %v3082, %v3077
  %v3084 = vand.u32 2147483647, %v3077
  %vm3085 = vcmp.lt.f32.partialorder %v3084, 0.0004427343
  %v3086 = vsel %vm3085, %v3083, %v3080
  %v3087 = vadd.f32 %v3073, %v3086
  %3090 = vrot.lane.b32.xlu0 %v3072, 32
  %v3091 = vpop.permute.xlu0 %3090
  %v3093 = vsel %vm81, %v2914, %v3091
  %s3094 = scalar_lea.vmem %s11, 48
  %3095 = vst.msk [vmem:[%s3094] sm:$0xff] %vm274, %v3093
  %s3096 = scalar_lea.vmem %s2, 48
  %v3097 = vld [vmem:[%s3096] sm:$0xff]
  %v3098 = vmul.f32 %v3097, %v3087
  %v3099 = vadd.f32 %v3098, %v3073
  %v3101 = vsel %vm285, %v3099, 0
  %3103 = vmatprep.subr.mxu0 0.0
  %3104 = vmatpush1.msra.mxu0 %v58
  %3105 = vmatprep.subr.mxu0 0.0
  %3106 = vmatpush1.msra.mxu0 %v59
  %3107 = vmatprep.subr.mxu0 0.0
  %3108 = vmatpush1.msra.mxu0 0.0
  %3109 = vmatprep.subr.mxu0 0.0
  %3110 = vmatpush1.msra.mxu0 0.0
  %3111 = vmatprep.subr.mxu0 0.0
  %3112 = vmatpush1.msra.mxu0 0.0
  %3113 = vmatprep.subr.mxu0 0.0
  %3114 = vmatpush1.msra.mxu0 0.0
  %3115 = vmatprep.subr.mxu0 0.0
  %3116 = vmatpush1.msra.mxu0 0.0
  %3117 = vmatprep.subr.mxu0 0.0
  %3118 = vmatpush1.msra.mxu0 0.0
  %3119 = vmatprep.subr.mxu0 0.0
  %3120 = vmatpush1.msra.mxu0 0.0
  %3121 = vmatprep.subr.mxu0 0.0
  %3122 = vmatpush1.msra.mxu0 0.0
  %3123 = vmatprep.subr.mxu0 0.0
  %3124 = vmatpush1.msra.mxu0 0.0
  %3125 = vmatprep.subr.mxu0 0.0
  %3126 = vmatpush1.msra.mxu0 0.0
  %3127 = vmatprep.subr.mxu0 0.0
  %3128 = vmatpush1.msra.mxu0 0.0
  %3129 = vmatprep.subr.mxu0 0.0
  %3130 = vmatpush1.msra.mxu0 0.0
  %3131 = vmatprep.subr.mxu0 0.0
  %3132 = vmatpush1.msra.mxu0 0.0
  %3133 = vmatprep.subr.mxu0 0.0
  %3134 = vmatpush1.msra.mxu0 0.0
  %3135 = vmatprep.subr.mxu0 0.0
  %3136 = vmatpush1.msra.mxu0 0.0
  %3137 = vmatprep.subr.mxu0 0.0
  %3138 = vmatpush1.msra.mxu0 0.0
  %3139 = vmatprep.subr.mxu0 0.0
  %3140 = vmatpush1.msra.mxu0 0.0
  %3141 = vmatprep.subr.mxu0 0.0
  %3142 = vmatpush1.msra.mxu0 0.0
  %3143 = vmatprep.subr.mxu0 0.0
  %3144 = vmatpush1.msra.mxu0 0.0
  %3145 = vmatprep.subr.mxu0 0.0
  %3146 = vmatpush1.msra.mxu0 0.0
  %3147 = vmatprep.subr.mxu0 0.0
  %3148 = vmatpush1.msra.mxu0 0.0
  %3149 = vmatprep.subr.mxu0 0.0
  %3150 = vmatpush1.msra.mxu0 0.0
  %3151 = vmatprep.subr.mxu0 0.0
  %3152 = vmatpush1.msra.mxu0 0.0
  %3153 = vmatprep.subr.mxu0 0.0
  %3154 = vmatpush1.msra.mxu0 0.0
  %3155 = vmatprep.subr.mxu0 0.0
  %3156 = vmatpush1.msra.mxu0 0.0
  %3157 = vmatprep.subr.mxu0 0.0
  %3158 = vmatpush1.msra.mxu0 0.0
  %3159 = vmatprep.subr.mxu0 0.0
  %3160 = vmatpush1.msra.mxu0 0.0
  %3161 = vmatprep.subr.mxu0 0.0
  %3162 = vmatpush1.msra.mxu0 0.0
  %3163 = vmatprep.subr.mxu0 0.0
  %3164 = vmatpush1.msra.mxu0 0.0
  %3165 = vmatprep.subr.mxu0 0.0
  %3166 = vmatpush1.msra.mxu0 0.0
  %3167 = vmatprep.mubr.f32.mxu0 0.0
  %3168 = vmatmul.mubr.f32.gmra.mrb[0].mxu0 %v3101
  %v3169 = vpop.f32.mrb[0].mxu0
  %v3170 = vadd.f32 %v283, %v3169
  %v3171 = vpop.f32.mrb[0].mxu0
  %3172 = vdwg.mxu0
  %v3173 = vmax.f32 %v3170, 0.0
  %s3174 = scalar_lea.vmem %s1, 48
  %v3175 = vld [vmem:[%s3174] sm:$0xff]
  %v3176 = vsel %vm81, %v3173, %v2806
  %v3178 = vsel %vm362, %v3176, 0
  %3180 = vmatprep.subr.mxu0 0.0
  %3181 = vmatpush1.msra.mxu0 %v61
  %3182 = vmatprep.subr.mxu0 0.0
  %3183 = vmatpush1.msra.mxu0 %v62
  %3184 = vmatprep.subr.mxu0 0.0
  %3185 = vmatpush1.msra.mxu0 %v63
  %3186 = vmatprep.subr.mxu0 0.0
  %3187 = vmatpush1.msra.mxu0 %v64
  %3188 = vmatprep.subr.mxu0 0.0
  %3189 = vmatpush1.msra.mxu0 %v65
  %3190 = vmatprep.subr.mxu0 0.0
  %3191 = vmatpush1.msra.mxu0 %v66
  %3192 = vmatprep.subr.mxu0 0.0
  %3193 = vmatpush1.msra.mxu0 %v67
  %3194 = vmatprep.subr.mxu0 0.0
  %3195 = vmatpush1.msra.mxu0 %v68
  %3196 = vmatprep.subr.mxu0 0.0
  %3197 = vmatpush1.msra.mxu0 0.0
  %3198 = vmatprep.subr.mxu0 0.0
  %3199 = vmatpush1.msra.mxu0 0.0
  %3200 = vmatprep.subr.mxu0 0.0
  %3201 = vmatpush1.msra.mxu0 0.0
  %3202 = vmatprep.subr.mxu0 0.0
  %3203 = vmatpush1.msra.mxu0 0.0
  %3204 = vmatprep.subr.mxu0 0.0
  %3205 = vmatpush1.msra.mxu0 0.0
  %3206 = vmatprep.subr.mxu0 0.0
  %3207 = vmatpush1.msra.mxu0 0.0
  %3208 = vmatprep.subr.mxu0 0.0
  %3209 = vmatpush1.msra.mxu0 0.0
  %3210 = vmatprep.subr.mxu0 0.0
  %3211 = vmatpush1.msra.mxu0 0.0
  %3212 = vmatprep.subr.mxu0 0.0
  %3213 = vmatpush1.msra.mxu0 0.0
  %3214 = vmatprep.subr.mxu0 0.0
  %3215 = vmatpush1.msra.mxu0 0.0
  %3216 = vmatprep.subr.mxu0 0.0
  %3217 = vmatpush1.msra.mxu0 0.0
  %3218 = vmatprep.subr.mxu0 0.0
  %3219 = vmatpush1.msra.mxu0 0.0
  %3220 = vmatprep.subr.mxu0 0.0
  %3221 = vmatpush1.msra.mxu0 0.0
  %3222 = vmatprep.subr.mxu0 0.0
  %3223 = vmatpush1.msra.mxu0 0.0
  %3224 = vmatprep.subr.mxu0 0.0
  %3225 = vmatpush1.msra.mxu0 0.0
  %3226 = vmatprep.subr.mxu0 0.0
  %3227 = vmatpush1.msra.mxu0 0.0
  %3228 = vmatprep.subr.mxu0 0.0
  %3229 = vmatpush1.msra.mxu0 0.0
  %3230 = vmatprep.subr.mxu0 0.0
  %3231 = vmatpush1.msra.mxu0 0.0
  %3232 = vmatprep.subr.mxu0 0.0
  %3233 = vmatpush1.msra.mxu0 0.0
  %3234 = vmatprep.subr.mxu0 0.0
  %3235 = vmatpush1.msra.mxu0 0.0
  %3236 = vmatprep.subr.mxu0 0.0
  %3237 = vmatpush1.msra.mxu0 0.0
  %3238 = vmatprep.subr.mxu0 0.0
  %3239 = vmatpush1.msra.mxu0 0.0
  %3240 = vmatprep.subr.mxu0 0.0
  %3241 = vmatpush1.msra.mxu0 0.0
  %3242 = vmatprep.subr.mxu0 0.0
  %3243 = vmatpush1.msra.mxu0 0.0
  %3244 = vmatprep.mubr.f32.mxu0 0.0
  %3245 = vmatmul.mubr.f32.gmra.mrb[0].mxu0 %v3178
  %v3246 = vpop.f32.mrb[0].mxu0
  %v3247 = vadd.f32 %v3175, %v3246
  %v3248 = vpop.f32.mrb[0].mxu0
  %3249 = vdwg.mxu0
  %v3250 = vxor.u32 %v3247, 2147483648
  %v3251 = vmul.f32 %v3250, 1.442695
  %v3252 = vpow.pop %v3251
  %v3253 = vadd.f32 %v3252, 1.0
  %v3254 = vrcp.pop %v3253
  %v3255 = vmul.f32 1.0, %v3254
  %3257 = vrot.lane.b32.xlu0 %v3247, 32
  %v3258 = vpop.permute.xlu0 %3257
  %v3260 = vmul.f32 %v3255, %v3258
  %3262 = vrot.lane.b32.xlu0 %v3260, 64
  %v3263 = vpop.permute.xlu0 %3262
  %v3265 = vadd.f32 %v3247, %v3263
  %v3266 = vtanh.pop %v3265
  %v3267 = vsub.f32 1.0, %v3255
  %3269 = vrot.lane.b32.xlu0 %v3266, 96
  %v3270 = vpop.permute.xlu0 %3269
  %v3272 = vmul.f32 %v3267, %v3270
  %v3273 = vmul.f32 %v3255, %v2806
  %v3274 = vadd.f32 %v3272, %v3273
  %3276 = vrot.lane.b32.xlu0 %v3274, 96
  %v3277 = vpop.permute.xlu0 %3276
  %v3279 = vsel %vm81, %v3277, %v2909
  %v3281 = vsel %vm362, %v3279, 0
  %3283 = vmatprep.subr.mxu0 0.0
  %3284 = vmatpush1.msra.mxu0 %v70
  %3285 = vmatprep.subr.mxu0 0.0
  %3286 = vmatpush1.msra.mxu0 %v71
  %3287 = vmatprep.subr.mxu0 0.0
  %3288 = vmatpush1.msra.mxu0 %v72
  %3289 = vmatprep.subr.mxu0 0.0
  %3290 = vmatpush1.msra.mxu0 %v73
  %3291 = vmatprep.subr.mxu0 0.0
  %3292 = vmatpush1.msra.mxu0 %v74
  %3293 = vmatprep.subr.mxu0 0.0
  %3294 = vmatpush1.msra.mxu0 %v75
  %3295 = vmatprep.subr.mxu0 0.0
  %3296 = vmatpush1.msra.mxu0 %v76
  %3297 = vmatprep.subr.mxu0 0.0
  %3298 = vmatpush1.msra.mxu0 %v77
  %3299 = vmatprep.subr.mxu0 0.0
  %3300 = vmatpush1.msra.mxu0 0.0
  %3301 = vmatprep.subr.mxu0 0.0
  %3302 = vmatpush1.msra.mxu0 0.0
  %3303 = vmatprep.subr.mxu0 0.0
  %3304 = vmatpush1.msra.mxu0 0.0
  %3305 = vmatprep.subr.mxu0 0.0
  %3306 = vmatpush1.msra.mxu0 0.0
  %3307 = vmatprep.subr.mxu0 0.0
  %3308 = vmatpush1.msra.mxu0 0.0
  %3309 = vmatprep.subr.mxu0 0.0
  %3310 = vmatpush1.msra.mxu0 0.0
  %3311 = vmatprep.subr.mxu0 0.0
  %3312 = vmatpush1.msra.mxu0 0.0
  %3313 = vmatprep.subr.mxu0 0.0
  %3314 = vmatpush1.msra.mxu0 0.0
  %3315 = vmatprep.subr.mxu0 0.0
  %3316 = vmatpush1.msra.mxu0 0.0
  %3317 = vmatprep.subr.mxu0 0.0
  %3318 = vmatpush1.msra.mxu0 0.0
  %3319 = vmatprep.subr.mxu0 0.0
  %3320 = vmatpush1.msra.mxu0 0.0
  %3321 = vmatprep.subr.mxu0 0.0
  %3322 = vmatpush1.msra.mxu0 0.0
  %3323 = vmatprep.subr.mxu0 0.0
  %3324 = vmatpush1.msra.mxu0 0.0
  %3325 = vmatprep.subr.mxu0 0.0
  %3326 = vmatpush1.msra.mxu0 0.0
  %3327 = vmatprep.subr.mxu0 0.0
  %3328 = vmatpush1.msra.mxu0 0.0
  %3329 = vmatprep.subr.mxu0 0.0
  %3330 = vmatpush1.msra.mxu0 0.0
  %3331 = vmatprep.subr.mxu0 0.0
  %3332 = vmatpush1.msra.mxu0 0.0
  %3333 = vmatprep.subr.mxu0 0.0
  %3334 = vmatpush1.msra.mxu0 0.0
  %3335 = vmatprep.subr.mxu0 0.0
  %3336 = vmatpush1.msra.mxu0 0.0
  %3337 = vmatprep.subr.mxu0 0.0
  %3338 = vmatpush1.msra.mxu0 0.0
  %3339 = vmatprep.subr.mxu0 0.0
  %3340 = vmatpush1.msra.mxu0 0.0
  %3341 = vmatprep.subr.mxu0 0.0
  %3342 = vmatpush1.msra.mxu0 0.0
  %3343 = vmatprep.subr.mxu0 0.0
  %3344 = vmatpush1.msra.mxu0 0.0
  %3345 = vmatprep.subr.mxu0 0.0
  %3346 = vmatpush1.msra.mxu0 0.0
  %3347 = vmatprep.mubr.f32.mxu0 0.0
  %3348 = vmatmul.mubr.f32.gmra.mrb[0].mxu0 %v3281
  %v3349 = vpop.f32.mrb[0].mxu0
  %v3350 = vadd.f32 %v470, %v3349
  %v3351 = vpop.f32.mrb[0].mxu0
  %3352 = vdwg.mxu0
  %v3353 = vxor.u32 %v3350, 2147483648
  %v3354 = vmul.f32 %v3353, 1.442695
  %v3355 = vpow.pop %v3354
  %v3356 = vadd.f32 %v3355, 1.0
  %v3357 = vrcp.pop %v3356
  %v3358 = vmul.f32 1.0, %v3357
  %3360 = vrot.lane.b32.xlu0 %v3350, 32
  %v3361 = vpop.permute.xlu0 %3360
  %v3363 = vmul.f32 %v3358, %v3361
  %3365 = vrot.lane.b32.xlu0 %v3363, 64
  %v3366 = vpop.permute.xlu0 %3365
  %v3368 = vadd.f32 %v3350, %v3366
  %v3369 = vtanh.pop %v3368
  %v3370 = vsub.f32 1.0, %v3358
  %3372 = vrot.lane.b32.xlu0 %v3369, 96
  %v3373 = vpop.permute.xlu0 %3372
  %v3375 = vmul.f32 %v3370, %v3373
  %v3376 = vmul.f32 %v3358, %v2909
  %v3377 = vadd.f32 %v3375, %v3376
  %s3378 = scalar_lea.vmem %s0, 56
  %v3379 = vld [vmem:[%s3378] sm:$0xff]
  %3381 = vrot.lane.b32.xlu0 %v3377, 96
  %v3382 = vpop.permute.xlu0 %3381
  %v3383 = vsel %vm81, %v3382, 0
  %3385 = vmatprep.subr.mxu0 0.0
  %3386 = vmatpush1.msra.mxu0 %v40
  %3387 = vmatprep.subr.mxu0 0.0
  %3388 = vmatpush1.msra.mxu0 %v41
  %3389 = vmatprep.subr.mxu0 0.0
  %3390 = vmatpush1.msra.mxu0 %v42
  %3391 = vmatprep.subr.mxu0 0.0
  %3392 = vmatpush1.msra.mxu0 %v43
  %3393 = vmatprep.subr.mxu0 0.0
  %3394 = vmatpush1.msra.mxu0 0.0
  %3395 = vmatprep.subr.mxu0 0.0
  %3396 = vmatpush1.msra.mxu0 0.0
  %3397 = vmatprep.subr.mxu0 0.0
  %3398 = vmatpush1.msra.mxu0 0.0
  %3399 = vmatprep.subr.mxu0 0.0
  %3400 = vmatpush1.msra.mxu0 0.0
  %3401 = vmatprep.subr.mxu0 0.0
  %3402 = vmatpush1.msra.mxu0 0.0
  %3403 = vmatprep.subr.mxu0 0.0
  %3404 = vmatpush1.msra.mxu0 0.0
  %3405 = vmatprep.subr.mxu0 0.0
  %3406 = vmatpush1.msra.mxu0 0.0
  %3407 = vmatprep.subr.mxu0 0.0
  %3408 = vmatpush1.msra.mxu0 0.0
  %3409 = vmatprep.subr.mxu0 0.0
  %3410 = vmatpush1.msra.mxu0 0.0
  %3411 = vmatprep.subr.mxu0 0.0
  %3412 = vmatpush1.msra.mxu0 0.0
  %3413 = vmatprep.subr.mxu0 0.0
  %3414 = vmatpush1.msra.mxu0 0.0
  %3415 = vmatprep.subr.mxu0 0.0
  %3416 = vmatpush1.msra.mxu0 0.0
  %3417 = vmatprep.subr.mxu0 0.0
  %3418 = vmatpush1.msra.mxu0 0.0
  %3419 = vmatprep.subr.mxu0 0.0
  %3420 = vmatpush1.msra.mxu0 0.0
  %3421 = vmatprep.subr.mxu0 0.0
  %3422 = vmatpush1.msra.mxu0 0.0
  %3423 = vmatprep.subr.mxu0 0.0
  %3424 = vmatpush1.msra.mxu0 0.0
  %3425 = vmatprep.subr.mxu0 0.0
  %3426 = vmatpush1.msra.mxu0 0.0
  %3427 = vmatprep.subr.mxu0 0.0
  %3428 = vmatpush1.msra.mxu0 0.0
  %3429 = vmatprep.subr.mxu0 0.0
  %3430 = vmatpush1.msra.mxu0 0.0
  %3431 = vmatprep.subr.mxu0 0.0
  %3432 = vmatpush1.msra.mxu0 0.0
  %3433 = vmatprep.subr.mxu0 0.0
  %3434 = vmatpush1.msra.mxu0 0.0
  %3435 = vmatprep.subr.mxu0 0.0
  %3436 = vmatpush1.msra.mxu0 0.0
  %3437 = vmatprep.subr.mxu0 0.0
  %3438 = vmatpush1.msra.mxu0 0.0
  %3439 = vmatprep.subr.mxu0 0.0
  %3440 = vmatpush1.msra.mxu0 0.0
  %3441 = vmatprep.subr.mxu0 0.0
  %3442 = vmatpush1.msra.mxu0 0.0
  %3443 = vmatprep.subr.mxu0 0.0
  %3444 = vmatpush1.msra.mxu0 0.0
  %3445 = vmatprep.subr.mxu0 0.0
  %3446 = vmatpush1.msra.mxu0 0.0
  %3447 = vmatprep.subr.mxu0 0.0
  %3448 = vmatpush1.msra.mxu0 0.0
  %3449 = vmatprep.mubr.f32.mxu0 0.0
  %3450 = vmatmul.mubr.f32.gmra.mrb[0].mxu0 %v3383
  %v3451 = vpop.f32.mrb[0].mxu0
  %v3452 = vadd.f32 0.0, %v3451
  %v3453 = vpop.f32.mrb[0].mxu0
  %3454 = vdwg.mxu0
  %v3455 = vadd.f32 %v3379, %v3452
  %v3456 = vmax.f32 %v3455, 0.0
  %v3458 = vsel %vm163, %v3456, 0
  %3460 = vmatprep.subr.mxu0 0.0
  %3461 = vmatpush1.msra.mxu0 %v44
  %3462 = vmatprep.subr.mxu0 0.0
  %3463 = vmatpush1.msra.mxu0 %v45
  %3464 = vmatprep.subr.mxu0 0.0
  %3465 = vmatpush1.msra.mxu0 %v46
  %3466 = vmatprep.subr.mxu0 0.0
  %3467 = vmatpush1.msra.mxu0 %v47
  %3468 = vmatprep.subr.mxu0 0.0
  %3469 = vmatpush1.msra.mxu0 %v48
  %3470 = vmatprep.subr.mxu0 0.0
  %3471 = vmatpush1.msra.mxu0 %v49
  %3472 = vmatprep.subr.mxu0 0.0
  %3473 = vmatpush1.msra.mxu0 %v50
  %3474 = vmatprep.subr.mxu0 0.0
  %3475 = vmatpush1.msra.mxu0 %v51
  %3476 = vmatprep.subr.mxu0 0.0
  %3477 = vmatpush1.msra.mxu0 %v52
  %3478 = vmatprep.subr.mxu0 0.0
  %3479 = vmatpush1.msra.mxu0 %v53
  %3480 = vmatprep.subr.mxu0 0.0
  %3481 = vmatpush1.msra.mxu0 %v54
  %3482 = vmatprep.subr.mxu0 0.0
  %3483 = vmatpush1.msra.mxu0 %v55
  %3484 = vmatprep.subr.mxu0 0.0
  %3485 = vmatpush1.msra.mxu0 0.0
  %3486 = vmatprep.subr.mxu0 0.0
  %3487 = vmatpush1.msra.mxu0 0.0
  %3488 = vmatprep.subr.mxu0 0.0
  %3489 = vmatpush1.msra.mxu0 0.0
  %3490 = vmatprep.subr.mxu0 0.0
  %3491 = vmatpush1.msra.mxu0 0.0
  %3492 = vmatprep.subr.mxu0 0.0
  %3493 = vmatpush1.msra.mxu0 0.0
  %3494 = vmatprep.subr.mxu0 0.0
  %3495 = vmatpush1.msra.mxu0 0.0
  %3496 = vmatprep.subr.mxu0 0.0
  %3497 = vmatpush1.msra.mxu0 0.0
  %3498 = vmatprep.subr.mxu0 0.0
  %3499 = vmatpush1.msra.mxu0 0.0
  %3500 = vmatprep.subr.mxu0 0.0
  %3501 = vmatpush1.msra.mxu0 0.0
  %3502 = vmatprep.subr.mxu0 0.0
  %3503 = vmatpush1.msra.mxu0 0.0
  %3504 = vmatprep.subr.mxu0 0.0
  %3505 = vmatpush1.msra.mxu0 0.0
  %3506 = vmatprep.subr.mxu0 0.0
  %3507 = vmatpush1.msra.mxu0 0.0
  %3508 = vmatprep.subr.mxu0 0.0
  %3509 = vmatpush1.msra.mxu0 0.0
  %3510 = vmatprep.subr.mxu0 0.0
  %3511 = vmatpush1.msra.mxu0 0.0
  %3512 = vmatprep.subr.mxu0 0.0
  %3513 = vmatpush1.msra.mxu0 0.0
  %3514 = vmatprep.subr.mxu0 0.0
  %3515 = vmatpush1.msra.mxu0 0.0
  %3516 = vmatprep.subr.mxu0 0.0
  %3517 = vmatpush1.msra.mxu0 0.0
  %3518 = vmatprep.subr.mxu0 0.0
  %3519 = vmatpush1.msra.mxu0 0.0
  %3520 = vmatprep.subr.mxu0 0.0
  %3521 = vmatpush1.msra.mxu0 0.0
  %3522 = vmatprep.subr.mxu0 0.0
  %3523 = vmatpush1.msra.mxu0 0.0
  %3524 = vmatprep.mubr.f32.mxu0 0.0
  %3525 = vmatmul.mubr.f32.gmra.mrb[0].mxu0 %v3458
  %v3526 = vpop.f32.mrb[0].mxu0
  %v3527 = vadd.f32 %v161, %v3526
  %v3528 = vpop.f32.mrb[0].mxu0
  %3529 = vdwg.mxu0
  %v3530 = vmax.f32 %v3527, 0.0
  %v3531 = vmul.f32 %v3530, %v242
  %3533 = vrot.lane.b32.xlu0 %v3531, 112
  %v3534 = vpop.permute.xlu0 %3533
  %v3536 = vadd.f32 %v3531, %v3534
  %3537 = vrot.lane.b32.xlu0 %v3531, 96
  %v3538 = vpop.permute.xlu0 %3537
  %v3540 = vadd.f32 %v3536, %v3538
  %v3541 = vmax.f32 %v3540, 0.0
  %v3542 = vand.u32 2147483647, %v3540
  %v3543 = vsub.f32 0.0, %v3542
  %v3544 = vmul.f32 %v3543, 1.442695
  %v3545 = vpow.pop %v3544
  %v3546 = vadd.f32 %v3545, 1.0
  %v3547 = vlog2.pop %v3546
  %v3548 = vmul.f32 %v3547, 0.6931472
  %v3549 = vmul.f32 -0.5, %v3545
  %v3550 = vadd.f32 %v3549, 1.0
  %v3551 = vmul.f32 %v3550, %v3545
  %v3552 = vand.u32 2147483647, %v3545
  %vm3553 = vcmp.lt.f32.partialorder %v3552, 0.0004427343
  %v3554 = vsel %vm3553, %v3551, %v3548
  %v3555 = vadd.f32 %v3541, %v3554
  %3558 = vrot.lane.b32.xlu0 %v3540, 32
  %v3559 = vpop.permute.xlu0 %3558
  %v3561 = vsel %vm81, %v3382, %v3559
  %s3562 = scalar_lea.vmem %s11, 56
  %3563 = vst.msk [vmem:[%s3562] sm:$0xff] %vm274, %v3561
  %s3564 = scalar_lea.vmem %s2, 56
  %v3565 = vld [vmem:[%s3564] sm:$0xff]
  %v3566 = vmul.f32 %v3565, %v3555
  %v3567 = vadd.f32 %v3566, %v3541
  %v3569 = vsel %vm285, %v3567, 0
  %3571 = vmatprep.subr.mxu0 0.0
  %3572 = vmatpush1.msra.mxu0 %v58
  %3573 = vmatprep.subr.mxu0 0.0
  %3574 = vmatpush1.msra.mxu0 %v59
  %3575 = vmatprep.subr.mxu0 0.0
  %3576 = vmatpush1.msra.mxu0 0.0
  %3577 = vmatprep.subr.mxu0 0.0
  %3578 = vmatpush1.msra.mxu0 0.0
  %3579 = vmatprep.subr.mxu0 0.0
  %3580 = vmatpush1.msra.mxu0 0.0
  %3581 = vmatprep.subr.mxu0 0.0
  %3582 = vmatpush1.msra.mxu0 0.0
  %3583 = vmatprep.subr.mxu0 0.0
  %3584 = vmatpush1.msra.mxu0 0.0
  %3585 = vmatprep.subr.mxu0 0.0
  %3586 = vmatpush1.msra.mxu0 0.0
  %3587 = vmatprep.subr.mxu0 0.0
  %3588 = vmatpush1.msra.mxu0 0.0
  %3589 = vmatprep.subr.mxu0 0.0
  %3590 = vmatpush1.msra.mxu0 0.0
  %3591 = vmatprep.subr.mxu0 0.0
  %3592 = vmatpush1.msra.mxu0 0.0
  %3593 = vmatprep.subr.mxu0 0.0
  %3594 = vmatpush1.msra.mxu0 0.0
  %3595 = vmatprep.subr.mxu0 0.0
  %3596 = vmatpush1.msra.mxu0 0.0
  %3597 = vmatprep.subr.mxu0 0.0
  %3598 = vmatpush1.msra.mxu0 0.0
  %3599 = vmatprep.subr.mxu0 0.0
  %3600 = vmatpush1.msra.mxu0 0.0
  %3601 = vmatprep.subr.mxu0 0.0
  %3602 = vmatpush1.msra.mxu0 0.0
  %3603 = vmatprep.subr.mxu0 0.0
  %3604 = vmatpush1.msra.mxu0 0.0
  %3605 = vmatprep.subr.mxu0 0.0
  %3606 = vmatpush1.msra.mxu0 0.0
  %3607 = vmatprep.subr.mxu0 0.0
  %3608 = vmatpush1.msra.mxu0 0.0
  %3609 = vmatprep.subr.mxu0 0.0
  %3610 = vmatpush1.msra.mxu0 0.0
  %3611 = vmatprep.subr.mxu0 0.0
  %3612 = vmatpush1.msra.mxu0 0.0
  %3613 = vmatprep.subr.mxu0 0.0
  %3614 = vmatpush1.msra.mxu0 0.0
  %3615 = vmatprep.subr.mxu0 0.0
  %3616 = vmatpush1.msra.mxu0 0.0
  %3617 = vmatprep.subr.mxu0 0.0
  %3618 = vmatpush1.msra.mxu0 0.0
  %3619 = vmatprep.subr.mxu0 0.0
  %3620 = vmatpush1.msra.mxu0 0.0
  %3621 = vmatprep.subr.mxu0 0.0
  %3622 = vmatpush1.msra.mxu0 0.0
  %3623 = vmatprep.subr.mxu0 0.0
  %3624 = vmatpush1.msra.mxu0 0.0
  %3625 = vmatprep.subr.mxu0 0.0
  %3626 = vmatpush1.msra.mxu0 0.0
  %3627 = vmatprep.subr.mxu0 0.0
  %3628 = vmatpush1.msra.mxu0 0.0
  %3629 = vmatprep.subr.mxu0 0.0
  %3630 = vmatpush1.msra.mxu0 0.0
  %3631 = vmatprep.subr.mxu0 0.0
  %3632 = vmatpush1.msra.mxu0 0.0
  %3633 = vmatprep.subr.mxu0 0.0
  %3634 = vmatpush1.msra.mxu0 0.0
  %3635 = vmatprep.mubr.f32.mxu0 0.0
  %3636 = vmatmul.mubr.f32.gmra.mrb[0].mxu0 %v3569
  %v3637 = vpop.f32.mrb[0].mxu0
  %v3638 = vadd.f32 %v283, %v3637
  %v3639 = vpop.f32.mrb[0].mxu0
  %3640 = vdwg.mxu0
  %v3641 = vmax.f32 %v3638, 0.0
  %s3642 = scalar_lea.vmem %s1, 56
  %v3643 = vld [vmem:[%s3642] sm:$0xff]
  %v3644 = vsel %vm81, %v3641, %v3274
  %v3646 = vsel %vm362, %v3644, 0
  %3648 = vmatprep.subr.mxu0 0.0
  %3649 = vmatpush1.msra.mxu0 %v61
  %3650 = vmatprep.subr.mxu0 0.0
  %3651 = vmatpush1.msra.mxu0 %v62
  %3652 = vmatprep.subr.mxu0 0.0
  %3653 = vmatpush1.msra.mxu0 %v63
  %3654 = vmatprep.subr.mxu0 0.0
  %3655 = vmatpush1.msra.mxu0 %v64
  %3656 = vmatprep.subr.mxu0 0.0
  %3657 = vmatpush1.msra.mxu0 %v65
  %3658 = vmatprep.subr.mxu0 0.0
  %3659 = vmatpush1.msra.mxu0 %v66
  %3660 = vmatprep.subr.mxu0 0.0
  %3661 = vmatpush1.msra.mxu0 %v67
  %3662 = vmatprep.subr.mxu0 0.0
  %3663 = vmatpush1.msra.mxu0 %v68
  %3664 = vmatprep.subr.mxu0 0.0
  %3665 = vmatpush1.msra.mxu0 0.0
  %3666 = vmatprep.subr.mxu0 0.0
  %3667 = vmatpush1.msra.mxu0 0.0
  %3668 = vmatprep.subr.mxu0 0.0
  %3669 = vmatpush1.msra.mxu0 0.0
  %3670 = vmatprep.subr.mxu0 0.0
  %3671 = vmatpush1.msra.mxu0 0.0
  %3672 = vmatprep.subr.mxu0 0.0
  %3673 = vmatpush1.msra.mxu0 0.0
  %3674 = vmatprep.subr.mxu0 0.0
  %3675 = vmatpush1.msra.mxu0 0.0
  %3676 = vmatprep.subr.mxu0 0.0
  %3677 = vmatpush1.msra.mxu0 0.0
  %3678 = vmatprep.subr.mxu0 0.0
  %3679 = vmatpush1.msra.mxu0 0.0
  %3680 = vmatprep.subr.mxu0 0.0
  %3681 = vmatpush1.msra.mxu0 0.0
  %3682 = vmatprep.subr.mxu0 0.0
  %3683 = vmatpush1.msra.mxu0 0.0
  %3684 = vmatprep.subr.mxu0 0.0
  %3685 = vmatpush1.msra.mxu0 0.0
  %3686 = vmatprep.subr.mxu0 0.0
  %3687 = vmatpush1.msra.mxu0 0.0
  %3688 = vmatprep.subr.mxu0 0.0
  %3689 = vmatpush1.msra.mxu0 0.0
  %3690 = vmatprep.subr.mxu0 0.0
  %3691 = vmatpush1.msra.mxu0 0.0
  %3692 = vmatprep.subr.mxu0 0.0
  %3693 = vmatpush1.msra.mxu0 0.0
  %3694 = vmatprep.subr.mxu0 0.0
  %3695 = vmatpush1.msra.mxu0 0.0
  %3696 = vmatprep.subr.mxu0 0.0
  %3697 = vmatpush1.msra.mxu0 0.0
  %3698 = vmatprep.subr.mxu0 0.0
  %3699 = vmatpush1.msra.mxu0 0.0
  %3700 = vmatprep.subr.mxu0 0.0
  %3701 = vmatpush1.msra.mxu0 0.0
  %3702 = vmatprep.subr.mxu0 0.0
  %3703 = vmatpush1.msra.mxu0 0.0
  %3704 = vmatprep.subr.mxu0 0.0
  %3705 = vmatpush1.msra.mxu0 0.0
  %3706 = vmatprep.subr.mxu0 0.0
  %3707 = vmatpush1.msra.mxu0 0.0
  %3708 = vmatprep.subr.mxu0 0.0
  %3709 = vmatpush1.msra.mxu0 0.0
  %3710 = vmatprep.subr.mxu0 0.0
  %3711 = vmatpush1.msra.mxu0 0.0
  %3712 = vmatprep.mubr.f32.mxu0 0.0
  %3713 = vmatmul.mubr.f32.gmra.mrb[0].mxu0 %v3646
  %v3714 = vpop.f32.mrb[0].mxu0
  %v3715 = vadd.f32 %v3643, %v3714
  %v3716 = vpop.f32.mrb[0].mxu0
  %3717 = vdwg.mxu0
  %v3718 = vxor.u32 %v3715, 2147483648
  %v3719 = vmul.f32 %v3718, 1.442695
  %v3720 = vpow.pop %v3719
  %v3721 = vadd.f32 %v3720, 1.0
  %v3722 = vrcp.pop %v3721
  %v3723 = vmul.f32 1.0, %v3722
  %3725 = vrot.lane.b32.xlu0 %v3715, 32
  %v3726 = vpop.permute.xlu0 %3725
  %v3728 = vmul.f32 %v3723, %v3726
  %3730 = vrot.lane.b32.xlu0 %v3728, 64
  %v3731 = vpop.permute.xlu0 %3730
  %v3733 = vadd.f32 %v3715, %v3731
  %v3734 = vtanh.pop %v3733
  %v3735 = vsub.f32 1.0, %v3723
  %3737 = vrot.lane.b32.xlu0 %v3734, 96
  %v3738 = vpop.permute.xlu0 %3737
  %v3740 = vmul.f32 %v3735, %v3738
  %v3741 = vmul.f32 %v3723, %v3274
  %v3742 = vadd.f32 %v3740, %v3741
  %3744 = vrot.lane.b32.xlu0 %v3742, 96
  %v3745 = vpop.permute.xlu0 %3744
  %v3747 = vsel %vm81, %v3745, %v3377
  %v3749 = vsel %vm362, %v3747, 0
  %3751 = vmatprep.subr.mxu0 0.0
  %3752 = vmatpush1.msra.mxu0 %v70
  %3753 = vmatprep.subr.mxu0 0.0
  %3754 = vmatpush1.msra.mxu0 %v71
  %3755 = vmatprep.subr.mxu0 0.0
  %3756 = vmatpush1.msra.mxu0 %v72
  %3757 = vmatprep.subr.mxu0 0.0
  %3758 = vmatpush1.msra.mxu0 %v73
  %3759 = vmatprep.subr.mxu0 0.0
  %3760 = vmatpush1.msra.mxu0 %v74
  %3761 = vmatprep.subr.mxu0 0.0
  %3762 = vmatpush1.msra.mxu0 %v75
  %3763 = vmatprep.subr.mxu0 0.0
  %3764 = vmatpush1.msra.mxu0 %v76
  %3765 = vmatprep.subr.mxu0 0.0
  %3766 = vmatpush1.msra.mxu0 %v77
  %3767 = vmatprep.subr.mxu0 0.0
  %3768 = vmatpush1.msra.mxu0 0.0
  %3769 = vmatprep.subr.mxu0 0.0
  %3770 = vmatpush1.msra.mxu0 0.0
  %3771 = vmatprep.subr.mxu0 0.0
  %3772 = vmatpush1.msra.mxu0 0.0
  %3773 = vmatprep.subr.mxu0 0.0
  %3774 = vmatpush1.msra.mxu0 0.0
  %3775 = vmatprep.subr.mxu0 0.0
  %3776 = vmatpush1.msra.mxu0 0.0
  %3777 = vmatprep.subr.mxu0 0.0
  %3778 = vmatpush1.msra.mxu0 0.0
  %3779 = vmatprep.subr.mxu0 0.0
  %3780 = vmatpush1.msra.mxu0 0.0
  %3781 = vmatprep.subr.mxu0 0.0
  %3782 = vmatpush1.msra.mxu0 0.0
  %3783 = vmatprep.subr.mxu0 0.0
  %3784 = vmatpush1.msra.mxu0 0.0
  %3785 = vmatprep.subr.mxu0 0.0
  %3786 = vmatpush1.msra.mxu0 0.0
  %3787 = vmatprep.subr.mxu0 0.0
  %3788 = vmatpush1.msra.mxu0 0.0
  %3789 = vmatprep.subr.mxu0 0.0
  %3790 = vmatpush1.msra.mxu0 0.0
  %3791 = vmatprep.subr.mxu0 0.0
  %3792 = vmatpush1.msra.mxu0 0.0
  %3793 = vmatprep.subr.mxu0 0.0
  %3794 = vmatpush1.msra.mxu0 0.0
  %3795 = vmatprep.subr.mxu0 0.0
  %3796 = vmatpush1.msra.mxu0 0.0
  %3797 = vmatprep.subr.mxu0 0.0
  %3798 = vmatpush1.msra.mxu0 0.0
  %3799 = vmatprep.subr.mxu0 0.0
  %3800 = vmatpush1.msra.mxu0 0.0
  %3801 = vmatprep.subr.mxu0 0.0
  %3802 = vmatpush1.msra.mxu0 0.0
  %3803 = vmatprep.subr.mxu0 0.0
  %3804 = vmatpush1.msra.mxu0 0.0
  %3805 = vmatprep.subr.mxu0 0.0
  %3806 = vmatpush1.msra.mxu0 0.0
  %3807 = vmatprep.subr.mxu0 0.0
  %3808 = vmatpush1.msra.mxu0 0.0
  %3809 = vmatprep.subr.mxu0 0.0
  %3810 = vmatpush1.msra.mxu0 0.0
  %3811 = vmatprep.subr.mxu0 0.0
  %3812 = vmatpush1.msra.mxu0 0.0
  %3813 = vmatprep.subr.mxu0 0.0
  %3814 = vmatpush1.msra.mxu0 0.0
  %3815 = vmatprep.mubr.f32.mxu0 0.0
  %3816 = vmatmul.mubr.f32.gmra.mrb[0].mxu0 %v3749
  %v3817 = vpop.f32.mrb[0].mxu0
  %v3818 = vadd.f32 %v470, %v3817
  %v3819 = vpop.f32.mrb[0].mxu0
  %3820 = vdwg.mxu0
  %v3821 = vxor.u32 %v3818, 2147483648
  %v3822 = vmul.f32 %v3821, 1.442695
  %v3823 = vpow.pop %v3822
  %v3824 = vadd.f32 %v3823, 1.0
  %v3825 = vrcp.pop %v3824
  %v3826 = vmul.f32 1.0, %v3825
  %3828 = vrot.lane.b32.xlu0 %v3818, 32
  %v3829 = vpop.permute.xlu0 %3828
  %v3831 = vmul.f32 %v3826, %v3829
  %3833 = vrot.lane.b32.xlu0 %v3831, 64
  %v3834 = vpop.permute.xlu0 %3833
  %v3836 = vadd.f32 %v3818, %v3834
  %v3837 = vtanh.pop %v3836
  %v3838 = vsub.f32 1.0, %v3826
  %3840 = vrot.lane.b32.xlu0 %v3837, 96
  %v3841 = vpop.permute.xlu0 %3840
  %v3843 = vmul.f32 %v3838, %v3841
  %v3844 = vmul.f32 %v3826, %v3377
  %v3845 = vadd.f32 %v3843, %v3844
  %3846 = vst.msk [vmem:[%s12] sm:$0xff] %vm81, %v3745
  %3848 = vrot.lane.b32.xlu0 %v3845, 96
  %v3849 = vpop.permute.xlu0 %3848
  %s3851 = scalar_lea.vmem %s12, 8
  %3852 = vst.msk [vmem:[%s3851] sm:$0xff] %vm81, %v3849
  // Predicated region
  $region46: #{mavap_forward.1} parent=0 // pred_check
    _
  $region47: #{mavap_forward.1} parent=0 // pred_check_branch
    %3854 = sbr.rel (0) target = $region49
  $region48: #{mavap_forward.1} parent=0 // pred_region
    _
  $region49: #{mavap_forward.1} parent=0 // pred_fallthru
    _
  // Predicated region
  $region50: #{mavap_forward.1} parent=0 // pred_check
    _
  $region51: #{mavap_forward.1} parent=0 // pred_check_branch
    %3856 = sbr.rel (0) target = $region53
  $region52: #{mavap_forward.1} parent=0 // pred_region
    _
  $region53: #{mavap_forward.1} parent=0 // pred_fallthru
    _
  // Predicated region
  $region54: #{mavap_forward.1} parent=0 // pred_check
    _
  $region55: #{mavap_forward.1} parent=0 // pred_check_branch
    %3858 = sbr.rel (0) target = $region57
  $region56: #{mavap_forward.1} parent=0 // pred_region
    _
  $region57: #{mavap_forward.1} parent=0 // pred_fallthru
    _
  // Predicated region
  $region58: #{mavap_forward.1} parent=0 // pred_check
    _
  $region59: #{mavap_forward.1} parent=0 // pred_check_branch
    %3860 = sbr.rel (0) target = $region61
  $region60: #{mavap_forward.1} parent=0 // pred_region
    _
  $region61: #{mavap_forward.1} parent=0 // pred_fallthru
    _

</llo_original>
